<compile_context>
chip_gen: v7x
topology: tpu7x:2x2x1
jax: 0.10.0
libtpu: 0.0.40
codegen_flags: <defaults>
</compile_context>

<pallas_src>
import jax
import jax.numpy as jnp
from jax.experimental import pallas as pl
from jax.experimental.pallas import tpu as pltpu


# ----------------------------------------------------------------------------
# Fused kernel: fc1+bn1+relu -> fc2(int8)+bn2+relu -> fc3(int8)+bn3+relu
#               -> fc4+bn4.   Runs once per batch tile; weights stay resident.
# ----------------------------------------------------------------------------
def _fused_mlp_kernel(x_ref, w1_ref, w23_ref, w4_ref, ss_ref, o_ref):
    bf = jnp.bfloat16

    def bn(y, row, width):
        # eval-mode BatchNorm1d folded to scale/shift (bias folded into shift)
        s = ss_ref[row:row + 1, :width]
        t = ss_ref[row + 1:row + 2, :width]
        return y * s + t

    x = x_ref[...]                                                   # bf16
    # fc1 (wbits=32 -> bf16 weights) + bn1 + ReLU; K padded 784 -> 896.
    h = jnp.dot(x, w1_ref[...], preferred_element_type=jnp.float32)
    h = jnp.maximum(bn(h, 0, 512), 0.0).astype(bf)
    # fc2 / fc3: PsumQLinear with int8 (wbits) weights; per-channel dequant
    # scale is folded into the BN scale, so a single full-K bf16 dot suffices.
    # TODO(synk): abits activation quant and per-arraySize ADC/psum quant are
    # not reproduced; if added, reintroduce the arraySize-chunked accumulation.
    h = jnp.dot(h, w23_ref[0].astype(bf), preferred_element_type=jnp.float32)
    h = jnp.maximum(bn(h, 2, 512), 0.0).astype(bf)
    h = jnp.dot(h, w23_ref[1].astype(bf), preferred_element_type=jnp.float32)
    h = jnp.maximum(bn(h, 4, 512), 0.0).astype(bf)
    # fc4 (wbits=32 -> bf16) + bn4; output lane-padded to 128.
    y = jnp.dot(h, w4_ref[...], preferred_element_type=jnp.float32)
    o_ref[...] = bn(y, 6, o_ref.shape[1]).astype(o_ref.dtype)


def psum_mlp_forward(x_nchw, kp, *, tile_b=128):
    """Fused Pallas forward.  kp = prepared (quantized / folded) params."""
    B = x_nchw.shape[0]
    x = x_nchw.reshape(B, -1).astype(jnp.bfloat16)       # torch.flatten(x, 1)

    k1_pad = kp["w1"].shape[0]
    lane_pad = kp["w4"].shape[1]
    x = jnp.pad(x, ((0, 0), (0, k1_pad - x.shape[1])))   # K: 784 -> 896

    tile_b = min(tile_b, max(8, -(-B // 8) * 8))
    b_pad = -(-B // tile_b) * tile_b
    if b_pad != B:
        x = jnp.pad(x, ((0, b_pad - B), (0, 0)))
    grid = (b_pad // tile_b,)

    flops = 2 * b_pad * (k1_pad * 512 + 2 * 512 * 512 + 512 * lane_pad)
    bytes_accessed = (kp["w1"].size * 2 + kp["w23"].size + kp["w4"].size * 2
                      + kp["ss"].size * 4 + x.size * 2 + b_pad * lane_pad * 4)

    out_padded = pl.pallas_call(
        _fused_mlp_kernel,
        out_shape=jax.ShapeDtypeStruct((b_pad, lane_pad), jnp.float32),
        grid=grid,
        in_specs=[
            pl.BlockSpec((tile_b, k1_pad), lambda i: (i, 0)),   # x: per-tile DMA
            pl.BlockSpec(kp["w1"].shape, lambda i: (0, 0)),     # weights: constant
            pl.BlockSpec(kp["w23"].shape, lambda i: (0, 0, 0)), #   index_map ->
            pl.BlockSpec(kp["w4"].shape, lambda i: (0, 0)),     #   DMA'd once,
            pl.BlockSpec(kp["ss"].shape, lambda i: (0, 0)),     #   VMEM-resident
        ],
        out_specs=pl.BlockSpec((tile_b, lane_pad), lambda i: (i, 0)),
        compiler_params=pltpu.CompilerParams(
            dimension_semantics=("parallel",)),
        cost_estimate=pl.CostEstimate(flops=flops, transcendentals=0,
                                      bytes_accessed=bytes_accessed),
    )(x, kp["w1"], kp["w23"], kp["w4"], kp["ss"])
    return out_padded[:B, :kp["num_classes"]]


# ----------------------------------------------------------------------------
# Parameter construction (deterministic) and host-side prep.
# ----------------------------------------------------------------------------
def _make_linear(key, in_f, out_f):
    kw, kb = jax.random.split(key)
    bound = 1.0 / jnp.sqrt(in_f)
    w = jax.random.uniform(kw, (in_f, out_f), jnp.float32, -bound, bound)
    b = jax.random.uniform(kb, (out_f,), jnp.float32, -bound, bound)
    return w, b


def _make_bn(key, num_f, eps=1e-5):
    # eval-mode BatchNorm1d folded into scale/shift:
    #   y = (x - mean) / sqrt(var + eps) * gamma + beta
    k1, k2, k3 = jax.random.split(key, 3)
    gamma = 1.0 + 0.1 * jax.random.normal(k1, (num_f,), jnp.float32)
    beta = 0.1 * jax.random.normal(k2, (num_f,), jnp.float32)
    mean = 0.1 * jax.random.normal(k3, (num_f,), jnp.float32)
    var = jnp.ones((num_f,), jnp.float32)
    scale = gamma / jnp.sqrt(var + eps)
    shift = beta - mean * scale
    return scale, shift


def init_params(key, num_classes=10):
    ks = jax.random.split(key, 8)
    p = {}
    p["fc1_w"], p["fc1_b"] = _make_linear(ks[0], 784, 512)
    p["bn1_s"], p["bn1_t"] = _make_bn(ks[1], 512)
    p["fc2_w"], p["fc2_b"] = _make_linear(ks[2], 512, 512)
    p["bn2_s"], p["bn2_t"] = _make_bn(ks[3], 512)
    p["fc3_w"], p["fc3_b"] = _make_linear(ks[4], 512, 512)
    p["bn3_s"], p["bn3_t"] = _make_bn(ks[5], 512)
    p["fc4_w"], p["fc4_b"] = _make_linear(ks[6], 512, num_classes)
    p["bn4_s"], p["bn4_t"] = _make_bn(ks[7], num_classes)
    return p


def _quantize_int8(w, wbits=8):
    # Symmetric per-output-channel weight quantization (PsumQLinear wbits).
    qmax = 2.0 ** (wbits - 1) - 1.0
    scale = jnp.maximum(jnp.max(jnp.abs(w), axis=0) / qmax, 1e-8)
    wq = jnp.clip(jnp.round(w / scale), -qmax, qmax).astype(jnp.int8)
    return wq, scale


def prepare_kernel_params(p, num_classes, *, k1_pad=896, lane_pad=128,
                          wbits=8, array_size=128):
    """int8 fc2/fc3, bf16 fc1/fc4, bias+dequant folded into BN scale/shift."""
    assert 512 % array_size == 0, "arraySize must divide the psum fan-in"

    # fc1: bf16, contraction dim zero-padded 784 -> k1_pad (full MXU K passes)
    w1 = jnp.pad(p["fc1_w"],
                 ((0, k1_pad - p["fc1_w"].shape[0]), (0, 0))).astype(jnp.bfloat16)
    s1 = p["bn1_s"]
    t1 = p["bn1_t"] + p["fc1_b"] * p["bn1_s"]

    # fc2 / fc3: int8 weights, dequant scale folded into the BN scale.
    w2q, q2 = _quantize_int8(p["fc2_w"], wbits)
    s2 = p["bn2_s"] * q2
    t2 = p["bn2_t"] + p["fc2_b"] * p["bn2_s"]
    w3q, q3 = _quantize_int8(p["fc3_w"], wbits)
    s3 = p["bn3_s"] * q3
    t3 = p["bn3_t"] + p["fc3_b"] * p["bn3_s"]
    w23 = jnp.stack([w2q, w3q])                        # (2, 512, 512) int8

    # fc4: bf16, output padded to a full 128-lane width (unmasked stores).
    n = num_classes
    w4 = jnp.pad(p["fc4_w"], ((0, 0), (0, lane_pad - n))).astype(jnp.bfloat16)
    s4 = jnp.pad(p["bn4_s"], (0, 512 - n), constant_values=1.0)
    t4 = jnp.pad(p["bn4_t"] + p["fc4_b"] * p["bn4_s"], (0, 512 - n))

    # All scale/shift vectors packed into a single (8, 512) f32 input.
    ss = jnp.stack([s1, t1, s2, t2, s3, t3, s4, t4]).astype(jnp.float32)

    return {"w1": w1, "w23": w23, "w4": w4, "ss": ss,
            "num_classes": num_classes}


def _reference_forward(x_nchw, p, *, wbits=8):
    # pure-JAX reference mirroring the bf16 / int8-weight / f32-acc pipeline
    bf = jnp.bfloat16

    def lin(h, w, b, s, t, relu, quant):
        if quant:
            wq, qs = _quantize_int8(w, wbits)
            y = jnp.dot(h.astype(bf), wq.astype(bf),
                        preferred_element_type=jnp.float32) * qs
        else:
            y = jnp.dot(h.astype(bf), w.astype(bf),
                        preferred_element_type=jnp.float32)
        y = y * s + (b * s + t)
        return jnp.maximum(y, 0.0) if relu else y

    x = x_nchw.reshape(x_nchw.shape[0], -1)
    h = lin(x, p["fc1_w"], p["fc1_b"], p["bn1_s"], p["bn1_t"], True, False)
    h = lin(h, p["fc2_w"], p["fc2_b"], p["bn2_s"], p["bn2_t"], True, True)
    h = lin(h, p["fc3_w"], p["fc3_b"], p["bn3_s"], p["bn3_t"], True, True)
    return lin(h, p["fc4_w"], p["fc4_b"], p["bn4_s"], p["bn4_t"], False, False)


if __name__ == "__main__":
    key = jax.random.PRNGKey(0)
    k_params, k_x = jax.random.split(key)

    num_classes = 10
    wbits = 8                  # PsumQLinear wbits
    array_size = 128           # PsumQLinear arraySize (divides 512)
    batch = 256                # >=128 so per-call weight DMA is amortized

    params = init_params(k_params, num_classes=num_classes)
    kparams = prepare_kernel_params(params, num_classes,
                                    wbits=wbits, array_size=array_size)
    x = jax.random.normal(k_x, (batch, 1, 28, 28), jnp.float32)  # 1*28*28 = 784

    out = psum_mlp_forward(x, kparams, tile_b=128)
    out = jax.block_until_ready(out)

    ref = _reference_forward(x, params, wbits=wbits)
    assert out.shape == (batch, num_classes)
    assert jnp.allclose(out, ref, atol=2e-2, rtol=2e-2), (
        float(jnp.max(jnp.abs(out - ref))))

    print("KERNEL_OK")
</pallas_src>

<mosaic_0001>
module attributes {stable_mosaic.version = 11 : i64} {
  func.func @_fused_mlp_kernel(%arg0: i32, %arg1: memref<128x896xbf16, #tpu.memory_space<vmem>>, %arg2: memref<896x512xbf16, #tpu.memory_space<vmem>>, %arg3: memref<2x512x512xi8, #tpu.memory_space<vmem>>, %arg4: memref<512x128xbf16, #tpu.memory_space<vmem>>, %arg5: memref<8x512xf32, #tpu.memory_space<vmem>>, %arg6: memref<128x128xf32, #tpu.memory_space<vmem>>) attributes {dimension_semantics = [#tpu.dimension_semantics<parallel>], iteration_bounds = array<i64: 2>, scalar_prefetch = 0 : i64, scratch_operands = 0 : i64, tpu.core_type = #tpu.core_type<tc>, window_params = [{transform_indices = @transform_0, window_bounds = array<i64: 128, 896>}, {pipeline_mode = #tpu.pipeline_mode<synchronous>, transform_indices = @transform_1, window_bounds = array<i64: 896, 512>}, {pipeline_mode = #tpu.pipeline_mode<synchronous>, transform_indices = @transform_2, window_bounds = array<i64: 2, 512, 512>}, {pipeline_mode = #tpu.pipeline_mode<synchronous>, transform_indices = @transform_3, window_bounds = array<i64: 512, 128>}, {pipeline_mode = #tpu.pipeline_mode<synchronous>, transform_indices = @transform_4, window_bounds = array<i64: 8, 512>}, {transform_indices = @transform_5, window_bounds = array<i64: 128, 128>}]} {
    %c0 = arith.constant 0 : index
    %c0_0 = arith.constant 0 : index
    %0 = vector.load %arg1[%c0, %c0_0] : memref<128x896xbf16, #tpu.memory_space<vmem>>, vector<128x896xbf16>
    %c0_1 = arith.constant 0 : index
    %c0_2 = arith.constant 0 : index
    %1 = vector.load %arg2[%c0_1, %c0_2] : memref<896x512xbf16, #tpu.memory_space<vmem>>, vector<896x512xbf16>
    %cst = arith.constant dense<0.000000e+00> : vector<128x512xf32>
    %2 = tpu.matmul %0, %1, %cst {dimension_numbers = #tpu.dot_dimension_numbers<[1], [0], [0], [1], [0, 0, 1, 1], [], []>} : vector<128x896xbf16>, vector<896x512xbf16>, vector<128x512xf32> -> vector<128x512xf32>
    %c0_3 = arith.constant 0 : index
    %c0_4 = arith.constant 0 : index
    %3 = vector.load %arg5[%c0_3, %c0_4] : memref<8x512xf32, #tpu.memory_space<vmem>>, vector<1x512xf32>
    %c1 = arith.constant 1 : index
    %c0_5 = arith.constant 0 : index
    %4 = vector.load %arg5[%c1, %c0_5] : memref<8x512xf32, #tpu.memory_space<vmem>>, vector<1x512xf32>
    %5 = vector.broadcast %3 : vector<1x512xf32> to vector<128x512xf32>
    %6 = arith.mulf %2, %5 : vector<128x512xf32>
    %7 = vector.broadcast %4 : vector<1x512xf32> to vector<128x512xf32>
    %8 = arith.addf %6, %7 : vector<128x512xf32>
    %cst_6 = arith.constant 0.000000e+00 : f32
    %9 = vector.broadcast %cst_6 : f32 to vector<128x512xf32>
    %10 = arith.maximumf %8, %9 : vector<128x512xf32>
    %11 = arith.truncf %10 : vector<128x512xf32> to vector<128x512xbf16>
    %c0_7 = arith.constant 0 : index
    %c0_8 = arith.constant 0 : index
    %c0_9 = arith.constant 0 : index
    %12 = vector.load %arg3[%c0_7, %c0_8, %c0_9] : memref<2x512x512xi8, #tpu.memory_space<vmem>>, vector<1x512x512xi8>
    %13 = vector.shape_cast %12 : vector<1x512x512xi8> to vector<512x512xi8>
    %14 = arith.sitofp %13 : vector<512x512xi8> to vector<512x512xbf16>
    %cst_10 = arith.constant dense<0.000000e+00> : vector<128x512xf32>
    %15 = tpu.matmul %11, %14, %cst_10 {dimension_numbers = #tpu.dot_dimension_numbers<[1], [0], [0], [1], [0, 0, 1, 1], [], []>} : vector<128x512xbf16>, vector<512x512xbf16>, vector<128x512xf32> -> vector<128x512xf32>
    %c2 = arith.constant 2 : index
    %c0_11 = arith.constant 0 : index
    %16 = vector.load %arg5[%c2, %c0_11] : memref<8x512xf32, #tpu.memory_space<vmem>>, vector<1x512xf32>
    %c3 = arith.constant 3 : index
    %c0_12 = arith.constant 0 : index
    %17 = vector.load %arg5[%c3, %c0_12] : memref<8x512xf32, #tpu.memory_space<vmem>>, vector<1x512xf32>
    %18 = vector.broadcast %16 : vector<1x512xf32> to vector<128x512xf32>
    %19 = arith.mulf %15, %18 : vector<128x512xf32>
    %20 = vector.broadcast %17 : vector<1x512xf32> to vector<128x512xf32>
    %21 = arith.addf %19, %20 : vector<128x512xf32>
    %cst_13 = arith.constant 0.000000e+00 : f32
    %22 = vector.broadcast %cst_13 : f32 to vector<128x512xf32>
    %23 = arith.maximumf %21, %22 : vector<128x512xf32>
    %24 = arith.truncf %23 : vector<128x512xf32> to vector<128x512xbf16>
    %c1_14 = arith.constant 1 : index
    %c0_15 = arith.constant 0 : index
    %c0_16 = arith.constant 0 : index
    %25 = vector.load %arg3[%c1_14, %c0_15, %c0_16] : memref<2x512x512xi8, #tpu.memory_space<vmem>>, vector<1x512x512xi8>
    %26 = vector.shape_cast %25 : vector<1x512x512xi8> to vector<512x512xi8>
    %27 = arith.sitofp %26 : vector<512x512xi8> to vector<512x512xbf16>
    %cst_17 = arith.constant dense<0.000000e+00> : vector<128x512xf32>
    %28 = tpu.matmul %24, %27, %cst_17 {dimension_numbers = #tpu.dot_dimension_numbers<[1], [0], [0], [1], [0, 0, 1, 1], [], []>} : vector<128x512xbf16>, vector<512x512xbf16>, vector<128x512xf32> -> vector<128x512xf32>
    %c4 = arith.constant 4 : index
    %c0_18 = arith.constant 0 : index
    %29 = vector.load %arg5[%c4, %c0_18] : memref<8x512xf32, #tpu.memory_space<vmem>>, vector<1x512xf32>
    %c5 = arith.constant 5 : index
    %c0_19 = arith.constant 0 : index
    %30 = vector.load %arg5[%c5, %c0_19] : memref<8x512xf32, #tpu.memory_space<vmem>>, vector<1x512xf32>
    %31 = vector.broadcast %29 : vector<1x512xf32> to vector<128x512xf32>
    %32 = arith.mulf %28, %31 : vector<128x512xf32>
    %33 = vector.broadcast %30 : vector<1x512xf32> to vector<128x512xf32>
    %34 = arith.addf %32, %33 : vector<128x512xf32>
    %cst_20 = arith.constant 0.000000e+00 : f32
    %35 = vector.broadcast %cst_20 : f32 to vector<128x512xf32>
    %36 = arith.maximumf %34, %35 : vector<128x512xf32>
    %37 = arith.truncf %36 : vector<128x512xf32> to vector<128x512xbf16>
    %c0_21 = arith.constant 0 : index
    %c0_22 = arith.constant 0 : index
    %38 = vector.load %arg4[%c0_21, %c0_22] : memref<512x128xbf16, #tpu.memory_space<vmem>>, vector<512x128xbf16>
    %cst_23 = arith.constant dense<0.000000e+00> : vector<128x128xf32>
    %39 = tpu.matmul %37, %38, %cst_23 {dimension_numbers = #tpu.dot_dimension_numbers<[1], [0], [0], [1], [0, 0, 1, 1], [], []>} : vector<128x512xbf16>, vector<512x128xbf16>, vector<128x128xf32> -> vector<128x128xf32>
    %c6 = arith.constant 6 : index
    %c0_24 = arith.constant 0 : index
    %40 = vector.load %arg5[%c6, %c0_24] : memref<8x512xf32, #tpu.memory_space<vmem>>, vector<1x128xf32>
    %c7 = arith.constant 7 : index
    %c0_25 = arith.constant 0 : index
    %41 = vector.load %arg5[%c7, %c0_25] : memref<8x512xf32, #tpu.memory_space<vmem>>, vector<1x128xf32>
    %42 = vector.broadcast %40 : vector<1x128xf32> to vector<128x128xf32>
    %43 = arith.mulf %39, %42 : vector<128x128xf32>
    %44 = vector.broadcast %41 : vector<1x128xf32> to vector<128x128xf32>
    %45 = arith.addf %43, %44 : vector<128x128xf32>
    %c0_26 = arith.constant 0 : index
    %c0_27 = arith.constant 0 : index
    %46 = vector.load %arg6[%c0_26, %c0_27] : memref<128x128xf32, #tpu.memory_space<vmem>>, vector<128x128xf32>
    tpu.vector_store %arg6[%c0_26, %c0_27], %45 {strides = array<i32>} : memref<128x128xf32, #tpu.memory_space<vmem>>, vector<128x128xf32>,
    return
  }
  func.func @transform_0(%arg0: i32) -> (i32, i32) {
    %c0_i32 = arith.constant 0 : i32
    %c0_i32_0 = arith.constant 0 : i32
    return %arg0, %c0_i32 : i32, i32
  }
  func.func @transform_1(%arg0: i32) -> (i32, i32) {
    %c0_i32 = arith.constant 0 : i32
    %c0_i32_0 = arith.constant 0 : i32
    %c0_i32_1 = arith.constant 0 : i32
    return %c0_i32, %c0_i32_0 : i32, i32
  }
  func.func @transform_2(%arg0: i32) -> (i32, i32, i32) {
    %c0_i32 = arith.constant 0 : i32
    %c0_i32_0 = arith.constant 0 : i32
    %c0_i32_1 = arith.constant 0 : i32
    %c0_i32_2 = arith.constant 0 : i32
    return %c0_i32, %c0_i32_0, %c0_i32_1 : i32, i32, i32
  }
  func.func @transform_3(%arg0: i32) -> (i32, i32) {
    %c0_i32 = arith.constant 0 : i32
    %c0_i32_0 = arith.constant 0 : i32
    %c0_i32_1 = arith.constant 0 : i32
    return %c0_i32, %c0_i32_0 : i32, i32
  }
  func.func @transform_4(%arg0: i32) -> (i32, i32) {
    %c0_i32 = arith.constant 0 : i32
    %c0_i32_0 = arith.constant 0 : i32
    %c0_i32_1 = arith.constant 0 : i32
    return %c0_i32, %c0_i32_0 : i32, i32
  }
  func.func @transform_5(%arg0: i32) -> (i32, i32) {
    %c0_i32 = arith.constant 0 : i32
    %c0_i32_0 = arith.constant 0 : i32
    return %arg0, %c0_i32 : i32, i32
  }
}

</mosaic_0001>

<llo_original>
// kernel: tpu_custom_call.1
$region0: #{tpu_custom_call.1}
  #allocation0 [shape = 'u32[]', space=smem, size = 0x4, offset = 0x4, fixed_abs, tag = 'smem constant byte address 0x4 - core index']
  #allocation1 [shape = 'u32[144,128]{1,0:T(1,128)}', space=vmem, size = 0x12000, scoped, tag = 'internal scratch']
  %s0 = inlined_call_operand.hbm [shape: bf16[256,896], index: 0, kind: input, shape index: {}]
  %s1 = inlined_call_operand.hbm [shape: bf16[896,512], index: 1, kind: input, shape index: {}]
  %s2 = inlined_call_operand.hbm [shape: s8[2,512,512], index: 2, kind: input, shape index: {}]
  %s3 = inlined_call_operand.hbm [shape: bf16[512,128], index: 3, kind: input, shape index: {}]
  %s4 = inlined_call_operand.hbm [shape: f32[8,512], index: 4, kind: input, shape index: {}]
  %s5 = inlined_call_operand.hbm [shape: f32[256,128], index: 5, kind: output, shape index: {}]
  %s6 = sld [smem:[#allocation0]]
  $region73: #{tpu_custom_call.1} parent=0
    _
  %s8 = ssub.s32 1, %s6
  %s9 = scalar_select 0, %s8, %s6
  $region1: #{tpu_custom_call.1} parent=0
    #allocation2 [shape = 'u8[458752]{0}', space=vmem, size = 0x70000, scoped, tag = 'input window, operand 0']
    #allocation3 [shape = 's32[2]{0}', space=sflag, size = 0x8, scoped, tag = 'scoped memory for tpu_custom_call.1']
    #allocation4 [shape = 's32[2]{0}', space=sflag, size = 0x8, scoped, tag = 'scoped memory for tpu_custom_call.1']
    #allocation5 [shape = 'u8[917504]{0}', space=vmem, size = 0xe0000, scoped, tag = 'input window, operand 1, single buffered']
    #allocation6 [shape = 's32[1]{0}', space=sflag, size = 0x4, scoped, tag = 'scoped memory for tpu_custom_call.1']
    #allocation7 [shape = 'u8[524288]{0}', space=vmem, size = 0x80000, scoped, tag = 'input window, operand 2, single buffered']
    #allocation8 [shape = 'u8[131072]{0}', space=vmem, size = 0x20000, scoped, tag = 'input window, operand 3, single buffered']
    #allocation9 [shape = 's32[1]{0}', space=sflag, size = 0x4, scoped, tag = 'scoped memory for tpu_custom_call.1']
    #allocation10 [shape = 'u8[16384]{0}', space=vmem, size = 0x4000, scoped, tag = 'input window, operand 4, single buffered']
    #allocation11 [shape = 'u8[131072]{0}', space=vmem, size = 0x20000, scoped, tag = 'output window, operand 0']
    %10 = vsyncpa [#allocation3], 0
    %s11 = scalar_lea.sflag [#allocation3], 1
    %12 = vsyncpa %s11, 0
    %13 = vsyncpa [#allocation6], 0
    %14 = vsyncpa [#allocation9], 0
    %15 = vsyncpa [#allocation4], 0
    %s16 = scalar_lea.sflag [#allocation4], 1
    %17 = vsyncpa %s16, 0
    loop: start=0, step=1, limit=4
    $region2: #{tpu_custom_call.1} parent=1 // loop_pre_header
      _
    $region3: #{tpu_custom_call.1} parent=1 // loop_header
      %s19 = sphi 0, %s23
      %p20 = scmp.ge.s32.totalorder %s19, 4
      %s29 = sphi 0, %s31
      %s32 = sphi 0, %s29
      %s33 = sphi 0, %s32
      %s49 = sphi 0, %s33
      %s53 = sphi 0, %s53
      %s55 = sphi 0, %s53
      %s56 = sphi 0, %s55
      %s70 = sphi 0, %s56
      %s74 = sphi 0, %s74
      %s76 = sphi 0, %s74
      %s77 = sphi 0, %s76
      %s91 = sphi 0, %s77
      %s95 = sphi 0, %s95
      %s97 = sphi 0, %s95
      %s98 = sphi 0, %s97
      %s112 = sphi 0, %s98
      %s116 = sphi 0, %s116
      %s118 = sphi 0, %s116
      %s119 = sphi 0, %s118
      %s133 = sphi 0, %s119
      %s139 = sphi 0, %s141
      %s142 = sphi 0, %s139
      %s143 = sphi 0, %s142
      %s159 = sphi 0, %s143
    $region4: #{tpu_custom_call.1} parent=1 // loop_header_branch
      %22 = sbr.rel (%p20) target = $region8
    $region5: #{tpu_custom_call.1} parent=1 // loop_body
      %s24 = ssub.s32 %s19, 1
      %s25 = ssub.s32 %s19, 2
      %s26 = sadd.s32 %s19, 1
      %s27 = ssub.s32 %s19, %s26
      %p28 = scmp.eq.s32.totalorder %s27, 0
      %s30 = sadd.s32 %s29, 1
      %s31 = scalar_select %p28, %s29, %s30
      %p34 = pneg %p28
      %p35 = scmp.eq.s32.totalorder %s19, 1
      %p36 = por %p34, %p35
      %p37 = scmp.ne.s32.totalorder %s29, %s32
      %p38 = scmp.eq.s32.totalorder %s19, 0
      %p39 = por %p37, %p38
      %p40 = scmp.ne.s32.totalorder %s29, %s32
      %p41 = scmp.eq.s32.totalorder %s24, 1
      %p42 = por %p40, %p41
      %p43 = scmp.ne.s32.totalorder %s32, %s33
      %p44 = scmp.eq.s32.totalorder %s24, 0
      %p45 = por %p43, %p44
      %p46 = scmp.ne.s32.totalorder %s32, %s33
      %p47 = scmp.eq.s32.totalorder %s25, 1
      %p48 = por %p46, %p47
      %p50 = scmp.ne.s32.totalorder %s33, %s49
      %p51 = scmp.eq.s32.totalorder %s25, 0
      %p52 = por %p50, %p51
      %s54 = sadd.s32 %s53, 1
      %p57 = scmp.eq.s32.totalorder %s19, 1
      %p58 = scmp.ne.s32.totalorder %s53, %s55
      %p59 = scmp.eq.s32.totalorder %s19, 0
      %p60 = por %p58, %p59
      %p61 = scmp.ne.s32.totalorder %s53, %s55
      %p62 = scmp.eq.s32.totalorder %s24, 1
      %p63 = por %p61, %p62
      %p64 = scmp.ne.s32.totalorder %s55, %s56
      %p65 = scmp.eq.s32.totalorder %s24, 0
      %p66 = por %p64, %p65
      %p67 = scmp.ne.s32.totalorder %s55, %s56
      %p68 = scmp.eq.s32.totalorder %s25, 1
      %p69 = por %p67, %p68
      %p71 = scmp.ne.s32.totalorder %s56, %s70
      %p72 = scmp.eq.s32.totalorder %s25, 0
      %p73 = por %p71, %p72
      %s75 = sadd.s32 %s74, 1
      %p78 = scmp.eq.s32.totalorder %s19, 1
      %p79 = scmp.ne.s32.totalorder %s74, %s76
      %p80 = scmp.eq.s32.totalorder %s19, 0
      %p81 = por %p79, %p80
      %p82 = scmp.ne.s32.totalorder %s74, %s76
      %p83 = scmp.eq.s32.totalorder %s24, 1
      %p84 = por %p82, %p83
      %p85 = scmp.ne.s32.totalorder %s76, %s77
      %p86 = scmp.eq.s32.totalorder %s24, 0
      %p87 = por %p85, %p86
      %p88 = scmp.ne.s32.totalorder %s76, %s77
      %p89 = scmp.eq.s32.totalorder %s25, 1
      %p90 = por %p88, %p89
      %p92 = scmp.ne.s32.totalorder %s77, %s91
      %p93 = scmp.eq.s32.totalorder %s25, 0
      %p94 = por %p92, %p93
      %s96 = sadd.s32 %s95, 1
      %p99 = scmp.eq.s32.totalorder %s19, 1
      %p100 = scmp.ne.s32.totalorder %s95, %s97
      %p101 = scmp.eq.s32.totalorder %s19, 0
      %p102 = por %p100, %p101
      %p103 = scmp.ne.s32.totalorder %s95, %s97
      %p104 = scmp.eq.s32.totalorder %s24, 1
      %p105 = por %p103, %p104
      %p106 = scmp.ne.s32.totalorder %s97, %s98
      %p107 = scmp.eq.s32.totalorder %s24, 0
      %p108 = por %p106, %p107
      %p109 = scmp.ne.s32.totalorder %s97, %s98
      %p110 = scmp.eq.s32.totalorder %s25, 1
      %p111 = por %p109, %p110
      %p113 = scmp.ne.s32.totalorder %s98, %s112
      %p114 = scmp.eq.s32.totalorder %s25, 0
      %p115 = por %p113, %p114
      %s117 = sadd.s32 %s116, 1
      %p120 = scmp.eq.s32.totalorder %s19, 1
      %p121 = scmp.ne.s32.totalorder %s116, %s118
      %p122 = scmp.eq.s32.totalorder %s19, 0
      %p123 = por %p121, %p122
      %p124 = scmp.ne.s32.totalorder %s116, %s118
      %p125 = scmp.eq.s32.totalorder %s24, 1
      %p126 = por %p124, %p125
      %p127 = scmp.ne.s32.totalorder %s118, %s119
      %p128 = scmp.eq.s32.totalorder %s24, 0
      %p129 = por %p127, %p128
      %p130 = scmp.ne.s32.totalorder %s118, %s119
      %p131 = scmp.eq.s32.totalorder %s25, 1
      %p132 = por %p130, %p131
      %p134 = scmp.ne.s32.totalorder %s119, %s133
      %p135 = scmp.eq.s32.totalorder %s25, 0
      %p136 = por %p134, %p135
      %s137 = ssub.s32 %s19, %s26
      %p138 = scmp.eq.s32.totalorder %s137, 0
      %s140 = sadd.s32 %s139, 1
      %s141 = scalar_select %p138, %s139, %s140
      %p144 = pneg %p138
      %p145 = scmp.eq.s32.totalorder %s19, 1
      %p146 = por %p144, %p145
      %p147 = scmp.ne.s32.totalorder %s139, %s142
      %p148 = scmp.eq.s32.totalorder %s19, 0
      %p149 = por %p147, %p148
      %p150 = scmp.ne.s32.totalorder %s139, %s142
      %p151 = scmp.eq.s32.totalorder %s24, 1
      %p152 = por %p150, %p151
      %p153 = scmp.ne.s32.totalorder %s142, %s143
      %p154 = scmp.eq.s32.totalorder %s24, 0
      %p155 = por %p153, %p154
      %p156 = scmp.ne.s32.totalorder %s142, %s143
      %p157 = scmp.eq.s32.totalorder %s25, 1
      %p158 = por %p156, %p157
      %p160 = scmp.ne.s32.totalorder %s143, %s159
      %p161 = scmp.eq.s32.totalorder %s25, 0
      %p162 = por %p160, %p161
      %p163 = scmp.le.s32.totalorder 1, %s19
      %p164 = scmp.lt.s32.totalorder %s19, 3
      %p165 = pnand %p163, %p164
      %p166 = pneg %p165
      // Predicated region
      $region9: #{tpu_custom_call.1} parent=5 // pred_check
        _
      $region10: #{tpu_custom_call.1} parent=5 // pred_check_branch
        %168 = sbr.rel (%p165) target = $region12
      $region11: #{tpu_custom_call.1} parent=5 // pred_region
        %s169 = ssub.s32 %s19, 1
        // Predicated region
        $region13: #{tpu_custom_call.1} parent=11 // pred_check
          %p170 = pneg %p66
        $region14: #{tpu_custom_call.1} parent=11 // pred_check_branch
          %172 = sbr.rel (%p170) target = $region16
        $region15: #{tpu_custom_call.1} parent=11 // pred_region
          %s174 = ssub.s32 28672, 28672
          %175 = vsyncadd [#allocation6], %s174
          %s176 = sshll.u32 [#allocation5], 4
          %s177 = int_to_ptr.vmem [resolvable:$true] %s176
          %182 = dma.hbm_to_vmem [thread:$0]  %s1, 28672, %s177, [#allocation6], 256, 256, 16
        $region16: #{tpu_custom_call.1} parent=11 // pred_fallthru
          _
        // Predicated region
        $region17: #{tpu_custom_call.1} parent=11 // pred_check
          %p183 = pneg %p87
        $region18: #{tpu_custom_call.1} parent=11 // pred_check_branch
          %185 = sbr.rel (%p183) target = $region20
        $region19: #{tpu_custom_call.1} parent=11 // pred_region
          %s187 = ssub.s32 16384, 16384
          %188 = vsyncadd [#allocation6], %s187
          %s189 = sshll.u32 [#allocation7], 4
          %s190 = int_to_ptr.vmem [resolvable:$true] %s189
          %195 = dma.hbm_to_vmem [thread:$0]  %s2, 16384, %s190, [#allocation6], 512, 512, 32
        $region20: #{tpu_custom_call.1} parent=11 // pred_fallthru
          _
        // Predicated region
        $region21: #{tpu_custom_call.1} parent=11 // pred_check
          %p196 = pneg %p108
        $region22: #{tpu_custom_call.1} parent=11 // pred_check_branch
          %198 = sbr.rel (%p196) target = $region24
        $region23: #{tpu_custom_call.1} parent=11 // pred_region
          %s200 = ssub.s32 4096, 4096
          %201 = vsyncadd [#allocation9], %s200
          %s202 = sshll.u32 [#allocation8], 4
          %s203 = int_to_ptr.vmem [resolvable:$true] %s202
          %208 = dma.hbm_to_vmem [thread:$0]  %s3, 4096, %s203, [#allocation9], 64, 64, 4
        $region24: #{tpu_custom_call.1} parent=11 // pred_fallthru
          _
        // Predicated region
        $region25: #{tpu_custom_call.1} parent=11 // pred_check
          %p209 = pneg %p129
        $region26: #{tpu_custom_call.1} parent=11 // pred_check_branch
          %211 = sbr.rel (%p209) target = $region28
        $region27: #{tpu_custom_call.1} parent=11 // pred_region
          %s213 = ssub.s32 512, 512
          %214 = vsyncadd [#allocation9], %s213
          %s216 = sshll.u32 [#allocation10], 4
          %s217 = int_to_ptr.vmem [resolvable:$true] %s216
          %219 = dma.hbm_to_vmem [thread:$0]  %s4, 512, %s217, [#allocation9]
        $region28: #{tpu_custom_call.1} parent=11 // pred_fallthru
          _
      $region12: #{tpu_custom_call.1} parent=5 // pred_fallthru
        _
      %p220 = scmp.lt.s32.totalorder %s19, 2
      // Predicated region
      $region29: #{tpu_custom_call.1} parent=5 // pred_check
        %p221 = pneg %p220
      $region30: #{tpu_custom_call.1} parent=5 // pred_check_branch
        %223 = sbr.rel (%p221) target = $region32
      $region31: #{tpu_custom_call.1} parent=5 // pred_region
        // Predicated region
        $region33: #{tpu_custom_call.1} parent=31 // pred_check
          %p224 = pneg %p39
        $region34: #{tpu_custom_call.1} parent=31 // pred_check_branch
          %226 = sbr.rel (%p224) target = $region36
        $region35: #{tpu_custom_call.1} parent=31 // pred_region
          %s227 = sand.u32 %s29, 1
          %s228 = scalar_lea.sflag [#allocation3], %s227
          %s229 = sand.u32 %s29, 1
          %s230 = smul.addr %s229, 448
          %s231 = scalar_lea.vmem [#allocation2], %s230
          %s232 = smul.u32 16, %s19
          %s234 = ssub.s32 7168, 7168
          %235 = vsyncadd %s228, %s234
          %s236 = smul.addr %s232, 7
          %s237 = smul.addr %s236, 64
          %s238 = scalar_lea.hbm %s0, %s237
          %s239 = sshll.u32 %s231, 4
          %s240 = int_to_ptr.vmem [resolvable:$true] %s239
          %245 = dma.hbm_to_vmem [thread:$0]  %s238, 7168, %s240, %s228, 448, 448, 28
        $region36: #{tpu_custom_call.1} parent=31 // pred_fallthru
          _
      $region32: #{tpu_custom_call.1} parent=5 // pred_fallthru
        _
      %p246 = scmp.le.s32.totalorder 1, %s19
      %p247 = scmp.lt.s32.totalorder %s19, 3
      %p248 = pnand %p246, %p247
      %p249 = pneg %p248
      // Predicated region
      $region37: #{tpu_custom_call.1} parent=5 // pred_check
        _
      $region38: #{tpu_custom_call.1} parent=5 // pred_check_branch
        %251 = sbr.rel (%p248) target = $region40
      $region39: #{tpu_custom_call.1} parent=5 // pred_region
        %s252 = ssub.s32 %s19, 1
        %s253 = sand.u32 %s32, 1
        %s254 = scalar_lea.sflag [#allocation3], %s253
        %s255 = sand.u32 %s32, 1
        %s256 = smul.addr %s255, 448
        %s257 = scalar_lea.vmem [#allocation2], %s256
        // Predicated region
        $region41: #{tpu_custom_call.1} parent=39 // pred_check
          %p258 = pneg %p45
        $region42: #{tpu_custom_call.1} parent=39 // pred_check_branch
          %260 = sbr.rel (%p258) target = $region44
        $region43: #{tpu_custom_call.1} parent=39 // pred_region
          %261 = dma.done %s254, 7168
        $region44: #{tpu_custom_call.1} parent=39 // pred_fallthru
          _
        // Predicated region
        $region45: #{tpu_custom_call.1} parent=39 // pred_check
          %p262 = pneg %p66
        $region46: #{tpu_custom_call.1} parent=39 // pred_check_branch
          %264 = sbr.rel (%p262) target = $region48
        $region47: #{tpu_custom_call.1} parent=39 // pred_region
          %265 = dma.done [#allocation6], 28672
        $region48: #{tpu_custom_call.1} parent=39 // pred_fallthru
          _
        // Predicated region
        $region49: #{tpu_custom_call.1} parent=39 // pred_check
          %p266 = pneg %p87
        $region50: #{tpu_custom_call.1} parent=39 // pred_check_branch
          %268 = sbr.rel (%p266) target = $region52
        $region51: #{tpu_custom_call.1} parent=39 // pred_region
          %269 = dma.done [#allocation6], 16384
        $region52: #{tpu_custom_call.1} parent=39 // pred_fallthru
          _
        // Predicated region
        $region53: #{tpu_custom_call.1} parent=39 // pred_check
          %p270 = pneg %p108
        $region54: #{tpu_custom_call.1} parent=39 // pred_check_branch
          %272 = sbr.rel (%p270) target = $region56
        $region55: #{tpu_custom_call.1} parent=39 // pred_region
          %273 = dma.done [#allocation9], 4096
        $region56: #{tpu_custom_call.1} parent=39 // pred_fallthru
          _
        // Predicated region
        $region57: #{tpu_custom_call.1} parent=39 // pred_check
          %p274 = pneg %p129
        $region58: #{tpu_custom_call.1} parent=39 // pred_check_branch
          %276 = sbr.rel (%p274) target = $region60
        $region59: #{tpu_custom_call.1} parent=39 // pred_region
          %277 = dma.done [#allocation9], 512
        $region60: #{tpu_custom_call.1} parent=39 // pred_fallthru
          _
        %s278 = sand.u32 %s32, 1
        %s279 = scalar_lea.sflag [#allocation3], %s278
        %s280 = sand.u32 %s32, 1
        %s281 = smul.addr %s280, 448
        %s282 = scalar_lea.vmem [#allocation2], %s281
        %p283 = pneg %p45
        %p284 = pneg %p42
        %p285 = pneg %p66
        %p286 = pneg %p63
        %p287 = pneg %p87
        %p288 = pneg %p84
        %p289 = pneg %p108
        %p290 = pneg %p105
        %p291 = pneg %p129
        %p292 = pneg %p126
        %p293 = pneg %p155
        %p294 = pneg %p152
        %s295 = sand.u32 %s142, 1
        %s296 = scalar_lea.sflag [#allocation4], %s295
        %s297 = sand.u32 %s142, 1
        %s298 = smul.addr %s297, 128
        %s299 = scalar_lea.vmem [#allocation11], %s298
        %s300 = smul.u32 16, %s24
        %s301 = smul.u32 16, %s24
        %v303 = vld [vmem:[%s257] sm:$0xff]
        %v304 = vld [vmem:[%s257 + $0x8] sm:$0xff]
        %v305 = vld [vmem:[%s257 + $0x10] sm:$0xff]
        %v306 = vld [vmem:[%s257 + $0x18] sm:$0xf]
        %v307 = vld [vmem:[%s257 + $0x1c] sm:$0xff]
        %v308 = vld [vmem:[%s257 + $0x24] sm:$0xff]
        %v309 = vld [vmem:[%s257 + $0x2c] sm:$0xff]
        %v310 = vld [vmem:[%s257 + $0x34] sm:$0xf]
        %v311 = vld [vmem:[%s257 + $0x38] sm:$0xff]
        %v312 = vld [vmem:[%s257 + $0x40] sm:$0xff]
        %v313 = vld [vmem:[%s257 + $0x48] sm:$0xff]
        %v314 = vld [vmem:[%s257 + $0x50] sm:$0xf]
        %v315 = vld [vmem:[%s257 + $0x54] sm:$0xff]
        %v316 = vld [vmem:[%s257 + $0x5c] sm:$0xff]
        %v317 = vld [vmem:[%s257 + $0x64] sm:$0xff]
        %v318 = vld [vmem:[%s257 + $0x6c] sm:$0xf]
        %v319 = vld [vmem:[%s257 + $0x70] sm:$0xff]
        %v320 = vld [vmem:[%s257 + $0x78] sm:$0xff]
        %v321 = vld [vmem:[%s257 + $0x80] sm:$0xff]
        %v322 = vld [vmem:[%s257 + $0x88] sm:$0xf]
        %v323 = vld [vmem:[%s257 + $0x8c] sm:$0xff]
        %v324 = vld [vmem:[%s257 + $0x94] sm:$0xff]
        %v325 = vld [vmem:[%s257 + $0x9c] sm:$0xff]
        %v326 = vld [vmem:[%s257 + $0xa4] sm:$0xf]
        %v327 = vld [vmem:[%s257 + $0xa8] sm:$0xff]
        %v328 = vld [vmem:[%s257 + $0xb0] sm:$0xff]
        %v329 = vld [vmem:[%s257 + $0xb8] sm:$0xff]
        %v330 = vld [vmem:[%s257 + $0xc0] sm:$0xf]
        %v331 = vld [vmem:[%s257 + $0xc4] sm:$0xff]
        %v332 = vld [vmem:[%s257 + $0xcc] sm:$0xff]
        %v333 = vld [vmem:[%s257 + $0xd4] sm:$0xff]
        %v334 = vld [vmem:[%s257 + $0xdc] sm:$0xf]
        %v335 = vld [vmem:[%s257 + $0xe0] sm:$0xff]
        %v336 = vld [vmem:[%s257 + $0xe8] sm:$0xff]
        %v337 = vld [vmem:[%s257 + $0xf0] sm:$0xff]
        %v338 = vld [vmem:[%s257 + $0xf8] sm:$0xf]
        %v339 = vld [vmem:[%s257 + $0xfc] sm:$0xff]
        %v340 = vld [vmem:[%s257 + $0x104] sm:$0xff]
        %v341 = vld [vmem:[%s257 + $0x10c] sm:$0xff]
        %v342 = vld [vmem:[%s257 + $0x114] sm:$0xf]
        %v343 = vld [vmem:[%s257 + $0x118] sm:$0xff]
        %v344 = vld [vmem:[%s257 + $0x120] sm:$0xff]
        %v345 = vld [vmem:[%s257 + $0x128] sm:$0xff]
        %v346 = vld [vmem:[%s257 + $0x130] sm:$0xf]
        %v347 = vld [vmem:[%s257 + $0x134] sm:$0xff]
        %v348 = vld [vmem:[%s257 + $0x13c] sm:$0xff]
        %v349 = vld [vmem:[%s257 + $0x144] sm:$0xff]
        %v350 = vld [vmem:[%s257 + $0x14c] sm:$0xf]
        %v351 = vld [vmem:[%s257 + $0x150] sm:$0xff]
        %v352 = vld [vmem:[%s257 + $0x158] sm:$0xff]
        %v353 = vld [vmem:[%s257 + $0x160] sm:$0xff]
        %v354 = vld [vmem:[%s257 + $0x168] sm:$0xf]
        %v355 = vld [vmem:[%s257 + $0x16c] sm:$0xff]
        %v356 = vld [vmem:[%s257 + $0x174] sm:$0xff]
        %v357 = vld [vmem:[%s257 + $0x17c] sm:$0xff]
        %v358 = vld [vmem:[%s257 + $0x184] sm:$0xf]
        %v359 = vld [vmem:[%s257 + $0x188] sm:$0xff]
        %v360 = vld [vmem:[%s257 + $0x190] sm:$0xff]
        %v361 = vld [vmem:[%s257 + $0x198] sm:$0xff]
        %v362 = vld [vmem:[%s257 + $0x1a0] sm:$0xf]
        %v363 = vld [vmem:[%s257 + $0x1a4] sm:$0xff]
        %v364 = vld [vmem:[%s257 + $0x1ac] sm:$0xff]
        %v365 = vld [vmem:[%s257 + $0x1b4] sm:$0xff]
        %v366 = vld [vmem:[%s257 + $0x1bc] sm:$0xf]
        %v367 = vld [vmem:[#allocation5] sm:$0xff]
        %v368 = vld [vmem:[#allocation5 + $0x8] sm:$0xff]
        %v369 = vld [vmem:[#allocation5 + $0x10] sm:$0xff]
        %v370 = vld [vmem:[#allocation5 + $0x18] sm:$0xff]
        %v371 = vld [vmem:[#allocation5 + $0x20] sm:$0xff]
        %v372 = vld [vmem:[#allocation5 + $0x28] sm:$0xff]
        %v373 = vld [vmem:[#allocation5 + $0x30] sm:$0xff]
        %v374 = vld [vmem:[#allocation5 + $0x38] sm:$0xff]
        %v375 = vld [vmem:[#allocation5 + $0x40] sm:$0xff]
        %v376 = vld [vmem:[#allocation5 + $0x48] sm:$0xff]
        %v377 = vld [vmem:[#allocation5 + $0x50] sm:$0xff]
        %v378 = vld [vmem:[#allocation5 + $0x58] sm:$0xff]
        %v379 = vld [vmem:[#allocation5 + $0x60] sm:$0xff]
        %v380 = vld [vmem:[#allocation5 + $0x68] sm:$0xff]
        %v381 = vld [vmem:[#allocation5 + $0x70] sm:$0xff]
        %v382 = vld [vmem:[#allocation5 + $0x78] sm:$0xff]
        %v383 = vld [vmem:[#allocation5 + $0x80] sm:$0xff]
        %v384 = vld [vmem:[#allocation5 + $0x88] sm:$0xff]
        %v385 = vld [vmem:[#allocation5 + $0x90] sm:$0xff]
        %v386 = vld [vmem:[#allocation5 + $0x98] sm:$0xff]
        %v387 = vld [vmem:[#allocation5 + $0xa0] sm:$0xff]
        %v388 = vld [vmem:[#allocation5 + $0xa8] sm:$0xff]
        %v389 = vld [vmem:[#allocation5 + $0xb0] sm:$0xff]
        %v390 = vld [vmem:[#allocation5 + $0xb8] sm:$0xff]
        %v391 = vld [vmem:[#allocation5 + $0xc0] sm:$0xff]
        %v392 = vld [vmem:[#allocation5 + $0xc8] sm:$0xff]
        %v393 = vld [vmem:[#allocation5 + $0xd0] sm:$0xff]
        %v394 = vld [vmem:[#allocation5 + $0xd8] sm:$0xff]
        %v395 = vld [vmem:[#allocation5 + $0xe0] sm:$0xff]
        %v396 = vld [vmem:[#allocation5 + $0xe8] sm:$0xff]
        %v397 = vld [vmem:[#allocation5 + $0xf0] sm:$0xff]
        %v398 = vld [vmem:[#allocation5 + $0xf8] sm:$0xff]
        %v399 = vld [vmem:[#allocation5 + $0x100] sm:$0xff]
        %v400 = vld [vmem:[#allocation5 + $0x108] sm:$0xff]
        %v401 = vld [vmem:[#allocation5 + $0x110] sm:$0xff]
        %v402 = vld [vmem:[#allocation5 + $0x118] sm:$0xff]
        %v403 = vld [vmem:[#allocation5 + $0x120] sm:$0xff]
        %v404 = vld [vmem:[#allocation5 + $0x128] sm:$0xff]
        %v405 = vld [vmem:[#allocation5 + $0x130] sm:$0xff]
        %v406 = vld [vmem:[#allocation5 + $0x138] sm:$0xff]
        %v407 = vld [vmem:[#allocation5 + $0x140] sm:$0xff]
        %v408 = vld [vmem:[#allocation5 + $0x148] sm:$0xff]
        %v409 = vld [vmem:[#allocation5 + $0x150] sm:$0xff]
        %v410 = vld [vmem:[#allocation5 + $0x158] sm:$0xff]
        %v411 = vld [vmem:[#allocation5 + $0x160] sm:$0xff]
        %v412 = vld [vmem:[#allocation5 + $0x168] sm:$0xff]
        %v413 = vld [vmem:[#allocation5 + $0x170] sm:$0xff]
        %v414 = vld [vmem:[#allocation5 + $0x178] sm:$0xff]
        %v415 = vld [vmem:[#allocation5 + $0x180] sm:$0xff]
        %v416 = vld [vmem:[#allocation5 + $0x188] sm:$0xff]
        %v417 = vld [vmem:[#allocation5 + $0x190] sm:$0xff]
        %v418 = vld [vmem:[#allocation5 + $0x198] sm:$0xff]
        %v419 = vld [vmem:[#allocation5 + $0x1a0] sm:$0xff]
        %v420 = vld [vmem:[#allocation5 + $0x1a8] sm:$0xff]
        %v421 = vld [vmem:[#allocation5 + $0x1b0] sm:$0xff]
        %v422 = vld [vmem:[#allocation5 + $0x1b8] sm:$0xff]
        %v423 = vld [vmem:[#allocation5 + $0x1c0] sm:$0xff]
        %v424 = vld [vmem:[#allocation5 + $0x1c8] sm:$0xff]
        %v425 = vld [vmem:[#allocation5 + $0x1d0] sm:$0xff]
        %v426 = vld [vmem:[#allocation5 + $0x1d8] sm:$0xff]
        %v427 = vld [vmem:[#allocation5 + $0x1e0] sm:$0xff]
        %v428 = vld [vmem:[#allocation5 + $0x1e8] sm:$0xff]
        %v429 = vld [vmem:[#allocation5 + $0x1f0] sm:$0xff]
        %v430 = vld [vmem:[#allocation5 + $0x1f8] sm:$0xff]
        %v431 = vld [vmem:[#allocation5 + $0x200] sm:$0xff]
        %v432 = vld [vmem:[#allocation5 + $0x208] sm:$0xff]
        %v433 = vld [vmem:[#allocation5 + $0x210] sm:$0xff]
        %v434 = vld [vmem:[#allocation5 + $0x218] sm:$0xff]
        %v435 = vld [vmem:[#allocation5 + $0x220] sm:$0xff]
        %v436 = vld [vmem:[#allocation5 + $0x228] sm:$0xff]
        %v437 = vld [vmem:[#allocation5 + $0x230] sm:$0xff]
        %v438 = vld [vmem:[#allocation5 + $0x238] sm:$0xff]
        %v439 = vld [vmem:[#allocation5 + $0x240] sm:$0xff]
        %v440 = vld [vmem:[#allocation5 + $0x248] sm:$0xff]
        %v441 = vld [vmem:[#allocation5 + $0x250] sm:$0xff]
        %v442 = vld [vmem:[#allocation5 + $0x258] sm:$0xff]
        %v443 = vld [vmem:[#allocation5 + $0x260] sm:$0xff]
        %v444 = vld [vmem:[#allocation5 + $0x268] sm:$0xff]
        %v445 = vld [vmem:[#allocation5 + $0x270] sm:$0xff]
        %v446 = vld [vmem:[#allocation5 + $0x278] sm:$0xff]
        %v447 = vld [vmem:[#allocation5 + $0x280] sm:$0xff]
        %v448 = vld [vmem:[#allocation5 + $0x288] sm:$0xff]
        %v449 = vld [vmem:[#allocation5 + $0x290] sm:$0xff]
        %v450 = vld [vmem:[#allocation5 + $0x298] sm:$0xff]
        %v451 = vld [vmem:[#allocation5 + $0x2a0] sm:$0xff]
        %v452 = vld [vmem:[#allocation5 + $0x2a8] sm:$0xff]
        %v453 = vld [vmem:[#allocation5 + $0x2b0] sm:$0xff]
        %v454 = vld [vmem:[#allocation5 + $0x2b8] sm:$0xff]
        %v455 = vld [vmem:[#allocation5 + $0x2c0] sm:$0xff]
        %v456 = vld [vmem:[#allocation5 + $0x2c8] sm:$0xff]
        %v457 = vld [vmem:[#allocation5 + $0x2d0] sm:$0xff]
        %v458 = vld [vmem:[#allocation5 + $0x2d8] sm:$0xff]
        %v459 = vld [vmem:[#allocation5 + $0x2e0] sm:$0xff]
        %v460 = vld [vmem:[#allocation5 + $0x2e8] sm:$0xff]
        %v461 = vld [vmem:[#allocation5 + $0x2f0] sm:$0xff]
        %v462 = vld [vmem:[#allocation5 + $0x2f8] sm:$0xff]
        %v463 = vld [vmem:[#allocation5 + $0x300] sm:$0xff]
        %v464 = vld [vmem:[#allocation5 + $0x308] sm:$0xff]
        %v465 = vld [vmem:[#allocation5 + $0x310] sm:$0xff]
        %v466 = vld [vmem:[#allocation5 + $0x318] sm:$0xff]
        %v467 = vld [vmem:[#allocation5 + $0x320] sm:$0xff]
        %v468 = vld [vmem:[#allocation5 + $0x328] sm:$0xff]
        %v469 = vld [vmem:[#allocation5 + $0x330] sm:$0xff]
        %v470 = vld [vmem:[#allocation5 + $0x338] sm:$0xff]
        %v471 = vld [vmem:[#allocation5 + $0x340] sm:$0xff]
        %v472 = vld [vmem:[#allocation5 + $0x348] sm:$0xff]
        %v473 = vld [vmem:[#allocation5 + $0x350] sm:$0xff]
        %v474 = vld [vmem:[#allocation5 + $0x358] sm:$0xff]
        %v475 = vld [vmem:[#allocation5 + $0x360] sm:$0xff]
        %v476 = vld [vmem:[#allocation5 + $0x368] sm:$0xff]
        %v477 = vld [vmem:[#allocation5 + $0x370] sm:$0xff]
        %v478 = vld [vmem:[#allocation5 + $0x378] sm:$0xff]
        %v479 = vld [vmem:[#allocation5 + $0x380] sm:$0xff]
        %v480 = vld [vmem:[#allocation5 + $0x388] sm:$0xff]
        %v481 = vld [vmem:[#allocation5 + $0x390] sm:$0xff]
        %v482 = vld [vmem:[#allocation5 + $0x398] sm:$0xff]
        %v483 = vld [vmem:[#allocation5 + $0x3a0] sm:$0xff]
        %v484 = vld [vmem:[#allocation5 + $0x3a8] sm:$0xff]
        %v485 = vld [vmem:[#allocation5 + $0x3b0] sm:$0xff]
        %v486 = vld [vmem:[#allocation5 + $0x3b8] sm:$0xff]
        %v487 = vld [vmem:[#allocation5 + $0x3c0] sm:$0xff]
        %v488 = vld [vmem:[#allocation5 + $0x3c8] sm:$0xff]
        %v489 = vld [vmem:[#allocation5 + $0x3d0] sm:$0xff]
        %v490 = vld [vmem:[#allocation5 + $0x3d8] sm:$0xff]
        %v491 = vld [vmem:[#allocation5 + $0x3e0] sm:$0xff]
        %v492 = vld [vmem:[#allocation5 + $0x3e8] sm:$0xff]
        %v493 = vld [vmem:[#allocation5 + $0x3f0] sm:$0xff]
        %v494 = vld [vmem:[#allocation5 + $0x3f8] sm:$0xff]
        %v495 = vld [vmem:[#allocation5 + $0x400] sm:$0xff]
        %v496 = vld [vmem:[#allocation5 + $0x408] sm:$0xff]
        %v497 = vld [vmem:[#allocation5 + $0x410] sm:$0xff]
        %v498 = vld [vmem:[#allocation5 + $0x418] sm:$0xff]
        %v499 = vld [vmem:[#allocation5 + $0x420] sm:$0xff]
        %v500 = vld [vmem:[#allocation5 + $0x428] sm:$0xff]
        %v501 = vld [vmem:[#allocation5 + $0x430] sm:$0xff]
        %v502 = vld [vmem:[#allocation5 + $0x438] sm:$0xff]
        %v503 = vld [vmem:[#allocation5 + $0x440] sm:$0xff]
        %v504 = vld [vmem:[#allocation5 + $0x448] sm:$0xff]
        %v505 = vld [vmem:[#allocation5 + $0x450] sm:$0xff]
        %v506 = vld [vmem:[#allocation5 + $0x458] sm:$0xff]
        %v507 = vld [vmem:[#allocation5 + $0x460] sm:$0xff]
        %v508 = vld [vmem:[#allocation5 + $0x468] sm:$0xff]
        %v509 = vld [vmem:[#allocation5 + $0x470] sm:$0xff]
        %v510 = vld [vmem:[#allocation5 + $0x478] sm:$0xff]
        %v511 = vld [vmem:[#allocation5 + $0x480] sm:$0xff]
        %v512 = vld [vmem:[#allocation5 + $0x488] sm:$0xff]
        %v513 = vld [vmem:[#allocation5 + $0x490] sm:$0xff]
        %v514 = vld [vmem:[#allocation5 + $0x498] sm:$0xff]
        %v515 = vld [vmem:[#allocation5 + $0x4a0] sm:$0xff]
        %v516 = vld [vmem:[#allocation5 + $0x4a8] sm:$0xff]
        %v517 = vld [vmem:[#allocation5 + $0x4b0] sm:$0xff]
        %v518 = vld [vmem:[#allocation5 + $0x4b8] sm:$0xff]
        %v519 = vld [vmem:[#allocation5 + $0x4c0] sm:$0xff]
        %v520 = vld [vmem:[#allocation5 + $0x4c8] sm:$0xff]
        %v521 = vld [vmem:[#allocation5 + $0x4d0] sm:$0xff]
        %v522 = vld [vmem:[#allocation5 + $0x4d8] sm:$0xff]
        %v523 = vld [vmem:[#allocation5 + $0x4e0] sm:$0xff]
        %v524 = vld [vmem:[#allocation5 + $0x4e8] sm:$0xff]
        %v525 = vld [vmem:[#allocation5 + $0x4f0] sm:$0xff]
        %v526 = vld [vmem:[#allocation5 + $0x4f8] sm:$0xff]
        %v527 = vld [vmem:[#allocation5 + $0x500] sm:$0xff]
        %v528 = vld [vmem:[#allocation5 + $0x508] sm:$0xff]
        %v529 = vld [vmem:[#allocation5 + $0x510] sm:$0xff]
        %v530 = vld [vmem:[#allocation5 + $0x518] sm:$0xff]
        %v531 = vld [vmem:[#allocation5 + $0x520] sm:$0xff]
        %v532 = vld [vmem:[#allocation5 + $0x528] sm:$0xff]
        %v533 = vld [vmem:[#allocation5 + $0x530] sm:$0xff]
        %v534 = vld [vmem:[#allocation5 + $0x538] sm:$0xff]
        %v535 = vld [vmem:[#allocation5 + $0x540] sm:$0xff]
        %v536 = vld [vmem:[#allocation5 + $0x548] sm:$0xff]
        %v537 = vld [vmem:[#allocation5 + $0x550] sm:$0xff]
        %v538 = vld [vmem:[#allocation5 + $0x558] sm:$0xff]
        %v539 = vld [vmem:[#allocation5 + $0x560] sm:$0xff]
        %v540 = vld [vmem:[#allocation5 + $0x568] sm:$0xff]
        %v541 = vld [vmem:[#allocation5 + $0x570] sm:$0xff]
        %v542 = vld [vmem:[#allocation5 + $0x578] sm:$0xff]
        %v543 = vld [vmem:[#allocation5 + $0x580] sm:$0xff]
        %v544 = vld [vmem:[#allocation5 + $0x588] sm:$0xff]
        %v545 = vld [vmem:[#allocation5 + $0x590] sm:$0xff]
        %v546 = vld [vmem:[#allocation5 + $0x598] sm:$0xff]
        %v547 = vld [vmem:[#allocation5 + $0x5a0] sm:$0xff]
        %v548 = vld [vmem:[#allocation5 + $0x5a8] sm:$0xff]
        %v549 = vld [vmem:[#allocation5 + $0x5b0] sm:$0xff]
        %v550 = vld [vmem:[#allocation5 + $0x5b8] sm:$0xff]
        %v551 = vld [vmem:[#allocation5 + $0x5c0] sm:$0xff]
        %v552 = vld [vmem:[#allocation5 + $0x5c8] sm:$0xff]
        %v553 = vld [vmem:[#allocation5 + $0x5d0] sm:$0xff]
        %v554 = vld [vmem:[#allocation5 + $0x5d8] sm:$0xff]
        %v555 = vld [vmem:[#allocation5 + $0x5e0] sm:$0xff]
        %v556 = vld [vmem:[#allocation5 + $0x5e8] sm:$0xff]
        %v557 = vld [vmem:[#allocation5 + $0x5f0] sm:$0xff]
        %v558 = vld [vmem:[#allocation5 + $0x5f8] sm:$0xff]
        %v559 = vld [vmem:[#allocation5 + $0x600] sm:$0xff]
        %v560 = vld [vmem:[#allocation5 + $0x608] sm:$0xff]
        %v561 = vld [vmem:[#allocation5 + $0x610] sm:$0xff]
        %v562 = vld [vmem:[#allocation5 + $0x618] sm:$0xff]
        %v563 = vld [vmem:[#allocation5 + $0x620] sm:$0xff]
        %v564 = vld [vmem:[#allocation5 + $0x628] sm:$0xff]
        %v565 = vld [vmem:[#allocation5 + $0x630] sm:$0xff]
        %v566 = vld [vmem:[#allocation5 + $0x638] sm:$0xff]
        %v567 = vld [vmem:[#allocation5 + $0x640] sm:$0xff]
        %v568 = vld [vmem:[#allocation5 + $0x648] sm:$0xff]
        %v569 = vld [vmem:[#allocation5 + $0x650] sm:$0xff]
        %v570 = vld [vmem:[#allocation5 + $0x658] sm:$0xff]
        %v571 = vld [vmem:[#allocation5 + $0x660] sm:$0xff]
        %v572 = vld [vmem:[#allocation5 + $0x668] sm:$0xff]
        %v573 = vld [vmem:[#allocation5 + $0x670] sm:$0xff]
        %v574 = vld [vmem:[#allocation5 + $0x678] sm:$0xff]
        %v575 = vld [vmem:[#allocation5 + $0x680] sm:$0xff]
        %v576 = vld [vmem:[#allocation5 + $0x688] sm:$0xff]
        %v577 = vld [vmem:[#allocation5 + $0x690] sm:$0xff]
        %v578 = vld [vmem:[#allocation5 + $0x698] sm:$0xff]
        %v579 = vld [vmem:[#allocation5 + $0x6a0] sm:$0xff]
        %v580 = vld [vmem:[#allocation5 + $0x6a8] sm:$0xff]
        %v581 = vld [vmem:[#allocation5 + $0x6b0] sm:$0xff]
        %v582 = vld [vmem:[#allocation5 + $0x6b8] sm:$0xff]
        %v583 = vld [vmem:[#allocation5 + $0x6c0] sm:$0xff]
        %v584 = vld [vmem:[#allocation5 + $0x6c8] sm:$0xff]
        %v585 = vld [vmem:[#allocation5 + $0x6d0] sm:$0xff]
        %v586 = vld [vmem:[#allocation5 + $0x6d8] sm:$0xff]
        %v587 = vld [vmem:[#allocation5 + $0x6e0] sm:$0xff]
        %v588 = vld [vmem:[#allocation5 + $0x6e8] sm:$0xff]
        %v589 = vld [vmem:[#allocation5 + $0x6f0] sm:$0xff]
        %v590 = vld [vmem:[#allocation5 + $0x6f8] sm:$0xff]
        %v655 = vunpack.c.l.b16 %v303
        %v656 = vunpack.c.h.b16 %v303
        %v657 = vunpack.c.l.b16 %v304
        %v658 = vunpack.c.h.b16 %v304
        %v659 = vunpack.c.l.b16 %v305
        %v660 = vunpack.c.h.b16 %v305
        %v661 = vunpack.c.l.b16 %v306
        %v662 = vunpack.c.l.b16 %v307
        %v663 = vunpack.c.h.b16 %v307
        %v664 = vunpack.c.l.b16 %v308
        %v665 = vunpack.c.h.b16 %v308
        %v666 = vunpack.c.l.b16 %v309
        %v667 = vunpack.c.h.b16 %v309
        %v668 = vunpack.c.l.b16 %v310
        %v669 = vunpack.c.l.b16 %v311
        %v670 = vunpack.c.h.b16 %v311
        %v671 = vunpack.c.l.b16 %v312
        %v672 = vunpack.c.h.b16 %v312
        %v673 = vunpack.c.l.b16 %v313
        %v674 = vunpack.c.h.b16 %v313
        %v675 = vunpack.c.l.b16 %v314
        %v676 = vunpack.c.l.b16 %v315
        %v677 = vunpack.c.h.b16 %v315
        %v678 = vunpack.c.l.b16 %v316
        %v679 = vunpack.c.h.b16 %v316
        %v680 = vunpack.c.l.b16 %v317
        %v681 = vunpack.c.h.b16 %v317
        %v682 = vunpack.c.l.b16 %v318
        %v683 = vunpack.c.l.b16 %v319
        %v684 = vunpack.c.h.b16 %v319
        %v685 = vunpack.c.l.b16 %v320
        %v686 = vunpack.c.h.b16 %v320
        %v687 = vunpack.c.l.b16 %v321
        %v688 = vunpack.c.h.b16 %v321
        %v689 = vunpack.c.l.b16 %v322
        %v690 = vunpack.c.l.b16 %v323
        %v691 = vunpack.c.h.b16 %v323
        %v692 = vunpack.c.l.b16 %v324
        %v693 = vunpack.c.h.b16 %v324
        %v694 = vunpack.c.l.b16 %v325
        %v695 = vunpack.c.h.b16 %v325
        %v696 = vunpack.c.l.b16 %v326
        %v697 = vunpack.c.l.b16 %v327
        %v698 = vunpack.c.h.b16 %v327
        %v699 = vunpack.c.l.b16 %v328
        %v700 = vunpack.c.h.b16 %v328
        %v701 = vunpack.c.l.b16 %v329
        %v702 = vunpack.c.h.b16 %v329
        %v703 = vunpack.c.l.b16 %v330
        %v704 = vunpack.c.l.b16 %v331
        %v705 = vunpack.c.h.b16 %v331
        %v706 = vunpack.c.l.b16 %v332
        %v707 = vunpack.c.h.b16 %v332
        %v708 = vunpack.c.l.b16 %v333
        %v709 = vunpack.c.h.b16 %v333
        %v710 = vunpack.c.l.b16 %v334
        %v711 = vunpack.c.l.b16 %v335
        %v712 = vunpack.c.h.b16 %v335
        %v713 = vunpack.c.l.b16 %v336
        %v714 = vunpack.c.h.b16 %v336
        %v715 = vunpack.c.l.b16 %v337
        %v716 = vunpack.c.h.b16 %v337
        %v717 = vunpack.c.l.b16 %v338
        %v718 = vunpack.c.l.b16 %v339
        %v719 = vunpack.c.h.b16 %v339
        %v720 = vunpack.c.l.b16 %v340
        %v721 = vunpack.c.h.b16 %v340
        %v722 = vunpack.c.l.b16 %v341
        %v723 = vunpack.c.h.b16 %v341
        %v724 = vunpack.c.l.b16 %v342
        %v725 = vunpack.c.l.b16 %v343
        %v726 = vunpack.c.h.b16 %v343
        %v727 = vunpack.c.l.b16 %v344
        %v728 = vunpack.c.h.b16 %v344
        %v729 = vunpack.c.l.b16 %v345
        %v730 = vunpack.c.h.b16 %v345
        %v731 = vunpack.c.l.b16 %v346
        %v732 = vunpack.c.l.b16 %v347
        %v733 = vunpack.c.h.b16 %v347
        %v734 = vunpack.c.l.b16 %v348
        %v735 = vunpack.c.h.b16 %v348
        %v736 = vunpack.c.l.b16 %v349
        %v737 = vunpack.c.h.b16 %v349
        %v738 = vunpack.c.l.b16 %v350
        %v739 = vunpack.c.l.b16 %v351
        %v740 = vunpack.c.h.b16 %v351
        %v741 = vunpack.c.l.b16 %v352
        %v742 = vunpack.c.h.b16 %v352
        %v743 = vunpack.c.l.b16 %v353
        %v744 = vunpack.c.h.b16 %v353
        %v745 = vunpack.c.l.b16 %v354
        %v746 = vunpack.c.l.b16 %v355
        %v747 = vunpack.c.h.b16 %v355
        %v748 = vunpack.c.l.b16 %v356
        %v749 = vunpack.c.h.b16 %v356
        %v750 = vunpack.c.l.b16 %v357
        %v751 = vunpack.c.h.b16 %v357
        %v752 = vunpack.c.l.b16 %v358
        %v753 = vunpack.c.l.b16 %v359
        %v754 = vunpack.c.h.b16 %v359
        %v755 = vunpack.c.l.b16 %v360
        %v756 = vunpack.c.h.b16 %v360
        %v757 = vunpack.c.l.b16 %v361
        %v758 = vunpack.c.h.b16 %v361
        %v759 = vunpack.c.l.b16 %v362
        %v760 = vunpack.c.l.b16 %v363
        %v761 = vunpack.c.h.b16 %v363
        %v762 = vunpack.c.l.b16 %v364
        %v763 = vunpack.c.h.b16 %v364
        %v764 = vunpack.c.l.b16 %v365
        %v765 = vunpack.c.h.b16 %v365
        %v766 = vunpack.c.l.b16 %v366
        %v767 = vpack.c.b16 %v662, %v655
        %v768 = vpack.c.b16 %v663, %v656
        %v769 = vpack.c.b16 %v664, %v657
        %v770 = vpack.c.b16 %v665, %v658
        %v771 = vpack.c.b16 %v666, %v659
        %v772 = vpack.c.b16 %v667, %v660
        %v773 = vpack.c.b16 %v668, %v661
        %v774 = vpack.c.b16 %v676, %v669
        %v775 = vpack.c.b16 %v677, %v670
        %v776 = vpack.c.b16 %v678, %v671
        %v777 = vpack.c.b16 %v679, %v672
        %v778 = vpack.c.b16 %v680, %v673
        %v779 = vpack.c.b16 %v681, %v674
        %v780 = vpack.c.b16 %v682, %v675
        %v781 = vpack.c.b16 %v690, %v683
        %v782 = vpack.c.b16 %v691, %v684
        %v783 = vpack.c.b16 %v692, %v685
        %v784 = vpack.c.b16 %v693, %v686
        %v785 = vpack.c.b16 %v694, %v687
        %v786 = vpack.c.b16 %v695, %v688
        %v787 = vpack.c.b16 %v696, %v689
        %v788 = vpack.c.b16 %v704, %v697
        %v789 = vpack.c.b16 %v705, %v698
        %v790 = vpack.c.b16 %v706, %v699
        %v791 = vpack.c.b16 %v707, %v700
        %v792 = vpack.c.b16 %v708, %v701
        %v793 = vpack.c.b16 %v709, %v702
        %v794 = vpack.c.b16 %v710, %v703
        %v795 = vpack.c.b16 %v718, %v711
        %v796 = vpack.c.b16 %v719, %v712
        %v797 = vpack.c.b16 %v720, %v713
        %v798 = vpack.c.b16 %v721, %v714
        %v799 = vpack.c.b16 %v722, %v715
        %v800 = vpack.c.b16 %v723, %v716
        %v801 = vpack.c.b16 %v724, %v717
        %v802 = vpack.c.b16 %v732, %v725
        %v803 = vpack.c.b16 %v733, %v726
        %v804 = vpack.c.b16 %v734, %v727
        %v805 = vpack.c.b16 %v735, %v728
        %v806 = vpack.c.b16 %v736, %v729
        %v807 = vpack.c.b16 %v737, %v730
        %v808 = vpack.c.b16 %v738, %v731
        %v809 = vpack.c.b16 %v746, %v739
        %v810 = vpack.c.b16 %v747, %v740
        %v811 = vpack.c.b16 %v748, %v741
        %v812 = vpack.c.b16 %v749, %v742
        %v813 = vpack.c.b16 %v750, %v743
        %v814 = vpack.c.b16 %v751, %v744
        %v815 = vpack.c.b16 %v752, %v745
        %v816 = vpack.c.b16 %v760, %v753
        %v817 = vpack.c.b16 %v761, %v754
        %v818 = vpack.c.b16 %v762, %v755
        %v819 = vpack.c.b16 %v763, %v756
        %v820 = vpack.c.b16 %v764, %v757
        %v821 = vpack.c.b16 %v765, %v758
        %v822 = vpack.c.b16 %v766, %v759
        %v1103 = vunpack.c.l.b16 %v367
        %v1104 = vunpack.c.h.b16 %v367
        %v1105 = vunpack.c.l.b16 %v368
        %v1106 = vunpack.c.h.b16 %v368
        %v1107 = vunpack.c.l.b16 %v369
        %v1108 = vunpack.c.h.b16 %v369
        %v1109 = vunpack.c.l.b16 %v370
        %v1110 = vunpack.c.h.b16 %v370
        %v1111 = vunpack.c.l.b16 %v371
        %v1112 = vunpack.c.h.b16 %v371
        %v1113 = vunpack.c.l.b16 %v372
        %v1114 = vunpack.c.h.b16 %v372
        %v1115 = vunpack.c.l.b16 %v373
        %v1116 = vunpack.c.h.b16 %v373
        %v1117 = vunpack.c.l.b16 %v374
        %v1118 = vunpack.c.h.b16 %v374
        %v1119 = vunpack.c.l.b16 %v375
        %v1120 = vunpack.c.h.b16 %v375
        %v1121 = vunpack.c.l.b16 %v376
        %v1122 = vunpack.c.h.b16 %v376
        %v1123 = vunpack.c.l.b16 %v377
        %v1124 = vunpack.c.h.b16 %v377
        %v1125 = vunpack.c.l.b16 %v378
        %v1126 = vunpack.c.h.b16 %v378
        %v1127 = vunpack.c.l.b16 %v379
        %v1128 = vunpack.c.h.b16 %v379
        %v1129 = vunpack.c.l.b16 %v380
        %v1130 = vunpack.c.h.b16 %v380
        %v1131 = vunpack.c.l.b16 %v381
        %v1132 = vunpack.c.h.b16 %v381
        %v1133 = vunpack.c.l.b16 %v382
        %v1134 = vunpack.c.h.b16 %v382
        %v1135 = vunpack.c.l.b16 %v383
        %v1136 = vunpack.c.h.b16 %v383
        %v1137 = vunpack.c.l.b16 %v384
        %v1138 = vunpack.c.h.b16 %v384
        %v1139 = vunpack.c.l.b16 %v385
        %v1140 = vunpack.c.h.b16 %v385
        %v1141 = vunpack.c.l.b16 %v386
        %v1142 = vunpack.c.h.b16 %v386
        %v1143 = vunpack.c.l.b16 %v387
        %v1144 = vunpack.c.h.b16 %v387
        %v1145 = vunpack.c.l.b16 %v388
        %v1146 = vunpack.c.h.b16 %v388
        %v1147 = vunpack.c.l.b16 %v389
        %v1148 = vunpack.c.h.b16 %v389
        %v1149 = vunpack.c.l.b16 %v390
        %v1150 = vunpack.c.h.b16 %v390
        %v1151 = vunpack.c.l.b16 %v391
        %v1152 = vunpack.c.h.b16 %v391
        %v1153 = vunpack.c.l.b16 %v392
        %v1154 = vunpack.c.h.b16 %v392
        %v1155 = vunpack.c.l.b16 %v393
        %v1156 = vunpack.c.h.b16 %v393
        %v1157 = vunpack.c.l.b16 %v394
        %v1158 = vunpack.c.h.b16 %v394
        %v1159 = vunpack.c.l.b16 %v395
        %v1160 = vunpack.c.h.b16 %v395
        %v1161 = vunpack.c.l.b16 %v396
        %v1162 = vunpack.c.h.b16 %v396
        %v1163 = vunpack.c.l.b16 %v397
        %v1164 = vunpack.c.h.b16 %v397
        %v1165 = vunpack.c.l.b16 %v398
        %v1166 = vunpack.c.h.b16 %v398
        %v1167 = vunpack.c.l.b16 %v399
        %v1168 = vunpack.c.h.b16 %v399
        %v1169 = vunpack.c.l.b16 %v400
        %v1170 = vunpack.c.h.b16 %v400
        %v1171 = vunpack.c.l.b16 %v401
        %v1172 = vunpack.c.h.b16 %v401
        %v1173 = vunpack.c.l.b16 %v402
        %v1174 = vunpack.c.h.b16 %v402
        %v1175 = vunpack.c.l.b16 %v403
        %v1176 = vunpack.c.h.b16 %v403
        %v1177 = vunpack.c.l.b16 %v404
        %v1178 = vunpack.c.h.b16 %v404
        %v1179 = vunpack.c.l.b16 %v405
        %v1180 = vunpack.c.h.b16 %v405
        %v1181 = vunpack.c.l.b16 %v406
        %v1182 = vunpack.c.h.b16 %v406
        %v1183 = vunpack.c.l.b16 %v407
        %v1184 = vunpack.c.h.b16 %v407
        %v1185 = vunpack.c.l.b16 %v408
        %v1186 = vunpack.c.h.b16 %v408
        %v1187 = vunpack.c.l.b16 %v409
        %v1188 = vunpack.c.h.b16 %v409
        %v1189 = vunpack.c.l.b16 %v410
        %v1190 = vunpack.c.h.b16 %v410
        %v1191 = vunpack.c.l.b16 %v411
        %v1192 = vunpack.c.h.b16 %v411
        %v1193 = vunpack.c.l.b16 %v412
        %v1194 = vunpack.c.h.b16 %v412
        %v1195 = vunpack.c.l.b16 %v413
        %v1196 = vunpack.c.h.b16 %v413
        %v1197 = vunpack.c.l.b16 %v414
        %v1198 = vunpack.c.h.b16 %v414
        %v1199 = vunpack.c.l.b16 %v415
        %v1200 = vunpack.c.h.b16 %v415
        %v1201 = vunpack.c.l.b16 %v416
        %v1202 = vunpack.c.h.b16 %v416
        %v1203 = vunpack.c.l.b16 %v417
        %v1204 = vunpack.c.h.b16 %v417
        %v1205 = vunpack.c.l.b16 %v418
        %v1206 = vunpack.c.h.b16 %v418
        %v1207 = vunpack.c.l.b16 %v419
        %v1208 = vunpack.c.h.b16 %v419
        %v1209 = vunpack.c.l.b16 %v420
        %v1210 = vunpack.c.h.b16 %v420
        %v1211 = vunpack.c.l.b16 %v421
        %v1212 = vunpack.c.h.b16 %v421
        %v1213 = vunpack.c.l.b16 %v422
        %v1214 = vunpack.c.h.b16 %v422
        %v1215 = vunpack.c.l.b16 %v423
        %v1216 = vunpack.c.h.b16 %v423
        %v1217 = vunpack.c.l.b16 %v424
        %v1218 = vunpack.c.h.b16 %v424
        %v1219 = vunpack.c.l.b16 %v425
        %v1220 = vunpack.c.h.b16 %v425
        %v1221 = vunpack.c.l.b16 %v426
        %v1222 = vunpack.c.h.b16 %v426
        %v1223 = vunpack.c.l.b16 %v427
        %v1224 = vunpack.c.h.b16 %v427
        %v1225 = vunpack.c.l.b16 %v428
        %v1226 = vunpack.c.h.b16 %v428
        %v1227 = vunpack.c.l.b16 %v429
        %v1228 = vunpack.c.h.b16 %v429
        %v1229 = vunpack.c.l.b16 %v430
        %v1230 = vunpack.c.h.b16 %v430
        %v1231 = vunpack.c.l.b16 %v431
        %v1232 = vunpack.c.h.b16 %v431
        %v1233 = vunpack.c.l.b16 %v432
        %v1234 = vunpack.c.h.b16 %v432
        %v1235 = vunpack.c.l.b16 %v433
        %v1236 = vunpack.c.h.b16 %v433
        %v1237 = vunpack.c.l.b16 %v434
        %v1238 = vunpack.c.h.b16 %v434
        %v1239 = vunpack.c.l.b16 %v435
        %v1240 = vunpack.c.h.b16 %v435
        %v1241 = vunpack.c.l.b16 %v436
        %v1242 = vunpack.c.h.b16 %v436
        %v1243 = vunpack.c.l.b16 %v437
        %v1244 = vunpack.c.h.b16 %v437
        %v1245 = vunpack.c.l.b16 %v438
        %v1246 = vunpack.c.h.b16 %v438
        %v1247 = vunpack.c.l.b16 %v439
        %v1248 = vunpack.c.h.b16 %v439
        %v1249 = vunpack.c.l.b16 %v440
        %v1250 = vunpack.c.h.b16 %v440
        %v1251 = vunpack.c.l.b16 %v441
        %v1252 = vunpack.c.h.b16 %v441
        %v1253 = vunpack.c.l.b16 %v442
        %v1254 = vunpack.c.h.b16 %v442
        %v1255 = vunpack.c.l.b16 %v443
        %v1256 = vunpack.c.h.b16 %v443
        %v1257 = vunpack.c.l.b16 %v444
        %v1258 = vunpack.c.h.b16 %v444
        %v1259 = vunpack.c.l.b16 %v445
        %v1260 = vunpack.c.h.b16 %v445
        %v1261 = vunpack.c.l.b16 %v446
        %v1262 = vunpack.c.h.b16 %v446
        %v1263 = vunpack.c.l.b16 %v447
        %v1264 = vunpack.c.h.b16 %v447
        %v1265 = vunpack.c.l.b16 %v448
        %v1266 = vunpack.c.h.b16 %v448
        %v1267 = vunpack.c.l.b16 %v449
        %v1268 = vunpack.c.h.b16 %v449
        %v1269 = vunpack.c.l.b16 %v450
        %v1270 = vunpack.c.h.b16 %v450
        %v1271 = vunpack.c.l.b16 %v451
        %v1272 = vunpack.c.h.b16 %v451
        %v1273 = vunpack.c.l.b16 %v452
        %v1274 = vunpack.c.h.b16 %v452
        %v1275 = vunpack.c.l.b16 %v453
        %v1276 = vunpack.c.h.b16 %v453
        %v1277 = vunpack.c.l.b16 %v454
        %v1278 = vunpack.c.h.b16 %v454
        %v1279 = vunpack.c.l.b16 %v455
        %v1280 = vunpack.c.h.b16 %v455
        %v1281 = vunpack.c.l.b16 %v456
        %v1282 = vunpack.c.h.b16 %v456
        %v1283 = vunpack.c.l.b16 %v457
        %v1284 = vunpack.c.h.b16 %v457
        %v1285 = vunpack.c.l.b16 %v458
        %v1286 = vunpack.c.h.b16 %v458
        %v1287 = vunpack.c.l.b16 %v459
        %v1288 = vunpack.c.h.b16 %v459
        %v1289 = vunpack.c.l.b16 %v460
        %v1290 = vunpack.c.h.b16 %v460
        %v1291 = vunpack.c.l.b16 %v461
        %v1292 = vunpack.c.h.b16 %v461
        %v1293 = vunpack.c.l.b16 %v462
        %v1294 = vunpack.c.h.b16 %v462
        %v1295 = vunpack.c.l.b16 %v463
        %v1296 = vunpack.c.h.b16 %v463
        %v1297 = vunpack.c.l.b16 %v464
        %v1298 = vunpack.c.h.b16 %v464
        %v1299 = vunpack.c.l.b16 %v465
        %v1300 = vunpack.c.h.b16 %v465
        %v1301 = vunpack.c.l.b16 %v466
        %v1302 = vunpack.c.h.b16 %v466
        %v1303 = vunpack.c.l.b16 %v467
        %v1304 = vunpack.c.h.b16 %v467
        %v1305 = vunpack.c.l.b16 %v468
        %v1306 = vunpack.c.h.b16 %v468
        %v1307 = vunpack.c.l.b16 %v469
        %v1308 = vunpack.c.h.b16 %v469
        %v1309 = vunpack.c.l.b16 %v470
        %v1310 = vunpack.c.h.b16 %v470
        %v1311 = vunpack.c.l.b16 %v471
        %v1312 = vunpack.c.h.b16 %v471
        %v1313 = vunpack.c.l.b16 %v472
        %v1314 = vunpack.c.h.b16 %v472
        %v1315 = vunpack.c.l.b16 %v473
        %v1316 = vunpack.c.h.b16 %v473
        %v1317 = vunpack.c.l.b16 %v474
        %v1318 = vunpack.c.h.b16 %v474
        %v1319 = vunpack.c.l.b16 %v475
        %v1320 = vunpack.c.h.b16 %v475
        %v1321 = vunpack.c.l.b16 %v476
        %v1322 = vunpack.c.h.b16 %v476
        %v1323 = vunpack.c.l.b16 %v477
        %v1324 = vunpack.c.h.b16 %v477
        %v1325 = vunpack.c.l.b16 %v478
        %v1326 = vunpack.c.h.b16 %v478
        %v1327 = vunpack.c.l.b16 %v479
        %v1328 = vunpack.c.h.b16 %v479
        %v1329 = vunpack.c.l.b16 %v480
        %v1330 = vunpack.c.h.b16 %v480
        %v1331 = vunpack.c.l.b16 %v481
        %v1332 = vunpack.c.h.b16 %v481
        %v1333 = vunpack.c.l.b16 %v482
        %v1334 = vunpack.c.h.b16 %v482
        %v1335 = vunpack.c.l.b16 %v483
        %v1336 = vunpack.c.h.b16 %v483
        %v1337 = vunpack.c.l.b16 %v484
        %v1338 = vunpack.c.h.b16 %v484
        %v1339 = vunpack.c.l.b16 %v485
        %v1340 = vunpack.c.h.b16 %v485
        %v1341 = vunpack.c.l.b16 %v486
        %v1342 = vunpack.c.h.b16 %v486
        %v1343 = vunpack.c.l.b16 %v487
        %v1344 = vunpack.c.h.b16 %v487
        %v1345 = vunpack.c.l.b16 %v488
        %v1346 = vunpack.c.h.b16 %v488
        %v1347 = vunpack.c.l.b16 %v489
        %v1348 = vunpack.c.h.b16 %v489
        %v1349 = vunpack.c.l.b16 %v490
        %v1350 = vunpack.c.h.b16 %v490
        %v1351 = vunpack.c.l.b16 %v491
        %v1352 = vunpack.c.h.b16 %v491
        %v1353 = vunpack.c.l.b16 %v492
        %v1354 = vunpack.c.h.b16 %v492
        %v1355 = vunpack.c.l.b16 %v493
        %v1356 = vunpack.c.h.b16 %v493
        %v1357 = vunpack.c.l.b16 %v494
        %v1358 = vunpack.c.h.b16 %v494
        %v1359 = vunpack.c.l.b16 %v495
        %v1360 = vunpack.c.h.b16 %v495
        %v1361 = vunpack.c.l.b16 %v496
        %v1362 = vunpack.c.h.b16 %v496
        %v1363 = vunpack.c.l.b16 %v497
        %v1364 = vunpack.c.h.b16 %v497
        %v1365 = vunpack.c.l.b16 %v498
        %v1366 = vunpack.c.h.b16 %v498
        %v1367 = vunpack.c.l.b16 %v499
        %v1368 = vunpack.c.h.b16 %v499
        %v1369 = vunpack.c.l.b16 %v500
        %v1370 = vunpack.c.h.b16 %v500
        %v1371 = vunpack.c.l.b16 %v501
        %v1372 = vunpack.c.h.b16 %v501
        %v1373 = vunpack.c.l.b16 %v502
        %v1374 = vunpack.c.h.b16 %v502
        %v1375 = vunpack.c.l.b16 %v503
        %v1376 = vunpack.c.h.b16 %v503
        %v1377 = vunpack.c.l.b16 %v504
        %v1378 = vunpack.c.h.b16 %v504
        %v1379 = vunpack.c.l.b16 %v505
        %v1380 = vunpack.c.h.b16 %v505
        %v1381 = vunpack.c.l.b16 %v506
        %v1382 = vunpack.c.h.b16 %v506
        %v1383 = vunpack.c.l.b16 %v507
        %v1384 = vunpack.c.h.b16 %v507
        %v1385 = vunpack.c.l.b16 %v508
        %v1386 = vunpack.c.h.b16 %v508
        %v1387 = vunpack.c.l.b16 %v509
        %v1388 = vunpack.c.h.b16 %v509
        %v1389 = vunpack.c.l.b16 %v510
        %v1390 = vunpack.c.h.b16 %v510
        %v1391 = vunpack.c.l.b16 %v511
        %v1392 = vunpack.c.h.b16 %v511
        %v1393 = vunpack.c.l.b16 %v512
        %v1394 = vunpack.c.h.b16 %v512
        %v1395 = vunpack.c.l.b16 %v513
        %v1396 = vunpack.c.h.b16 %v513
        %v1397 = vunpack.c.l.b16 %v514
        %v1398 = vunpack.c.h.b16 %v514
        %v1399 = vunpack.c.l.b16 %v515
        %v1400 = vunpack.c.h.b16 %v515
        %v1401 = vunpack.c.l.b16 %v516
        %v1402 = vunpack.c.h.b16 %v516
        %v1403 = vunpack.c.l.b16 %v517
        %v1404 = vunpack.c.h.b16 %v517
        %v1405 = vunpack.c.l.b16 %v518
        %v1406 = vunpack.c.h.b16 %v518
        %v1407 = vunpack.c.l.b16 %v519
        %v1408 = vunpack.c.h.b16 %v519
        %v1409 = vunpack.c.l.b16 %v520
        %v1410 = vunpack.c.h.b16 %v520
        %v1411 = vunpack.c.l.b16 %v521
        %v1412 = vunpack.c.h.b16 %v521
        %v1413 = vunpack.c.l.b16 %v522
        %v1414 = vunpack.c.h.b16 %v522
        %v1415 = vunpack.c.l.b16 %v523
        %v1416 = vunpack.c.h.b16 %v523
        %v1417 = vunpack.c.l.b16 %v524
        %v1418 = vunpack.c.h.b16 %v524
        %v1419 = vunpack.c.l.b16 %v525
        %v1420 = vunpack.c.h.b16 %v525
        %v1421 = vunpack.c.l.b16 %v526
        %v1422 = vunpack.c.h.b16 %v526
        %v1423 = vunpack.c.l.b16 %v527
        %v1424 = vunpack.c.h.b16 %v527
        %v1425 = vunpack.c.l.b16 %v528
        %v1426 = vunpack.c.h.b16 %v528
        %v1427 = vunpack.c.l.b16 %v529
        %v1428 = vunpack.c.h.b16 %v529
        %v1429 = vunpack.c.l.b16 %v530
        %v1430 = vunpack.c.h.b16 %v530
        %v1431 = vunpack.c.l.b16 %v531
        %v1432 = vunpack.c.h.b16 %v531
        %v1433 = vunpack.c.l.b16 %v532
        %v1434 = vunpack.c.h.b16 %v532
        %v1435 = vunpack.c.l.b16 %v533
        %v1436 = vunpack.c.h.b16 %v533
        %v1437 = vunpack.c.l.b16 %v534
        %v1438 = vunpack.c.h.b16 %v534
        %v1439 = vunpack.c.l.b16 %v535
        %v1440 = vunpack.c.h.b16 %v535
        %v1441 = vunpack.c.l.b16 %v536
        %v1442 = vunpack.c.h.b16 %v536
        %v1443 = vunpack.c.l.b16 %v537
        %v1444 = vunpack.c.h.b16 %v537
        %v1445 = vunpack.c.l.b16 %v538
        %v1446 = vunpack.c.h.b16 %v538
        %v1447 = vunpack.c.l.b16 %v539
        %v1448 = vunpack.c.h.b16 %v539
        %v1449 = vunpack.c.l.b16 %v540
        %v1450 = vunpack.c.h.b16 %v540
        %v1451 = vunpack.c.l.b16 %v541
        %v1452 = vunpack.c.h.b16 %v541
        %v1453 = vunpack.c.l.b16 %v542
        %v1454 = vunpack.c.h.b16 %v542
        %v1455 = vunpack.c.l.b16 %v543
        %v1456 = vunpack.c.h.b16 %v543
        %v1457 = vunpack.c.l.b16 %v544
        %v1458 = vunpack.c.h.b16 %v544
        %v1459 = vunpack.c.l.b16 %v545
        %v1460 = vunpack.c.h.b16 %v545
        %v1461 = vunpack.c.l.b16 %v546
        %v1462 = vunpack.c.h.b16 %v546
        %v1463 = vunpack.c.l.b16 %v547
        %v1464 = vunpack.c.h.b16 %v547
        %v1465 = vunpack.c.l.b16 %v548
        %v1466 = vunpack.c.h.b16 %v548
        %v1467 = vunpack.c.l.b16 %v549
        %v1468 = vunpack.c.h.b16 %v549
        %v1469 = vunpack.c.l.b16 %v550
        %v1470 = vunpack.c.h.b16 %v550
        %v1471 = vunpack.c.l.b16 %v551
        %v1472 = vunpack.c.h.b16 %v551
        %v1473 = vunpack.c.l.b16 %v552
        %v1474 = vunpack.c.h.b16 %v552
        %v1475 = vunpack.c.l.b16 %v553
        %v1476 = vunpack.c.h.b16 %v553
        %v1477 = vunpack.c.l.b16 %v554
        %v1478 = vunpack.c.h.b16 %v554
        %v1479 = vunpack.c.l.b16 %v555
        %v1480 = vunpack.c.h.b16 %v555
        %v1481 = vunpack.c.l.b16 %v556
        %v1482 = vunpack.c.h.b16 %v556
        %v1483 = vunpack.c.l.b16 %v557
        %v1484 = vunpack.c.h.b16 %v557
        %v1485 = vunpack.c.l.b16 %v558
        %v1486 = vunpack.c.h.b16 %v558
        %v1487 = vunpack.c.l.b16 %v559
        %v1488 = vunpack.c.h.b16 %v559
        %v1489 = vunpack.c.l.b16 %v560
        %v1490 = vunpack.c.h.b16 %v560
        %v1491 = vunpack.c.l.b16 %v561
        %v1492 = vunpack.c.h.b16 %v561
        %v1493 = vunpack.c.l.b16 %v562
        %v1494 = vunpack.c.h.b16 %v562
        %v1495 = vunpack.c.l.b16 %v563
        %v1496 = vunpack.c.h.b16 %v563
        %v1497 = vunpack.c.l.b16 %v564
        %v1498 = vunpack.c.h.b16 %v564
        %v1499 = vunpack.c.l.b16 %v565
        %v1500 = vunpack.c.h.b16 %v565
        %v1501 = vunpack.c.l.b16 %v566
        %v1502 = vunpack.c.h.b16 %v566
        %v1503 = vunpack.c.l.b16 %v567
        %v1504 = vunpack.c.h.b16 %v567
        %v1505 = vunpack.c.l.b16 %v568
        %v1506 = vunpack.c.h.b16 %v568
        %v1507 = vunpack.c.l.b16 %v569
        %v1508 = vunpack.c.h.b16 %v569
        %v1509 = vunpack.c.l.b16 %v570
        %v1510 = vunpack.c.h.b16 %v570
        %v1511 = vunpack.c.l.b16 %v571
        %v1512 = vunpack.c.h.b16 %v571
        %v1513 = vunpack.c.l.b16 %v572
        %v1514 = vunpack.c.h.b16 %v572
        %v1515 = vunpack.c.l.b16 %v573
        %v1516 = vunpack.c.h.b16 %v573
        %v1517 = vunpack.c.l.b16 %v574
        %v1518 = vunpack.c.h.b16 %v574
        %v1519 = vunpack.c.l.b16 %v575
        %v1520 = vunpack.c.h.b16 %v575
        %v1521 = vunpack.c.l.b16 %v576
        %v1522 = vunpack.c.h.b16 %v576
        %v1523 = vunpack.c.l.b16 %v577
        %v1524 = vunpack.c.h.b16 %v577
        %v1525 = vunpack.c.l.b16 %v578
        %v1526 = vunpack.c.h.b16 %v578
        %v1527 = vunpack.c.l.b16 %v579
        %v1528 = vunpack.c.h.b16 %v579
        %v1529 = vunpack.c.l.b16 %v580
        %v1530 = vunpack.c.h.b16 %v580
        %v1531 = vunpack.c.l.b16 %v581
        %v1532 = vunpack.c.h.b16 %v581
        %v1533 = vunpack.c.l.b16 %v582
        %v1534 = vunpack.c.h.b16 %v582
        %v1535 = vunpack.c.l.b16 %v583
        %v1536 = vunpack.c.h.b16 %v583
        %v1537 = vunpack.c.l.b16 %v584
        %v1538 = vunpack.c.h.b16 %v584
        %v1539 = vunpack.c.l.b16 %v585
        %v1540 = vunpack.c.h.b16 %v585
        %v1541 = vunpack.c.l.b16 %v586
        %v1542 = vunpack.c.h.b16 %v586
        %v1543 = vunpack.c.l.b16 %v587
        %v1544 = vunpack.c.h.b16 %v587
        %v1545 = vunpack.c.l.b16 %v588
        %v1546 = vunpack.c.h.b16 %v588
        %v1547 = vunpack.c.l.b16 %v589
        %v1548 = vunpack.c.h.b16 %v589
        %v1549 = vunpack.c.l.b16 %v590
        %v1550 = vunpack.c.h.b16 %v590
        %v1551 = vpack.c.b16 %v1107, %v1103
        %v1552 = vpack.c.b16 %v1108, %v1104
        %v1553 = vpack.c.b16 %v1109, %v1105
        %v1554 = vpack.c.b16 %v1110, %v1106
        %v1555 = vpack.c.b16 %v1115, %v1111
        %v1556 = vpack.c.b16 %v1116, %v1112
        %v1557 = vpack.c.b16 %v1117, %v1113
        %v1558 = vpack.c.b16 %v1118, %v1114
        %v1559 = vpack.c.b16 %v1123, %v1119
        %v1560 = vpack.c.b16 %v1124, %v1120
        %v1561 = vpack.c.b16 %v1125, %v1121
        %v1562 = vpack.c.b16 %v1126, %v1122
        %v1563 = vpack.c.b16 %v1131, %v1127
        %v1564 = vpack.c.b16 %v1132, %v1128
        %v1565 = vpack.c.b16 %v1133, %v1129
        %v1566 = vpack.c.b16 %v1134, %v1130
        %v1567 = vpack.c.b16 %v1139, %v1135
        %v1568 = vpack.c.b16 %v1140, %v1136
        %v1569 = vpack.c.b16 %v1141, %v1137
        %v1570 = vpack.c.b16 %v1142, %v1138
        %v1571 = vpack.c.b16 %v1147, %v1143
        %v1572 = vpack.c.b16 %v1148, %v1144
        %v1573 = vpack.c.b16 %v1149, %v1145
        %v1574 = vpack.c.b16 %v1150, %v1146
        %v1575 = vpack.c.b16 %v1155, %v1151
        %v1576 = vpack.c.b16 %v1156, %v1152
        %v1577 = vpack.c.b16 %v1157, %v1153
        %v1578 = vpack.c.b16 %v1158, %v1154
        %v1579 = vpack.c.b16 %v1163, %v1159
        %v1580 = vpack.c.b16 %v1164, %v1160
        %v1581 = vpack.c.b16 %v1165, %v1161
        %v1582 = vpack.c.b16 %v1166, %v1162
        %v1583 = vpack.c.b16 %v1171, %v1167
        %v1584 = vpack.c.b16 %v1172, %v1168
        %v1585 = vpack.c.b16 %v1173, %v1169
        %v1586 = vpack.c.b16 %v1174, %v1170
        %v1587 = vpack.c.b16 %v1179, %v1175
        %v1588 = vpack.c.b16 %v1180, %v1176
        %v1589 = vpack.c.b16 %v1181, %v1177
        %v1590 = vpack.c.b16 %v1182, %v1178
        %v1591 = vpack.c.b16 %v1187, %v1183
        %v1592 = vpack.c.b16 %v1188, %v1184
        %v1593 = vpack.c.b16 %v1189, %v1185
        %v1594 = vpack.c.b16 %v1190, %v1186
        %v1595 = vpack.c.b16 %v1195, %v1191
        %v1596 = vpack.c.b16 %v1196, %v1192
        %v1597 = vpack.c.b16 %v1197, %v1193
        %v1598 = vpack.c.b16 %v1198, %v1194
        %v1599 = vpack.c.b16 %v1203, %v1199
        %v1600 = vpack.c.b16 %v1204, %v1200
        %v1601 = vpack.c.b16 %v1205, %v1201
        %v1602 = vpack.c.b16 %v1206, %v1202
        %v1603 = vpack.c.b16 %v1211, %v1207
        %v1604 = vpack.c.b16 %v1212, %v1208
        %v1605 = vpack.c.b16 %v1213, %v1209
        %v1606 = vpack.c.b16 %v1214, %v1210
        %v1607 = vpack.c.b16 %v1219, %v1215
        %v1608 = vpack.c.b16 %v1220, %v1216
        %v1609 = vpack.c.b16 %v1221, %v1217
        %v1610 = vpack.c.b16 %v1222, %v1218
        %v1611 = vpack.c.b16 %v1227, %v1223
        %v1612 = vpack.c.b16 %v1228, %v1224
        %v1613 = vpack.c.b16 %v1229, %v1225
        %v1614 = vpack.c.b16 %v1230, %v1226
        %v1615 = vpack.c.b16 %v1235, %v1231
        %v1616 = vpack.c.b16 %v1236, %v1232
        %v1617 = vpack.c.b16 %v1237, %v1233
        %v1618 = vpack.c.b16 %v1238, %v1234
        %v1619 = vpack.c.b16 %v1243, %v1239
        %v1620 = vpack.c.b16 %v1244, %v1240
        %v1621 = vpack.c.b16 %v1245, %v1241
        %v1622 = vpack.c.b16 %v1246, %v1242
        %v1623 = vpack.c.b16 %v1251, %v1247
        %v1624 = vpack.c.b16 %v1252, %v1248
        %v1625 = vpack.c.b16 %v1253, %v1249
        %v1626 = vpack.c.b16 %v1254, %v1250
        %v1627 = vpack.c.b16 %v1259, %v1255
        %v1628 = vpack.c.b16 %v1260, %v1256
        %v1629 = vpack.c.b16 %v1261, %v1257
        %v1630 = vpack.c.b16 %v1262, %v1258
        %v1631 = vpack.c.b16 %v1267, %v1263
        %v1632 = vpack.c.b16 %v1268, %v1264
        %v1633 = vpack.c.b16 %v1269, %v1265
        %v1634 = vpack.c.b16 %v1270, %v1266
        %v1635 = vpack.c.b16 %v1275, %v1271
        %v1636 = vpack.c.b16 %v1276, %v1272
        %v1637 = vpack.c.b16 %v1277, %v1273
        %v1638 = vpack.c.b16 %v1278, %v1274
        %v1639 = vpack.c.b16 %v1283, %v1279
        %v1640 = vpack.c.b16 %v1284, %v1280
        %v1641 = vpack.c.b16 %v1285, %v1281
        %v1642 = vpack.c.b16 %v1286, %v1282
        %v1643 = vpack.c.b16 %v1291, %v1287
        %v1644 = vpack.c.b16 %v1292, %v1288
        %v1645 = vpack.c.b16 %v1293, %v1289
        %v1646 = vpack.c.b16 %v1294, %v1290
        %v1647 = vpack.c.b16 %v1299, %v1295
        %v1648 = vpack.c.b16 %v1300, %v1296
        %v1649 = vpack.c.b16 %v1301, %v1297
        %v1650 = vpack.c.b16 %v1302, %v1298
        %v1651 = vpack.c.b16 %v1307, %v1303
        %v1652 = vpack.c.b16 %v1308, %v1304
        %v1653 = vpack.c.b16 %v1309, %v1305
        %v1654 = vpack.c.b16 %v1310, %v1306
        %v1655 = vpack.c.b16 %v1315, %v1311
        %v1656 = vpack.c.b16 %v1316, %v1312
        %v1657 = vpack.c.b16 %v1317, %v1313
        %v1658 = vpack.c.b16 %v1318, %v1314
        %v1659 = vpack.c.b16 %v1323, %v1319
        %v1660 = vpack.c.b16 %v1324, %v1320
        %v1661 = vpack.c.b16 %v1325, %v1321
        %v1662 = vpack.c.b16 %v1326, %v1322
        %v1663 = vpack.c.b16 %v1331, %v1327
        %v1664 = vpack.c.b16 %v1332, %v1328
        %v1665 = vpack.c.b16 %v1333, %v1329
        %v1666 = vpack.c.b16 %v1334, %v1330
        %v1667 = vpack.c.b16 %v1339, %v1335
        %v1668 = vpack.c.b16 %v1340, %v1336
        %v1669 = vpack.c.b16 %v1341, %v1337
        %v1670 = vpack.c.b16 %v1342, %v1338
        %v1671 = vpack.c.b16 %v1347, %v1343
        %v1672 = vpack.c.b16 %v1348, %v1344
        %v1673 = vpack.c.b16 %v1349, %v1345
        %v1674 = vpack.c.b16 %v1350, %v1346
        %v1675 = vpack.c.b16 %v1355, %v1351
        %v1676 = vpack.c.b16 %v1356, %v1352
        %v1677 = vpack.c.b16 %v1357, %v1353
        %v1678 = vpack.c.b16 %v1358, %v1354
        %v1679 = vpack.c.b16 %v1363, %v1359
        %v1680 = vpack.c.b16 %v1364, %v1360
        %v1681 = vpack.c.b16 %v1365, %v1361
        %v1682 = vpack.c.b16 %v1366, %v1362
        %v1683 = vpack.c.b16 %v1371, %v1367
        %v1684 = vpack.c.b16 %v1372, %v1368
        %v1685 = vpack.c.b16 %v1373, %v1369
        %v1686 = vpack.c.b16 %v1374, %v1370
        %v1687 = vpack.c.b16 %v1379, %v1375
        %v1688 = vpack.c.b16 %v1380, %v1376
        %v1689 = vpack.c.b16 %v1381, %v1377
        %v1690 = vpack.c.b16 %v1382, %v1378
        %v1691 = vpack.c.b16 %v1387, %v1383
        %v1692 = vpack.c.b16 %v1388, %v1384
        %v1693 = vpack.c.b16 %v1389, %v1385
        %v1694 = vpack.c.b16 %v1390, %v1386
        %v1695 = vpack.c.b16 %v1395, %v1391
        %v1696 = vpack.c.b16 %v1396, %v1392
        %v1697 = vpack.c.b16 %v1397, %v1393
        %v1698 = vpack.c.b16 %v1398, %v1394
        %v1699 = vpack.c.b16 %v1403, %v1399
        %v1700 = vpack.c.b16 %v1404, %v1400
        %v1701 = vpack.c.b16 %v1405, %v1401
        %v1702 = vpack.c.b16 %v1406, %v1402
        %v1703 = vpack.c.b16 %v1411, %v1407
        %v1704 = vpack.c.b16 %v1412, %v1408
        %v1705 = vpack.c.b16 %v1413, %v1409
        %v1706 = vpack.c.b16 %v1414, %v1410
        %v1707 = vpack.c.b16 %v1419, %v1415
        %v1708 = vpack.c.b16 %v1420, %v1416
        %v1709 = vpack.c.b16 %v1421, %v1417
        %v1710 = vpack.c.b16 %v1422, %v1418
        %v1711 = vpack.c.b16 %v1427, %v1423
        %v1712 = vpack.c.b16 %v1428, %v1424
        %v1713 = vpack.c.b16 %v1429, %v1425
        %v1714 = vpack.c.b16 %v1430, %v1426
        %v1715 = vpack.c.b16 %v1435, %v1431
        %v1716 = vpack.c.b16 %v1436, %v1432
        %v1717 = vpack.c.b16 %v1437, %v1433
        %v1718 = vpack.c.b16 %v1438, %v1434
        %v1719 = vpack.c.b16 %v1443, %v1439
        %v1720 = vpack.c.b16 %v1444, %v1440
        %v1721 = vpack.c.b16 %v1445, %v1441
        %v1722 = vpack.c.b16 %v1446, %v1442
        %v1723 = vpack.c.b16 %v1451, %v1447
        %v1724 = vpack.c.b16 %v1452, %v1448
        %v1725 = vpack.c.b16 %v1453, %v1449
        %v1726 = vpack.c.b16 %v1454, %v1450
        %v1727 = vpack.c.b16 %v1459, %v1455
        %v1728 = vpack.c.b16 %v1460, %v1456
        %v1729 = vpack.c.b16 %v1461, %v1457
        %v1730 = vpack.c.b16 %v1462, %v1458
        %v1731 = vpack.c.b16 %v1467, %v1463
        %v1732 = vpack.c.b16 %v1468, %v1464
        %v1733 = vpack.c.b16 %v1469, %v1465
        %v1734 = vpack.c.b16 %v1470, %v1466
        %v1735 = vpack.c.b16 %v1475, %v1471
        %v1736 = vpack.c.b16 %v1476, %v1472
        %v1737 = vpack.c.b16 %v1477, %v1473
        %v1738 = vpack.c.b16 %v1478, %v1474
        %v1739 = vpack.c.b16 %v1483, %v1479
        %v1740 = vpack.c.b16 %v1484, %v1480
        %v1741 = vpack.c.b16 %v1485, %v1481
        %v1742 = vpack.c.b16 %v1486, %v1482
        %v1743 = vpack.c.b16 %v1491, %v1487
        %v1744 = vpack.c.b16 %v1492, %v1488
        %v1745 = vpack.c.b16 %v1493, %v1489
        %v1746 = vpack.c.b16 %v1494, %v1490
        %v1747 = vpack.c.b16 %v1499, %v1495
        %v1748 = vpack.c.b16 %v1500, %v1496
        %v1749 = vpack.c.b16 %v1501, %v1497
        %v1750 = vpack.c.b16 %v1502, %v1498
        %v1751 = vpack.c.b16 %v1507, %v1503
        %v1752 = vpack.c.b16 %v1508, %v1504
        %v1753 = vpack.c.b16 %v1509, %v1505
        %v1754 = vpack.c.b16 %v1510, %v1506
        %v1755 = vpack.c.b16 %v1515, %v1511
        %v1756 = vpack.c.b16 %v1516, %v1512
        %v1757 = vpack.c.b16 %v1517, %v1513
        %v1758 = vpack.c.b16 %v1518, %v1514
        %v1759 = vpack.c.b16 %v1523, %v1519
        %v1760 = vpack.c.b16 %v1524, %v1520
        %v1761 = vpack.c.b16 %v1525, %v1521
        %v1762 = vpack.c.b16 %v1526, %v1522
        %v1763 = vpack.c.b16 %v1531, %v1527
        %v1764 = vpack.c.b16 %v1532, %v1528
        %v1765 = vpack.c.b16 %v1533, %v1529
        %v1766 = vpack.c.b16 %v1534, %v1530
        %v1767 = vpack.c.b16 %v1539, %v1535
        %v1768 = vpack.c.b16 %v1540, %v1536
        %v1769 = vpack.c.b16 %v1541, %v1537
        %v1770 = vpack.c.b16 %v1542, %v1538
        %v1771 = vpack.c.b16 %v1547, %v1543
        %v1772 = vpack.c.b16 %v1548, %v1544
        %v1773 = vpack.c.b16 %v1549, %v1545
        %v1774 = vpack.c.b16 %v1550, %v1546
        %1999 = vmatprep.subr.bf16.mxu0 %v1552
        %2000 = vmatpush1.bf16.msra.mxu0 %v1551
        %2001 = vmatprep.subr.bf16.mxu0 %v1556
        %2002 = vmatpush1.bf16.msra.mxu0 %v1555
        %2003 = vmatprep.subr.bf16.mxu0 %v1560
        %2004 = vmatpush1.bf16.msra.mxu0 %v1559
        %2005 = vmatprep.subr.bf16.mxu0 %v1564
        %2006 = vmatpush1.bf16.msra.mxu0 %v1563
        %2007 = vmatprep.subr.bf16.mxu0 %v1568
        %2008 = vmatpush1.bf16.msra.mxu0 %v1567
        %2009 = vmatprep.subr.bf16.mxu0 %v1572
        %2010 = vmatpush1.bf16.msra.mxu0 %v1571
        %2011 = vmatprep.subr.bf16.mxu0 %v1576
        %2012 = vmatpush1.bf16.msra.mxu0 %v1575
        %2013 = vmatprep.subr.bf16.mxu0 %v1580
        %2014 = vmatpush1.bf16.msra.mxu0 %v1579
        %2015 = vmatprep.subr.bf16.mxu0 %v1584
        %2016 = vmatpush1.bf16.msra.mxu0 %v1583
        %2017 = vmatprep.subr.bf16.mxu0 %v1588
        %2018 = vmatpush1.bf16.msra.mxu0 %v1587
        %2019 = vmatprep.subr.bf16.mxu0 %v1592
        %2020 = vmatpush1.bf16.msra.mxu0 %v1591
        %2021 = vmatprep.subr.bf16.mxu0 %v1596
        %2022 = vmatpush1.bf16.msra.mxu0 %v1595
        %2023 = vmatprep.subr.bf16.mxu0 %v1600
        %2024 = vmatpush1.bf16.msra.mxu0 %v1599
        %2025 = vmatprep.subr.bf16.mxu0 %v1604
        %2026 = vmatpush1.bf16.msra.mxu0 %v1603
        %2027 = vmatprep.subr.bf16.mxu0 %v1608
        %2028 = vmatpush1.bf16.msra.mxu0 %v1607
        %2029 = vmatprep.subr.bf16.mxu0 %v1612
        %2030 = vmatpush1.bf16.msra.mxu0 %v1611
        %2031 = vmatprep.mubr.bf16.mxu0 %v768
        %2032 = vmatmul.mubr.bf16.gmra.mrb[0].mxu0 %v767
        %v2033 = vpop.f32.mrb[0].mxu0
        %v2034 = vadd.f32 0.0, %v2033
        %v2035 = vpop.f32.mrb[0].mxu0
        %v2036 = vadd.f32 0.0, %v2035
        %v2037 = vpop.f32.mrb[0].mxu0
        %v2038 = vadd.f32 0.0, %v2037
        %v2039 = vpop.f32.mrb[0].mxu0
        %v2040 = vadd.f32 0.0, %v2039
        %2041 = vmatprep.mubr.bf16.mxu0 %v775
        %2042 = vmatmul.mubr.bf16.gmra.mrb[0].mxu0 %v774
        %v2043 = vpop.f32.mrb[0].mxu0
        %v2044 = vadd.f32 0.0, %v2043
        %v2045 = vpop.f32.mrb[0].mxu0
        %v2046 = vadd.f32 0.0, %v2045
        %v2047 = vpop.f32.mrb[0].mxu0
        %v2048 = vadd.f32 0.0, %v2047
        %v2049 = vpop.f32.mrb[0].mxu0
        %v2050 = vadd.f32 0.0, %v2049
        %2051 = vmatprep.mubr.bf16.mxu0 %v782
        %2052 = vmatmul.mubr.bf16.gmra.mrb[0].mxu0 %v781
        %v2053 = vpop.f32.mrb[0].mxu0
        %v2054 = vadd.f32 0.0, %v2053
        %v2055 = vpop.f32.mrb[0].mxu0
        %v2056 = vadd.f32 0.0, %v2055
        %v2057 = vpop.f32.mrb[0].mxu0
        %v2058 = vadd.f32 0.0, %v2057
        %v2059 = vpop.f32.mrb[0].mxu0
        %v2060 = vadd.f32 0.0, %v2059
        %2061 = vmatprep.mubr.bf16.mxu0 %v789
        %2062 = vmatmul.mubr.bf16.gmra.mrb[0].mxu0 %v788
        %v2063 = vpop.f32.mrb[0].mxu0
        %v2064 = vadd.f32 0.0, %v2063
        %v2065 = vpop.f32.mrb[0].mxu0
        %v2066 = vadd.f32 0.0, %v2065
        %v2067 = vpop.f32.mrb[0].mxu0
        %v2068 = vadd.f32 0.0, %v2067
        %v2069 = vpop.f32.mrb[0].mxu0
        %v2070 = vadd.f32 0.0, %v2069
        %2071 = vmatprep.mubr.bf16.mxu0 %v796
        %2072 = vmatmul.mubr.bf16.gmra.mrb[0].mxu0 %v795
        %v2073 = vpop.f32.mrb[0].mxu0
        %v2074 = vadd.f32 0.0, %v2073
        %v2075 = vpop.f32.mrb[0].mxu0
        %v2076 = vadd.f32 0.0, %v2075
        %v2077 = vpop.f32.mrb[0].mxu0
        %v2078 = vadd.f32 0.0, %v2077
        %v2079 = vpop.f32.mrb[0].mxu0
        %v2080 = vadd.f32 0.0, %v2079
        %2081 = vmatprep.mubr.bf16.mxu0 %v803
        %2082 = vmatmul.mubr.bf16.gmra.mrb[0].mxu0 %v802
        %v2083 = vpop.f32.mrb[0].mxu0
        %v2084 = vadd.f32 0.0, %v2083
        %v2085 = vpop.f32.mrb[0].mxu0
        %v2086 = vadd.f32 0.0, %v2085
        %v2087 = vpop.f32.mrb[0].mxu0
        %v2088 = vadd.f32 0.0, %v2087
        %v2089 = vpop.f32.mrb[0].mxu0
        %v2090 = vadd.f32 0.0, %v2089
        %2091 = vmatprep.mubr.bf16.mxu0 %v810
        %2092 = vmatmul.mubr.bf16.gmra.mrb[0].mxu0 %v809
        %v2093 = vpop.f32.mrb[0].mxu0
        %v2094 = vadd.f32 0.0, %v2093
        %v2095 = vpop.f32.mrb[0].mxu0
        %v2096 = vadd.f32 0.0, %v2095
        %v2097 = vpop.f32.mrb[0].mxu0
        %v2098 = vadd.f32 0.0, %v2097
        %v2099 = vpop.f32.mrb[0].mxu0
        %v2100 = vadd.f32 0.0, %v2099
        %2101 = vmatprep.mubr.bf16.mxu0 %v817
        %2102 = vmatmul.mubr.bf16.gmra.mrb[0].mxu0 %v816
        %v2103 = vpop.f32.mrb[0].mxu0
        %v2104 = vadd.f32 0.0, %v2103
        %v2105 = vpop.f32.mrb[0].mxu0
        %v2106 = vadd.f32 0.0, %v2105
        %v2107 = vpop.f32.mrb[0].mxu0
        %v2108 = vadd.f32 0.0, %v2107
        %v2109 = vpop.f32.mrb[0].mxu0
        %v2110 = vadd.f32 0.0, %v2109
        %2111 = vdwg.mxu0
        %2112 = vmatprep.subr.bf16.mxu0 %v1616
        %2113 = vmatpush1.bf16.msra.mxu0 %v1615
        %2114 = vmatprep.subr.bf16.mxu0 %v1620
        %2115 = vmatpush1.bf16.msra.mxu0 %v1619
        %2116 = vmatprep.subr.bf16.mxu0 %v1624
        %2117 = vmatpush1.bf16.msra.mxu0 %v1623
        %2118 = vmatprep.subr.bf16.mxu0 %v1628
        %2119 = vmatpush1.bf16.msra.mxu0 %v1627
        %2120 = vmatprep.subr.bf16.mxu0 %v1632
        %2121 = vmatpush1.bf16.msra.mxu0 %v1631
        %2122 = vmatprep.subr.bf16.mxu0 %v1636
        %2123 = vmatpush1.bf16.msra.mxu0 %v1635
        %2124 = vmatprep.subr.bf16.mxu0 %v1640
        %2125 = vmatpush1.bf16.msra.mxu0 %v1639
        %2126 = vmatprep.subr.bf16.mxu0 %v1644
        %2127 = vmatpush1.bf16.msra.mxu0 %v1643
        %2128 = vmatprep.subr.bf16.mxu0 %v1648
        %2129 = vmatpush1.bf16.msra.mxu0 %v1647
        %2130 = vmatprep.subr.bf16.mxu0 %v1652
        %2131 = vmatpush1.bf16.msra.mxu0 %v1651
        %2132 = vmatprep.subr.bf16.mxu0 %v1656
        %2133 = vmatpush1.bf16.msra.mxu0 %v1655
        %2134 = vmatprep.subr.bf16.mxu0 %v1660
        %2135 = vmatpush1.bf16.msra.mxu0 %v1659
        %2136 = vmatprep.subr.bf16.mxu0 %v1664
        %2137 = vmatpush1.bf16.msra.mxu0 %v1663
        %2138 = vmatprep.subr.bf16.mxu0 %v1668
        %2139 = vmatpush1.bf16.msra.mxu0 %v1667
        %2140 = vmatprep.subr.bf16.mxu0 %v1672
        %2141 = vmatpush1.bf16.msra.mxu0 %v1671
        %2142 = vmatprep.subr.bf16.mxu0 %v1676
        %2143 = vmatpush1.bf16.msra.mxu0 %v1675
        %2144 = vmatprep.mubr.bf16.mxu0 %v770
        %2145 = vmatmul.mubr.bf16.gmra.mrb[0].mxu0 %v769
        %v2146 = vpop.f32.mrb[0].mxu0
        %v2147 = vadd.f32 %v2034, %v2146
        %v2148 = vpop.f32.mrb[0].mxu0
        %v2149 = vadd.f32 %v2036, %v2148
        %v2150 = vpop.f32.mrb[0].mxu0
        %v2151 = vadd.f32 %v2038, %v2150
        %v2152 = vpop.f32.mrb[0].mxu0
        %v2153 = vadd.f32 %v2040, %v2152
        %2154 = vmatprep.mubr.bf16.mxu0 %v777
        %2155 = vmatmul.mubr.bf16.gmra.mrb[0].mxu0 %v776
        %v2156 = vpop.f32.mrb[0].mxu0
        %v2157 = vadd.f32 %v2044, %v2156
        %v2158 = vpop.f32.mrb[0].mxu0
        %v2159 = vadd.f32 %v2046, %v2158
        %v2160 = vpop.f32.mrb[0].mxu0
        %v2161 = vadd.f32 %v2048, %v2160
        %v2162 = vpop.f32.mrb[0].mxu0
        %v2163 = vadd.f32 %v2050, %v2162
        %2164 = vmatprep.mubr.bf16.mxu0 %v784
        %2165 = vmatmul.mubr.bf16.gmra.mrb[0].mxu0 %v783
        %v2166 = vpop.f32.mrb[0].mxu0
        %v2167 = vadd.f32 %v2054, %v2166
        %v2168 = vpop.f32.mrb[0].mxu0
        %v2169 = vadd.f32 %v2056, %v2168
        %v2170 = vpop.f32.mrb[0].mxu0
        %v2171 = vadd.f32 %v2058, %v2170
        %v2172 = vpop.f32.mrb[0].mxu0
        %v2173 = vadd.f32 %v2060, %v2172
        %2174 = vmatprep.mubr.bf16.mxu0 %v791
        %2175 = vmatmul.mubr.bf16.gmra.mrb[0].mxu0 %v790
        %v2176 = vpop.f32.mrb[0].mxu0
        %v2177 = vadd.f32 %v2064, %v2176
        %v2178 = vpop.f32.mrb[0].mxu0
        %v2179 = vadd.f32 %v2066, %v2178
        %v2180 = vpop.f32.mrb[0].mxu0
        %v2181 = vadd.f32 %v2068, %v2180
        %v2182 = vpop.f32.mrb[0].mxu0
        %v2183 = vadd.f32 %v2070, %v2182
        %2184 = vmatprep.mubr.bf16.mxu0 %v798
        %2185 = vmatmul.mubr.bf16.gmra.mrb[0].mxu0 %v797
        %v2186 = vpop.f32.mrb[0].mxu0
        %v2187 = vadd.f32 %v2074, %v2186
        %v2188 = vpop.f32.mrb[0].mxu0
        %v2189 = vadd.f32 %v2076, %v2188
        %v2190 = vpop.f32.mrb[0].mxu0
        %v2191 = vadd.f32 %v2078, %v2190
        %v2192 = vpop.f32.mrb[0].mxu0
        %v2193 = vadd.f32 %v2080, %v2192
        %2194 = vmatprep.mubr.bf16.mxu0 %v805
        %2195 = vmatmul.mubr.bf16.gmra.mrb[0].mxu0 %v804
        %v2196 = vpop.f32.mrb[0].mxu0
        %v2197 = vadd.f32 %v2084, %v2196
        %v2198 = vpop.f32.mrb[0].mxu0
        %v2199 = vadd.f32 %v2086, %v2198
        %v2200 = vpop.f32.mrb[0].mxu0
        %v2201 = vadd.f32 %v2088, %v2200
        %v2202 = vpop.f32.mrb[0].mxu0
        %v2203 = vadd.f32 %v2090, %v2202
        %2204 = vmatprep.mubr.bf16.mxu0 %v812
        %2205 = vmatmul.mubr.bf16.gmra.mrb[0].mxu0 %v811
        %v2206 = vpop.f32.mrb[0].mxu0
        %v2207 = vadd.f32 %v2094, %v2206
        %v2208 = vpop.f32.mrb[0].mxu0
        %v2209 = vadd.f32 %v2096, %v2208
        %v2210 = vpop.f32.mrb[0].mxu0
        %v2211 = vadd.f32 %v2098, %v2210
        %v2212 = vpop.f32.mrb[0].mxu0
        %v2213 = vadd.f32 %v2100, %v2212
        %2214 = vmatprep.mubr.bf16.mxu0 %v819
        %2215 = vmatmul.mubr.bf16.gmra.mrb[0].mxu0 %v818
        %v2216 = vpop.f32.mrb[0].mxu0
        %v2217 = vadd.f32 %v2104, %v2216
        %v2218 = vpop.f32.mrb[0].mxu0
        %v2219 = vadd.f32 %v2106, %v2218
        %v2220 = vpop.f32.mrb[0].mxu0
        %v2221 = vadd.f32 %v2108, %v2220
        %v2222 = vpop.f32.mrb[0].mxu0
        %v2223 = vadd.f32 %v2110, %v2222
        %2224 = vdwg.mxu0
        %2225 = vmatprep.subr.bf16.mxu0 %v1680
        %2226 = vmatpush1.bf16.msra.mxu0 %v1679
        %2227 = vmatprep.subr.bf16.mxu0 %v1684
        %2228 = vmatpush1.bf16.msra.mxu0 %v1683
        %2229 = vmatprep.subr.bf16.mxu0 %v1688
        %2230 = vmatpush1.bf16.msra.mxu0 %v1687
        %2231 = vmatprep.subr.bf16.mxu0 %v1692
        %2232 = vmatpush1.bf16.msra.mxu0 %v1691
        %2233 = vmatprep.subr.bf16.mxu0 %v1696
        %2234 = vmatpush1.bf16.msra.mxu0 %v1695
        %2235 = vmatprep.subr.bf16.mxu0 %v1700
        %2236 = vmatpush1.bf16.msra.mxu0 %v1699
        %2237 = vmatprep.subr.bf16.mxu0 %v1704
        %2238 = vmatpush1.bf16.msra.mxu0 %v1703
        %2239 = vmatprep.subr.bf16.mxu0 %v1708
        %2240 = vmatpush1.bf16.msra.mxu0 %v1707
        %2241 = vmatprep.subr.bf16.mxu0 %v1712
        %2242 = vmatpush1.bf16.msra.mxu0 %v1711
        %2243 = vmatprep.subr.bf16.mxu0 %v1716
        %2244 = vmatpush1.bf16.msra.mxu0 %v1715
        %2245 = vmatprep.subr.bf16.mxu0 %v1720
        %2246 = vmatpush1.bf16.msra.mxu0 %v1719
        %2247 = vmatprep.subr.bf16.mxu0 %v1724
        %2248 = vmatpush1.bf16.msra.mxu0 %v1723
        %2249 = vmatprep.subr.bf16.mxu0 %v1728
        %2250 = vmatpush1.bf16.msra.mxu0 %v1727
        %2251 = vmatprep.subr.bf16.mxu0 %v1732
        %2252 = vmatpush1.bf16.msra.mxu0 %v1731
        %2253 = vmatprep.subr.bf16.mxu0 %v1736
        %2254 = vmatpush1.bf16.msra.mxu0 %v1735
        %2255 = vmatprep.subr.bf16.mxu0 %v1740
        %2256 = vmatpush1.bf16.msra.mxu0 %v1739
        %2257 = vmatprep.mubr.bf16.mxu0 %v772
        %2258 = vmatmul.mubr.bf16.gmra.mrb[0].mxu0 %v771
        %v2259 = vpop.f32.mrb[0].mxu0
        %v2260 = vadd.f32 %v2147, %v2259
        %v2261 = vpop.f32.mrb[0].mxu0
        %v2262 = vadd.f32 %v2149, %v2261
        %v2263 = vpop.f32.mrb[0].mxu0
        %v2264 = vadd.f32 %v2151, %v2263
        %v2265 = vpop.f32.mrb[0].mxu0
        %v2266 = vadd.f32 %v2153, %v2265
        %2267 = vmatprep.mubr.bf16.mxu0 %v779
        %2268 = vmatmul.mubr.bf16.gmra.mrb[0].mxu0 %v778
        %v2269 = vpop.f32.mrb[0].mxu0
        %v2270 = vadd.f32 %v2157, %v2269
        %v2271 = vpop.f32.mrb[0].mxu0
        %v2272 = vadd.f32 %v2159, %v2271
        %v2273 = vpop.f32.mrb[0].mxu0
        %v2274 = vadd.f32 %v2161, %v2273
        %v2275 = vpop.f32.mrb[0].mxu0
        %v2276 = vadd.f32 %v2163, %v2275
        %2277 = vmatprep.mubr.bf16.mxu0 %v786
        %2278 = vmatmul.mubr.bf16.gmra.mrb[0].mxu0 %v785
        %v2279 = vpop.f32.mrb[0].mxu0
        %v2280 = vadd.f32 %v2167, %v2279
        %v2281 = vpop.f32.mrb[0].mxu0
        %v2282 = vadd.f32 %v2169, %v2281
        %v2283 = vpop.f32.mrb[0].mxu0
        %v2284 = vadd.f32 %v2171, %v2283
        %v2285 = vpop.f32.mrb[0].mxu0
        %v2286 = vadd.f32 %v2173, %v2285
        %2287 = vmatprep.mubr.bf16.mxu0 %v793
        %2288 = vmatmul.mubr.bf16.gmra.mrb[0].mxu0 %v792
        %v2289 = vpop.f32.mrb[0].mxu0
        %v2290 = vadd.f32 %v2177, %v2289
        %v2291 = vpop.f32.mrb[0].mxu0
        %v2292 = vadd.f32 %v2179, %v2291
        %v2293 = vpop.f32.mrb[0].mxu0
        %v2294 = vadd.f32 %v2181, %v2293
        %v2295 = vpop.f32.mrb[0].mxu0
        %v2296 = vadd.f32 %v2183, %v2295
        %2297 = vmatprep.mubr.bf16.mxu0 %v800
        %2298 = vmatmul.mubr.bf16.gmra.mrb[0].mxu0 %v799
        %v2299 = vpop.f32.mrb[0].mxu0
        %v2300 = vadd.f32 %v2187, %v2299
        %v2301 = vpop.f32.mrb[0].mxu0
        %v2302 = vadd.f32 %v2189, %v2301
        %v2303 = vpop.f32.mrb[0].mxu0
        %v2304 = vadd.f32 %v2191, %v2303
        %v2305 = vpop.f32.mrb[0].mxu0
        %v2306 = vadd.f32 %v2193, %v2305
        %2307 = vmatprep.mubr.bf16.mxu0 %v807
        %2308 = vmatmul.mubr.bf16.gmra.mrb[0].mxu0 %v806
        %v2309 = vpop.f32.mrb[0].mxu0
        %v2310 = vadd.f32 %v2197, %v2309
        %v2311 = vpop.f32.mrb[0].mxu0
        %v2312 = vadd.f32 %v2199, %v2311
        %v2313 = vpop.f32.mrb[0].mxu0
        %v2314 = vadd.f32 %v2201, %v2313
        %v2315 = vpop.f32.mrb[0].mxu0
        %v2316 = vadd.f32 %v2203, %v2315
        %2317 = vmatprep.mubr.bf16.mxu0 %v814
        %2318 = vmatmul.mubr.bf16.gmra.mrb[0].mxu0 %v813
        %v2319 = vpop.f32.mrb[0].mxu0
        %v2320 = vadd.f32 %v2207, %v2319
        %v2321 = vpop.f32.mrb[0].mxu0
        %v2322 = vadd.f32 %v2209, %v2321
        %v2323 = vpop.f32.mrb[0].mxu0
        %v2324 = vadd.f32 %v2211, %v2323
        %v2325 = vpop.f32.mrb[0].mxu0
        %v2326 = vadd.f32 %v2213, %v2325
        %2327 = vmatprep.mubr.bf16.mxu0 %v821
        %2328 = vmatmul.mubr.bf16.gmra.mrb[0].mxu0 %v820
        %v2329 = vpop.f32.mrb[0].mxu0
        %v2330 = vadd.f32 %v2217, %v2329
        %v2331 = vpop.f32.mrb[0].mxu0
        %v2332 = vadd.f32 %v2219, %v2331
        %v2333 = vpop.f32.mrb[0].mxu0
        %v2334 = vadd.f32 %v2221, %v2333
        %v2335 = vpop.f32.mrb[0].mxu0
        %v2336 = vadd.f32 %v2223, %v2335
        %2337 = vdwg.mxu0
        %2338 = vmatprep.subr.bf16.mxu0 %v1744
        %2339 = vmatpush1.bf16.msra.mxu0 %v1743
        %2340 = vmatprep.subr.bf16.mxu0 %v1748
        %2341 = vmatpush1.bf16.msra.mxu0 %v1747
        %2342 = vmatprep.subr.bf16.mxu0 %v1752
        %2343 = vmatpush1.bf16.msra.mxu0 %v1751
        %2344 = vmatprep.subr.bf16.mxu0 %v1756
        %2345 = vmatpush1.bf16.msra.mxu0 %v1755
        %2346 = vmatprep.subr.bf16.mxu0 %v1760
        %2347 = vmatpush1.bf16.msra.mxu0 %v1759
        %2348 = vmatprep.subr.bf16.mxu0 %v1764
        %2349 = vmatpush1.bf16.msra.mxu0 %v1763
        %2350 = vmatprep.subr.bf16.mxu0 %v1768
        %2351 = vmatpush1.bf16.msra.mxu0 %v1767
        %2352 = vmatprep.subr.bf16.mxu0 %v1772
        %2353 = vmatpush1.bf16.msra.mxu0 %v1771
        %2354 = vmatprep.subr.bf16.mxu0 0
        %2355 = vmatpush1.bf16.msra.mxu0 0
        %2356 = vmatprep.subr.bf16.mxu0 0
        %2357 = vmatpush1.bf16.msra.mxu0 0
        %2358 = vmatprep.subr.bf16.mxu0 0
        %2359 = vmatpush1.bf16.msra.mxu0 0
        %2360 = vmatprep.subr.bf16.mxu0 0
        %2361 = vmatpush1.bf16.msra.mxu0 0
        %2362 = vmatprep.subr.bf16.mxu0 0
        %2363 = vmatpush1.bf16.msra.mxu0 0
        %2364 = vmatprep.subr.bf16.mxu0 0
        %2365 = vmatpush1.bf16.msra.mxu0 0
        %2366 = vmatprep.subr.bf16.mxu0 0
        %2367 = vmatpush1.bf16.msra.mxu0 0
        %2368 = vmatprep.subr.bf16.mxu0 0
        %2369 = vmatpush1.bf16.msra.mxu0 0
        %2370 = vmatprep.mubr.bf16.mxu0 0
        %2371 = vmatmul.mubr.bf16.gmra.mrb[0].mxu0 %v773
        %v2372 = vpop.f32.mrb[0].mxu0
        %v2373 = vadd.f32 %v2260, %v2372
        %v2374 = vpop.f32.mrb[0].mxu0
        %v2375 = vadd.f32 %v2262, %v2374
        %v2376 = vpop.f32.mrb[0].mxu0
        %v2377 = vadd.f32 %v2264, %v2376
        %v2378 = vpop.f32.mrb[0].mxu0
        %v2379 = vadd.f32 %v2266, %v2378
        %2380 = vmatprep.mubr.bf16.mxu0 0
        %2381 = vmatmul.mubr.bf16.gmra.mrb[0].mxu0 %v780
        %v2382 = vpop.f32.mrb[0].mxu0
        %v2383 = vadd.f32 %v2270, %v2382
        %v2384 = vpop.f32.mrb[0].mxu0
        %v2385 = vadd.f32 %v2272, %v2384
        %v2386 = vpop.f32.mrb[0].mxu0
        %v2387 = vadd.f32 %v2274, %v2386
        %v2388 = vpop.f32.mrb[0].mxu0
        %v2389 = vadd.f32 %v2276, %v2388
        %2390 = vmatprep.mubr.bf16.mxu0 0
        %2391 = vmatmul.mubr.bf16.gmra.mrb[0].mxu0 %v787
        %v2392 = vpop.f32.mrb[0].mxu0
        %v2393 = vadd.f32 %v2280, %v2392
        %v2394 = vpop.f32.mrb[0].mxu0
        %v2395 = vadd.f32 %v2282, %v2394
        %v2396 = vpop.f32.mrb[0].mxu0
        %v2397 = vadd.f32 %v2284, %v2396
        %v2398 = vpop.f32.mrb[0].mxu0
        %v2399 = vadd.f32 %v2286, %v2398
        %2400 = vmatprep.mubr.bf16.mxu0 0
        %2401 = vmatmul.mubr.bf16.gmra.mrb[0].mxu0 %v794
        %v2402 = vpop.f32.mrb[0].mxu0
        %v2403 = vadd.f32 %v2290, %v2402
        %v2404 = vpop.f32.mrb[0].mxu0
        %v2405 = vadd.f32 %v2292, %v2404
        %v2406 = vpop.f32.mrb[0].mxu0
        %v2407 = vadd.f32 %v2294, %v2406
        %v2408 = vpop.f32.mrb[0].mxu0
        %v2409 = vadd.f32 %v2296, %v2408
        %2410 = vmatprep.mubr.bf16.mxu0 0
        %2411 = vmatmul.mubr.bf16.gmra.mrb[0].mxu0 %v801
        %v2412 = vpop.f32.mrb[0].mxu0
        %v2413 = vadd.f32 %v2300, %v2412
        %v2414 = vpop.f32.mrb[0].mxu0
        %v2415 = vadd.f32 %v2302, %v2414
        %v2416 = vpop.f32.mrb[0].mxu0
        %v2417 = vadd.f32 %v2304, %v2416
        %v2418 = vpop.f32.mrb[0].mxu0
        %v2419 = vadd.f32 %v2306, %v2418
        %2420 = vmatprep.mubr.bf16.mxu0 0
        %2421 = vmatmul.mubr.bf16.gmra.mrb[0].mxu0 %v808
        %v2422 = vpop.f32.mrb[0].mxu0
        %v2423 = vadd.f32 %v2310, %v2422
        %v2424 = vpop.f32.mrb[0].mxu0
        %v2425 = vadd.f32 %v2312, %v2424
        %v2426 = vpop.f32.mrb[0].mxu0
        %v2427 = vadd.f32 %v2314, %v2426
        %v2428 = vpop.f32.mrb[0].mxu0
        %v2429 = vadd.f32 %v2316, %v2428
        %2430 = vmatprep.mubr.bf16.mxu0 0
        %2431 = vmatmul.mubr.bf16.gmra.mrb[0].mxu0 %v815
        %v2432 = vpop.f32.mrb[0].mxu0
        %v2433 = vadd.f32 %v2320, %v2432
        %v2434 = vpop.f32.mrb[0].mxu0
        %v2435 = vadd.f32 %v2322, %v2434
        %v2436 = vpop.f32.mrb[0].mxu0
        %v2437 = vadd.f32 %v2324, %v2436
        %v2438 = vpop.f32.mrb[0].mxu0
        %v2439 = vadd.f32 %v2326, %v2438
        %2440 = vmatprep.mubr.bf16.mxu0 0
        %2441 = vmatmul.mubr.bf16.gmra.mrb[0].mxu0 %v822
        %v2442 = vpop.f32.mrb[0].mxu0
        %v2443 = vadd.f32 %v2330, %v2442
        %v2444 = vpop.f32.mrb[0].mxu0
        %v2445 = vadd.f32 %v2332, %v2444
        %v2446 = vpop.f32.mrb[0].mxu0
        %v2447 = vadd.f32 %v2334, %v2446
        %v2448 = vpop.f32.mrb[0].mxu0
        %v2449 = vadd.f32 %v2336, %v2448
        %2450 = vdwg.mxu0
        %2451 = vmatprep.subr.bf16.mxu0 %v1554
        %2452 = vmatpush1.bf16.msra.mxu0 %v1553
        %2453 = vmatprep.subr.bf16.mxu0 %v1558
        %2454 = vmatpush1.bf16.msra.mxu0 %v1557
        %2455 = vmatprep.subr.bf16.mxu0 %v1562
        %2456 = vmatpush1.bf16.msra.mxu0 %v1561
        %2457 = vmatprep.subr.bf16.mxu0 %v1566
        %2458 = vmatpush1.bf16.msra.mxu0 %v1565
        %2459 = vmatprep.subr.bf16.mxu0 %v1570
        %2460 = vmatpush1.bf16.msra.mxu0 %v1569
        %2461 = vmatprep.subr.bf16.mxu0 %v1574
        %2462 = vmatpush1.bf16.msra.mxu0 %v1573
        %2463 = vmatprep.subr.bf16.mxu0 %v1578
        %2464 = vmatpush1.bf16.msra.mxu0 %v1577
        %2465 = vmatprep.subr.bf16.mxu0 %v1582
        %2466 = vmatpush1.bf16.msra.mxu0 %v1581
        %2467 = vmatprep.subr.bf16.mxu0 %v1586
        %2468 = vmatpush1.bf16.msra.mxu0 %v1585
        %2469 = vmatprep.subr.bf16.mxu0 %v1590
        %2470 = vmatpush1.bf16.msra.mxu0 %v1589
        %2471 = vmatprep.subr.bf16.mxu0 %v1594
        %2472 = vmatpush1.bf16.msra.mxu0 %v1593
        %2473 = vmatprep.subr.bf16.mxu0 %v1598
        %2474 = vmatpush1.bf16.msra.mxu0 %v1597
        %2475 = vmatprep.subr.bf16.mxu0 %v1602
        %2476 = vmatpush1.bf16.msra.mxu0 %v1601
        %2477 = vmatprep.subr.bf16.mxu0 %v1606
        %2478 = vmatpush1.bf16.msra.mxu0 %v1605
        %2479 = vmatprep.subr.bf16.mxu0 %v1610
        %2480 = vmatpush1.bf16.msra.mxu0 %v1609
        %2481 = vmatprep.subr.bf16.mxu0 %v1614
        %2482 = vmatpush1.bf16.msra.mxu0 %v1613
        %2483 = vmatprep.mubr.bf16.mxu0 %v768
        %2484 = vmatmul.mubr.bf16.gmra.mrb[0].mxu0 %v767
        %v2485 = vpop.f32.mrb[0].mxu0
        %v2486 = vadd.f32 0.0, %v2485
        %v2487 = vpop.f32.mrb[0].mxu0
        %v2488 = vadd.f32 0.0, %v2487
        %v2489 = vpop.f32.mrb[0].mxu0
        %v2490 = vadd.f32 0.0, %v2489
        %v2491 = vpop.f32.mrb[0].mxu0
        %v2492 = vadd.f32 0.0, %v2491
        %2493 = vmatprep.mubr.bf16.mxu0 %v775
        %2494 = vmatmul.mubr.bf16.gmra.mrb[0].mxu0 %v774
        %v2495 = vpop.f32.mrb[0].mxu0
        %v2496 = vadd.f32 0.0, %v2495
        %v2497 = vpop.f32.mrb[0].mxu0
        %v2498 = vadd.f32 0.0, %v2497
        %v2499 = vpop.f32.mrb[0].mxu0
        %v2500 = vadd.f32 0.0, %v2499
        %v2501 = vpop.f32.mrb[0].mxu0
        %v2502 = vadd.f32 0.0, %v2501
        %2503 = vmatprep.mubr.bf16.mxu0 %v782
        %2504 = vmatmul.mubr.bf16.gmra.mrb[0].mxu0 %v781
        %v2505 = vpop.f32.mrb[0].mxu0
        %v2506 = vadd.f32 0.0, %v2505
        %v2507 = vpop.f32.mrb[0].mxu0
        %v2508 = vadd.f32 0.0, %v2507
        %v2509 = vpop.f32.mrb[0].mxu0
        %v2510 = vadd.f32 0.0, %v2509
        %v2511 = vpop.f32.mrb[0].mxu0
        %v2512 = vadd.f32 0.0, %v2511
        %2513 = vmatprep.mubr.bf16.mxu0 %v789
        %2514 = vmatmul.mubr.bf16.gmra.mrb[0].mxu0 %v788
        %v2515 = vpop.f32.mrb[0].mxu0
        %v2516 = vadd.f32 0.0, %v2515
        %v2517 = vpop.f32.mrb[0].mxu0
        %v2518 = vadd.f32 0.0, %v2517
        %v2519 = vpop.f32.mrb[0].mxu0
        %v2520 = vadd.f32 0.0, %v2519
        %v2521 = vpop.f32.mrb[0].mxu0
        %v2522 = vadd.f32 0.0, %v2521
        %2523 = vmatprep.mubr.bf16.mxu0 %v796
        %2524 = vmatmul.mubr.bf16.gmra.mrb[0].mxu0 %v795
        %v2525 = vpop.f32.mrb[0].mxu0
        %v2526 = vadd.f32 0.0, %v2525
        %v2527 = vpop.f32.mrb[0].mxu0
        %v2528 = vadd.f32 0.0, %v2527
        %v2529 = vpop.f32.mrb[0].mxu0
        %v2530 = vadd.f32 0.0, %v2529
        %v2531 = vpop.f32.mrb[0].mxu0
        %v2532 = vadd.f32 0.0, %v2531
        %2533 = vmatprep.mubr.bf16.mxu0 %v803
        %2534 = vmatmul.mubr.bf16.gmra.mrb[0].mxu0 %v802
        %v2535 = vpop.f32.mrb[0].mxu0
        %v2536 = vadd.f32 0.0, %v2535
        %v2537 = vpop.f32.mrb[0].mxu0
        %v2538 = vadd.f32 0.0, %v2537
        %v2539 = vpop.f32.mrb[0].mxu0
        %v2540 = vadd.f32 0.0, %v2539
        %v2541 = vpop.f32.mrb[0].mxu0
        %v2542 = vadd.f32 0.0, %v2541
        %2543 = vmatprep.mubr.bf16.mxu0 %v810
        %2544 = vmatmul.mubr.bf16.gmra.mrb[0].mxu0 %v809
        %v2545 = vpop.f32.mrb[0].mxu0
        %v2546 = vadd.f32 0.0, %v2545
        %v2547 = vpop.f32.mrb[0].mxu0
        %v2548 = vadd.f32 0.0, %v2547
        %v2549 = vpop.f32.mrb[0].mxu0
        %v2550 = vadd.f32 0.0, %v2549
        %v2551 = vpop.f32.mrb[0].mxu0
        %v2552 = vadd.f32 0.0, %v2551
        %2553 = vmatprep.mubr.bf16.mxu0 %v817
        %2554 = vmatmul.mubr.bf16.gmra.mrb[0].mxu0 %v816
        %v2555 = vpop.f32.mrb[0].mxu0
        %v2556 = vadd.f32 0.0, %v2555
        %v2557 = vpop.f32.mrb[0].mxu0
        %v2558 = vadd.f32 0.0, %v2557
        %v2559 = vpop.f32.mrb[0].mxu0
        %v2560 = vadd.f32 0.0, %v2559
        %v2561 = vpop.f32.mrb[0].mxu0
        %v2562 = vadd.f32 0.0, %v2561
        %2563 = vdwg.mxu0
        %2564 = vmatprep.subr.bf16.mxu0 %v1618
        %2565 = vmatpush1.bf16.msra.mxu0 %v1617
        %2566 = vmatprep.subr.bf16.mxu0 %v1622
        %2567 = vmatpush1.bf16.msra.mxu0 %v1621
        %2568 = vmatprep.subr.bf16.mxu0 %v1626
        %2569 = vmatpush1.bf16.msra.mxu0 %v1625
        %2570 = vmatprep.subr.bf16.mxu0 %v1630
        %2571 = vmatpush1.bf16.msra.mxu0 %v1629
        %2572 = vmatprep.subr.bf16.mxu0 %v1634
        %2573 = vmatpush1.bf16.msra.mxu0 %v1633
        %2574 = vmatprep.subr.bf16.mxu0 %v1638
        %2575 = vmatpush1.bf16.msra.mxu0 %v1637
        %2576 = vmatprep.subr.bf16.mxu0 %v1642
        %2577 = vmatpush1.bf16.msra.mxu0 %v1641
        %2578 = vmatprep.subr.bf16.mxu0 %v1646
        %2579 = vmatpush1.bf16.msra.mxu0 %v1645
        %2580 = vmatprep.subr.bf16.mxu0 %v1650
        %2581 = vmatpush1.bf16.msra.mxu0 %v1649
        %2582 = vmatprep.subr.bf16.mxu0 %v1654
        %2583 = vmatpush1.bf16.msra.mxu0 %v1653
        %2584 = vmatprep.subr.bf16.mxu0 %v1658
        %2585 = vmatpush1.bf16.msra.mxu0 %v1657
        %2586 = vmatprep.subr.bf16.mxu0 %v1662
        %2587 = vmatpush1.bf16.msra.mxu0 %v1661
        %2588 = vmatprep.subr.bf16.mxu0 %v1666
        %2589 = vmatpush1.bf16.msra.mxu0 %v1665
        %2590 = vmatprep.subr.bf16.mxu0 %v1670
        %2591 = vmatpush1.bf16.msra.mxu0 %v1669
        %2592 = vmatprep.subr.bf16.mxu0 %v1674
        %2593 = vmatpush1.bf16.msra.mxu0 %v1673
        %2594 = vmatprep.subr.bf16.mxu0 %v1678
        %2595 = vmatpush1.bf16.msra.mxu0 %v1677
        %2596 = vmatprep.mubr.bf16.mxu0 %v770
        %2597 = vmatmul.mubr.bf16.gmra.mrb[0].mxu0 %v769
        %v2598 = vpop.f32.mrb[0].mxu0
        %v2599 = vadd.f32 %v2486, %v2598
        %v2600 = vpop.f32.mrb[0].mxu0
        %v2601 = vadd.f32 %v2488, %v2600
        %v2602 = vpop.f32.mrb[0].mxu0
        %v2603 = vadd.f32 %v2490, %v2602
        %v2604 = vpop.f32.mrb[0].mxu0
        %v2605 = vadd.f32 %v2492, %v2604
        %2606 = vmatprep.mubr.bf16.mxu0 %v777
        %2607 = vmatmul.mubr.bf16.gmra.mrb[0].mxu0 %v776
        %v2608 = vpop.f32.mrb[0].mxu0
        %v2609 = vadd.f32 %v2496, %v2608
        %v2610 = vpop.f32.mrb[0].mxu0
        %v2611 = vadd.f32 %v2498, %v2610
        %v2612 = vpop.f32.mrb[0].mxu0
        %v2613 = vadd.f32 %v2500, %v2612
        %v2614 = vpop.f32.mrb[0].mxu0
        %v2615 = vadd.f32 %v2502, %v2614
        %2616 = vmatprep.mubr.bf16.mxu0 %v784
        %2617 = vmatmul.mubr.bf16.gmra.mrb[0].mxu0 %v783
        %v2618 = vpop.f32.mrb[0].mxu0
        %v2619 = vadd.f32 %v2506, %v2618
        %v2620 = vpop.f32.mrb[0].mxu0
        %v2621 = vadd.f32 %v2508, %v2620
        %v2622 = vpop.f32.mrb[0].mxu0
        %v2623 = vadd.f32 %v2510, %v2622
        %v2624 = vpop.f32.mrb[0].mxu0
        %v2625 = vadd.f32 %v2512, %v2624
        %2626 = vmatprep.mubr.bf16.mxu0 %v791
        %2627 = vmatmul.mubr.bf16.gmra.mrb[0].mxu0 %v790
        %v2628 = vpop.f32.mrb[0].mxu0
        %v2629 = vadd.f32 %v2516, %v2628
        %v2630 = vpop.f32.mrb[0].mxu0
        %v2631 = vadd.f32 %v2518, %v2630
        %v2632 = vpop.f32.mrb[0].mxu0
        %v2633 = vadd.f32 %v2520, %v2632
        %v2634 = vpop.f32.mrb[0].mxu0
        %v2635 = vadd.f32 %v2522, %v2634
        %2636 = vmatprep.mubr.bf16.mxu0 %v798
        %2637 = vmatmul.mubr.bf16.gmra.mrb[0].mxu0 %v797
        %v2638 = vpop.f32.mrb[0].mxu0
        %v2639 = vadd.f32 %v2526, %v2638
        %v2640 = vpop.f32.mrb[0].mxu0
        %v2641 = vadd.f32 %v2528, %v2640
        %v2642 = vpop.f32.mrb[0].mxu0
        %v2643 = vadd.f32 %v2530, %v2642
        %v2644 = vpop.f32.mrb[0].mxu0
        %v2645 = vadd.f32 %v2532, %v2644
        %2646 = vmatprep.mubr.bf16.mxu0 %v805
        %2647 = vmatmul.mubr.bf16.gmra.mrb[0].mxu0 %v804
        %v2648 = vpop.f32.mrb[0].mxu0
        %v2649 = vadd.f32 %v2536, %v2648
        %v2650 = vpop.f32.mrb[0].mxu0
        %v2651 = vadd.f32 %v2538, %v2650
        %v2652 = vpop.f32.mrb[0].mxu0
        %v2653 = vadd.f32 %v2540, %v2652
        %v2654 = vpop.f32.mrb[0].mxu0
        %v2655 = vadd.f32 %v2542, %v2654
        %2656 = vmatprep.mubr.bf16.mxu0 %v812
        %2657 = vmatmul.mubr.bf16.gmra.mrb[0].mxu0 %v811
        %v2658 = vpop.f32.mrb[0].mxu0
        %v2659 = vadd.f32 %v2546, %v2658
        %v2660 = vpop.f32.mrb[0].mxu0
        %v2661 = vadd.f32 %v2548, %v2660
        %v2662 = vpop.f32.mrb[0].mxu0
        %v2663 = vadd.f32 %v2550, %v2662
        %v2664 = vpop.f32.mrb[0].mxu0
        %v2665 = vadd.f32 %v2552, %v2664
        %2666 = vmatprep.mubr.bf16.mxu0 %v819
        %2667 = vmatmul.mubr.bf16.gmra.mrb[0].mxu0 %v818
        %v2668 = vpop.f32.mrb[0].mxu0
        %v2669 = vadd.f32 %v2556, %v2668
        %v2670 = vpop.f32.mrb[0].mxu0
        %v2671 = vadd.f32 %v2558, %v2670
        %v2672 = vpop.f32.mrb[0].mxu0
        %v2673 = vadd.f32 %v2560, %v2672
        %v2674 = vpop.f32.mrb[0].mxu0
        %v2675 = vadd.f32 %v2562, %v2674
        %2676 = vdwg.mxu0
        %2677 = vmatprep.subr.bf16.mxu0 %v1682
        %2678 = vmatpush1.bf16.msra.mxu0 %v1681
        %2679 = vmatprep.subr.bf16.mxu0 %v1686
        %2680 = vmatpush1.bf16.msra.mxu0 %v1685
        %2681 = vmatprep.subr.bf16.mxu0 %v1690
        %2682 = vmatpush1.bf16.msra.mxu0 %v1689
        %2683 = vmatprep.subr.bf16.mxu0 %v1694
        %2684 = vmatpush1.bf16.msra.mxu0 %v1693
        %2685 = vmatprep.subr.bf16.mxu0 %v1698
        %2686 = vmatpush1.bf16.msra.mxu0 %v1697
        %2687 = vmatprep.subr.bf16.mxu0 %v1702
        %2688 = vmatpush1.bf16.msra.mxu0 %v1701
        %2689 = vmatprep.subr.bf16.mxu0 %v1706
        %2690 = vmatpush1.bf16.msra.mxu0 %v1705
        %2691 = vmatprep.subr.bf16.mxu0 %v1710
        %2692 = vmatpush1.bf16.msra.mxu0 %v1709
        %2693 = vmatprep.subr.bf16.mxu0 %v1714
        %2694 = vmatpush1.bf16.msra.mxu0 %v1713
        %2695 = vmatprep.subr.bf16.mxu0 %v1718
        %2696 = vmatpush1.bf16.msra.mxu0 %v1717
        %2697 = vmatprep.subr.bf16.mxu0 %v1722
        %2698 = vmatpush1.bf16.msra.mxu0 %v1721
        %2699 = vmatprep.subr.bf16.mxu0 %v1726
        %2700 = vmatpush1.bf16.msra.mxu0 %v1725
        %2701 = vmatprep.subr.bf16.mxu0 %v1730
        %2702 = vmatpush1.bf16.msra.mxu0 %v1729
        %2703 = vmatprep.subr.bf16.mxu0 %v1734
        %2704 = vmatpush1.bf16.msra.mxu0 %v1733
        %2705 = vmatprep.subr.bf16.mxu0 %v1738
        %2706 = vmatpush1.bf16.msra.mxu0 %v1737
        %2707 = vmatprep.subr.bf16.mxu0 %v1742
        %2708 = vmatpush1.bf16.msra.mxu0 %v1741
        %2709 = vmatprep.mubr.bf16.mxu0 %v772
        %2710 = vmatmul.mubr.bf16.gmra.mrb[0].mxu0 %v771
        %v2711 = vpop.f32.mrb[0].mxu0
        %v2712 = vadd.f32 %v2599, %v2711
        %v2713 = vpop.f32.mrb[0].mxu0
        %v2714 = vadd.f32 %v2601, %v2713
        %v2715 = vpop.f32.mrb[0].mxu0
        %v2716 = vadd.f32 %v2603, %v2715
        %v2717 = vpop.f32.mrb[0].mxu0
        %v2718 = vadd.f32 %v2605, %v2717
        %2719 = vmatprep.mubr.bf16.mxu0 %v779
        %2720 = vmatmul.mubr.bf16.gmra.mrb[0].mxu0 %v778
        %v2721 = vpop.f32.mrb[0].mxu0
        %v2722 = vadd.f32 %v2609, %v2721
        %v2723 = vpop.f32.mrb[0].mxu0
        %v2724 = vadd.f32 %v2611, %v2723
        %v2725 = vpop.f32.mrb[0].mxu0
        %v2726 = vadd.f32 %v2613, %v2725
        %v2727 = vpop.f32.mrb[0].mxu0
        %v2728 = vadd.f32 %v2615, %v2727
        %2729 = vmatprep.mubr.bf16.mxu0 %v786
        %2730 = vmatmul.mubr.bf16.gmra.mrb[0].mxu0 %v785
        %v2731 = vpop.f32.mrb[0].mxu0
        %v2732 = vadd.f32 %v2619, %v2731
        %v2733 = vpop.f32.mrb[0].mxu0
        %v2734 = vadd.f32 %v2621, %v2733
        %v2735 = vpop.f32.mrb[0].mxu0
        %v2736 = vadd.f32 %v2623, %v2735
        %v2737 = vpop.f32.mrb[0].mxu0
        %v2738 = vadd.f32 %v2625, %v2737
        %2739 = vmatprep.mubr.bf16.mxu0 %v793
        %2740 = vmatmul.mubr.bf16.gmra.mrb[0].mxu0 %v792
        %v2741 = vpop.f32.mrb[0].mxu0
        %v2742 = vadd.f32 %v2629, %v2741
        %v2743 = vpop.f32.mrb[0].mxu0
        %v2744 = vadd.f32 %v2631, %v2743
        %v2745 = vpop.f32.mrb[0].mxu0
        %v2746 = vadd.f32 %v2633, %v2745
        %v2747 = vpop.f32.mrb[0].mxu0
        %v2748 = vadd.f32 %v2635, %v2747
        %2749 = vmatprep.mubr.bf16.mxu0 %v800
        %2750 = vmatmul.mubr.bf16.gmra.mrb[0].mxu0 %v799
        %v2751 = vpop.f32.mrb[0].mxu0
        %v2752 = vadd.f32 %v2639, %v2751
        %v2753 = vpop.f32.mrb[0].mxu0
        %v2754 = vadd.f32 %v2641, %v2753
        %v2755 = vpop.f32.mrb[0].mxu0
        %v2756 = vadd.f32 %v2643, %v2755
        %v2757 = vpop.f32.mrb[0].mxu0
        %v2758 = vadd.f32 %v2645, %v2757
        %2759 = vmatprep.mubr.bf16.mxu0 %v807
        %2760 = vmatmul.mubr.bf16.gmra.mrb[0].mxu0 %v806
        %v2761 = vpop.f32.mrb[0].mxu0
        %v2762 = vadd.f32 %v2649, %v2761
        %v2763 = vpop.f32.mrb[0].mxu0
        %v2764 = vadd.f32 %v2651, %v2763
        %v2765 = vpop.f32.mrb[0].mxu0
        %v2766 = vadd.f32 %v2653, %v2765
        %v2767 = vpop.f32.mrb[0].mxu0
        %v2768 = vadd.f32 %v2655, %v2767
        %2769 = vmatprep.mubr.bf16.mxu0 %v814
        %2770 = vmatmul.mubr.bf16.gmra.mrb[0].mxu0 %v813
        %v2771 = vpop.f32.mrb[0].mxu0
        %v2772 = vadd.f32 %v2659, %v2771
        %v2773 = vpop.f32.mrb[0].mxu0
        %v2774 = vadd.f32 %v2661, %v2773
        %v2775 = vpop.f32.mrb[0].mxu0
        %v2776 = vadd.f32 %v2663, %v2775
        %v2777 = vpop.f32.mrb[0].mxu0
        %v2778 = vadd.f32 %v2665, %v2777
        %2779 = vmatprep.mubr.bf16.mxu0 %v821
        %2780 = vmatmul.mubr.bf16.gmra.mrb[0].mxu0 %v820
        %v2781 = vpop.f32.mrb[0].mxu0
        %v2782 = vadd.f32 %v2669, %v2781
        %v2783 = vpop.f32.mrb[0].mxu0
        %v2784 = vadd.f32 %v2671, %v2783
        %v2785 = vpop.f32.mrb[0].mxu0
        %v2786 = vadd.f32 %v2673, %v2785
        %v2787 = vpop.f32.mrb[0].mxu0
        %v2788 = vadd.f32 %v2675, %v2787
        %2789 = vdwg.mxu0
        %2790 = vmatprep.subr.bf16.mxu0 %v1746
        %2791 = vmatpush1.bf16.msra.mxu0 %v1745
        %2792 = vmatprep.subr.bf16.mxu0 %v1750
        %2793 = vmatpush1.bf16.msra.mxu0 %v1749
        %2794 = vmatprep.subr.bf16.mxu0 %v1754
        %2795 = vmatpush1.bf16.msra.mxu0 %v1753
        %2796 = vmatprep.subr.bf16.mxu0 %v1758
        %2797 = vmatpush1.bf16.msra.mxu0 %v1757
        %2798 = vmatprep.subr.bf16.mxu0 %v1762
        %2799 = vmatpush1.bf16.msra.mxu0 %v1761
        %2800 = vmatprep.subr.bf16.mxu0 %v1766
        %2801 = vmatpush1.bf16.msra.mxu0 %v1765
        %2802 = vmatprep.subr.bf16.mxu0 %v1770
        %2803 = vmatpush1.bf16.msra.mxu0 %v1769
        %2804 = vmatprep.subr.bf16.mxu0 %v1774
        %2805 = vmatpush1.bf16.msra.mxu0 %v1773
        %2806 = vmatprep.subr.bf16.mxu0 0
        %2807 = vmatpush1.bf16.msra.mxu0 0
        %2808 = vmatprep.subr.bf16.mxu0 0
        %2809 = vmatpush1.bf16.msra.mxu0 0
        %2810 = vmatprep.subr.bf16.mxu0 0
        %2811 = vmatpush1.bf16.msra.mxu0 0
        %2812 = vmatprep.subr.bf16.mxu0 0
        %2813 = vmatpush1.bf16.msra.mxu0 0
        %2814 = vmatprep.subr.bf16.mxu0 0
        %2815 = vmatpush1.bf16.msra.mxu0 0
        %2816 = vmatprep.subr.bf16.mxu0 0
        %2817 = vmatpush1.bf16.msra.mxu0 0
        %2818 = vmatprep.subr.bf16.mxu0 0
        %2819 = vmatpush1.bf16.msra.mxu0 0
        %2820 = vmatprep.subr.bf16.mxu0 0
        %2821 = vmatpush1.bf16.msra.mxu0 0
        %2822 = vmatprep.mubr.bf16.mxu0 0
        %2823 = vmatmul.mubr.bf16.gmra.mrb[0].mxu0 %v773
        %v2824 = vpop.f32.mrb[0].mxu0
        %v2825 = vadd.f32 %v2712, %v2824
        %v2826 = vpop.f32.mrb[0].mxu0
        %v2827 = vadd.f32 %v2714, %v2826
        %v2828 = vpop.f32.mrb[0].mxu0
        %v2829 = vadd.f32 %v2716, %v2828
        %v2830 = vpop.f32.mrb[0].mxu0
        %v2831 = vadd.f32 %v2718, %v2830
        %2832 = vmatprep.mubr.bf16.mxu0 0
        %2833 = vmatmul.mubr.bf16.gmra.mrb[0].mxu0 %v780
        %v2834 = vpop.f32.mrb[0].mxu0
        %v2835 = vadd.f32 %v2722, %v2834
        %v2836 = vpop.f32.mrb[0].mxu0
        %v2837 = vadd.f32 %v2724, %v2836
        %v2838 = vpop.f32.mrb[0].mxu0
        %v2839 = vadd.f32 %v2726, %v2838
        %v2840 = vpop.f32.mrb[0].mxu0
        %v2841 = vadd.f32 %v2728, %v2840
        %2842 = vmatprep.mubr.bf16.mxu0 0
        %2843 = vmatmul.mubr.bf16.gmra.mrb[0].mxu0 %v787
        %v2844 = vpop.f32.mrb[0].mxu0
        %v2845 = vadd.f32 %v2732, %v2844
        %v2846 = vpop.f32.mrb[0].mxu0
        %v2847 = vadd.f32 %v2734, %v2846
        %v2848 = vpop.f32.mrb[0].mxu0
        %v2849 = vadd.f32 %v2736, %v2848
        %v2850 = vpop.f32.mrb[0].mxu0
        %v2851 = vadd.f32 %v2738, %v2850
        %2852 = vmatprep.mubr.bf16.mxu0 0
        %2853 = vmatmul.mubr.bf16.gmra.mrb[0].mxu0 %v794
        %v2854 = vpop.f32.mrb[0].mxu0
        %v2855 = vadd.f32 %v2742, %v2854
        %v2856 = vpop.f32.mrb[0].mxu0
        %v2857 = vadd.f32 %v2744, %v2856
        %v2858 = vpop.f32.mrb[0].mxu0
        %v2859 = vadd.f32 %v2746, %v2858
        %v2860 = vpop.f32.mrb[0].mxu0
        %v2861 = vadd.f32 %v2748, %v2860
        %2862 = vmatprep.mubr.bf16.mxu0 0
        %2863 = vmatmul.mubr.bf16.gmra.mrb[0].mxu0 %v801
        %v2864 = vpop.f32.mrb[0].mxu0
        %v2865 = vadd.f32 %v2752, %v2864
        %v2866 = vpop.f32.mrb[0].mxu0
        %v2867 = vadd.f32 %v2754, %v2866
        %v2868 = vpop.f32.mrb[0].mxu0
        %v2869 = vadd.f32 %v2756, %v2868
        %v2870 = vpop.f32.mrb[0].mxu0
        %v2871 = vadd.f32 %v2758, %v2870
        %2872 = vmatprep.mubr.bf16.mxu0 0
        %2873 = vmatmul.mubr.bf16.gmra.mrb[0].mxu0 %v808
        %v2874 = vpop.f32.mrb[0].mxu0
        %v2875 = vadd.f32 %v2762, %v2874
        %v2876 = vpop.f32.mrb[0].mxu0
        %v2877 = vadd.f32 %v2764, %v2876
        %v2878 = vpop.f32.mrb[0].mxu0
        %v2879 = vadd.f32 %v2766, %v2878
        %v2880 = vpop.f32.mrb[0].mxu0
        %v2881 = vadd.f32 %v2768, %v2880
        %2882 = vmatprep.mubr.bf16.mxu0 0
        %2883 = vmatmul.mubr.bf16.gmra.mrb[0].mxu0 %v815
        %v2884 = vpop.f32.mrb[0].mxu0
        %v2885 = vadd.f32 %v2772, %v2884
        %v2886 = vpop.f32.mrb[0].mxu0
        %v2887 = vadd.f32 %v2774, %v2886
        %v2888 = vpop.f32.mrb[0].mxu0
        %v2889 = vadd.f32 %v2776, %v2888
        %v2890 = vpop.f32.mrb[0].mxu0
        %v2891 = vadd.f32 %v2778, %v2890
        %2892 = vmatprep.mubr.bf16.mxu0 0
        %2893 = vmatmul.mubr.bf16.gmra.mrb[0].mxu0 %v822
        %v2894 = vpop.f32.mrb[0].mxu0
        %v2895 = vadd.f32 %v2782, %v2894
        %v2896 = vpop.f32.mrb[0].mxu0
        %v2897 = vadd.f32 %v2784, %v2896
        %v2898 = vpop.f32.mrb[0].mxu0
        %v2899 = vadd.f32 %v2786, %v2898
        %v2900 = vpop.f32.mrb[0].mxu0
        %v2901 = vadd.f32 %v2788, %v2900
        %2902 = vdwg.mxu0
        %v2903 = vld [vmem:[#allocation10] ss:$8 sm:$0xf]
        %s2904 = scalar_lea.vmem [#allocation10], 1
        %v2905 = vld [vmem:[%s2904] ss:$8 sm:$0xf]
        %v2907 = vlaneseq
        %v2908 = vshrl.u32 %v2907, 7
        %v2909 = vsub.s32 0, %v2908
        %v2910 = vrot.slane %v2903, %v2909
        %v2911 = vlaneseq
        %v2912 = vshrl.u32 %v2911, 7
        %v2913 = vsub.s32 1, %v2912
        %v2914 = vrot.slane %v2903, %v2913
        %v2915 = vlaneseq
        %v2916 = vshrl.u32 %v2915, 7
        %v2917 = vsub.s32 2, %v2916
        %v2918 = vrot.slane %v2903, %v2917
        %v2919 = vlaneseq
        %v2920 = vshrl.u32 %v2919, 7
        %v2921 = vsub.s32 3, %v2920
        %v2922 = vrot.slane %v2903, %v2921
        %v2927 = vmul.f32 %v2373, %v2910
        %v2928 = vmul.f32 %v2375, %v2914
        %v2929 = vmul.f32 %v2825, %v2918
        %v2930 = vmul.f32 %v2827, %v2922
        %v2931 = vmul.f32 %v2377, %v2910
        %v2932 = vmul.f32 %v2379, %v2914
        %v2933 = vmul.f32 %v2829, %v2918
        %v2934 = vmul.f32 %v2831, %v2922
        %v2935 = vmul.f32 %v2383, %v2910
        %v2936 = vmul.f32 %v2385, %v2914
        %v2937 = vmul.f32 %v2835, %v2918
        %v2938 = vmul.f32 %v2837, %v2922
        %v2939 = vmul.f32 %v2387, %v2910
        %v2940 = vmul.f32 %v2389, %v2914
        %v2941 = vmul.f32 %v2839, %v2918
        %v2942 = vmul.f32 %v2841, %v2922
        %v2943 = vmul.f32 %v2393, %v2910
        %v2944 = vmul.f32 %v2395, %v2914
        %v2945 = vmul.f32 %v2845, %v2918
        %v2946 = vmul.f32 %v2847, %v2922
        %v2947 = vmul.f32 %v2397, %v2910
        %v2948 = vmul.f32 %v2399, %v2914
        %v2949 = vmul.f32 %v2849, %v2918
        %v2950 = vmul.f32 %v2851, %v2922
        %v2951 = vmul.f32 %v2403, %v2910
        %v2952 = vmul.f32 %v2405, %v2914
        %v2953 = vmul.f32 %v2855, %v2918
        %v2954 = vmul.f32 %v2857, %v2922
        %v2955 = vmul.f32 %v2407, %v2910
        %v2956 = vmul.f32 %v2409, %v2914
        %v2957 = vmul.f32 %v2859, %v2918
        %v2958 = vmul.f32 %v2861, %v2922
        %v2959 = vmul.f32 %v2413, %v2910
        %v2960 = vmul.f32 %v2415, %v2914
        %v2961 = vmul.f32 %v2865, %v2918
        %v2962 = vmul.f32 %v2867, %v2922
        %v2963 = vmul.f32 %v2417, %v2910
        %v2964 = vmul.f32 %v2419, %v2914
        %v2965 = vmul.f32 %v2869, %v2918
        %v2966 = vmul.f32 %v2871, %v2922
        %v2967 = vmul.f32 %v2423, %v2910
        %v2968 = vmul.f32 %v2425, %v2914
        %v2969 = vmul.f32 %v2875, %v2918
        %v2970 = vmul.f32 %v2877, %v2922
        %v2971 = vmul.f32 %v2427, %v2910
        %v2972 = vmul.f32 %v2429, %v2914
        %v2973 = vmul.f32 %v2879, %v2918
        %v2974 = vmul.f32 %v2881, %v2922
        %v2975 = vmul.f32 %v2433, %v2910
        %v2976 = vmul.f32 %v2435, %v2914
        %v2977 = vmul.f32 %v2885, %v2918
        %v2978 = vmul.f32 %v2887, %v2922
        %v2979 = vmul.f32 %v2437, %v2910
        %v2980 = vmul.f32 %v2439, %v2914
        %v2981 = vmul.f32 %v2889, %v2918
        %v2982 = vmul.f32 %v2891, %v2922
        %v2983 = vmul.f32 %v2443, %v2910
        %v2984 = vmul.f32 %v2445, %v2914
        %v2985 = vmul.f32 %v2895, %v2918
        %v2986 = vmul.f32 %v2897, %v2922
        %v2987 = vmul.f32 %v2447, %v2910
        %v2988 = vmul.f32 %v2449, %v2914
        %v2989 = vmul.f32 %v2899, %v2918
        %v2990 = vmul.f32 %v2901, %v2922
        %v2992 = vlaneseq
        %v2993 = vshrl.u32 %v2992, 7
        %v2994 = vsub.s32 0, %v2993
        %v2995 = vrot.slane %v2905, %v2994
        %v2996 = vlaneseq
        %v2997 = vshrl.u32 %v2996, 7
        %v2998 = vsub.s32 1, %v2997
        %v2999 = vrot.slane %v2905, %v2998
        %v3000 = vlaneseq
        %v3001 = vshrl.u32 %v3000, 7
        %v3002 = vsub.s32 2, %v3001
        %v3003 = vrot.slane %v2905, %v3002
        %v3004 = vlaneseq
        %v3005 = vshrl.u32 %v3004, 7
        %v3006 = vsub.s32 3, %v3005
        %v3007 = vrot.slane %v2905, %v3006
        %v3012 = vadd.f32 %v2927, %v2995
        %v3013 = vadd.f32 %v2928, %v2999
        %v3014 = vadd.f32 %v2929, %v3003
        %v3015 = vadd.f32 %v2930, %v3007
        %v3016 = vadd.f32 %v2931, %v2995
        %v3017 = vadd.f32 %v2932, %v2999
        %v3018 = vadd.f32 %v2933, %v3003
        %v3019 = vadd.f32 %v2934, %v3007
        %v3020 = vadd.f32 %v2935, %v2995
        %v3021 = vadd.f32 %v2936, %v2999
        %v3022 = vadd.f32 %v2937, %v3003
        %v3023 = vadd.f32 %v2938, %v3007
        %v3024 = vadd.f32 %v2939, %v2995
        %v3025 = vadd.f32 %v2940, %v2999
        %v3026 = vadd.f32 %v2941, %v3003
        %v3027 = vadd.f32 %v2942, %v3007
        %v3028 = vadd.f32 %v2943, %v2995
        %v3029 = vadd.f32 %v2944, %v2999
        %v3030 = vadd.f32 %v2945, %v3003
        %v3031 = vadd.f32 %v2946, %v3007
        %v3032 = vadd.f32 %v2947, %v2995
        %v3033 = vadd.f32 %v2948, %v2999
        %v3034 = vadd.f32 %v2949, %v3003
        %v3035 = vadd.f32 %v2950, %v3007
        %v3036 = vadd.f32 %v2951, %v2995
        %v3037 = vadd.f32 %v2952, %v2999
        %v3038 = vadd.f32 %v2953, %v3003
        %v3039 = vadd.f32 %v2954, %v3007
        %v3040 = vadd.f32 %v2955, %v2995
        %v3041 = vadd.f32 %v2956, %v2999
        %v3042 = vadd.f32 %v2957, %v3003
        %v3043 = vadd.f32 %v2958, %v3007
        %v3044 = vadd.f32 %v2959, %v2995
        %v3045 = vadd.f32 %v2960, %v2999
        %v3046 = vadd.f32 %v2961, %v3003
        %v3047 = vadd.f32 %v2962, %v3007
        %v3048 = vadd.f32 %v2963, %v2995
        %v3049 = vadd.f32 %v2964, %v2999
        %v3050 = vadd.f32 %v2965, %v3003
        %v3051 = vadd.f32 %v2966, %v3007
        %v3052 = vadd.f32 %v2967, %v2995
        %v3053 = vadd.f32 %v2968, %v2999
        %v3054 = vadd.f32 %v2969, %v3003
        %v3055 = vadd.f32 %v2970, %v3007
        %v3056 = vadd.f32 %v2971, %v2995
        %v3057 = vadd.f32 %v2972, %v2999
        %v3058 = vadd.f32 %v2973, %v3003
        %v3059 = vadd.f32 %v2974, %v3007
        %v3060 = vadd.f32 %v2975, %v2995
        %v3061 = vadd.f32 %v2976, %v2999
        %v3062 = vadd.f32 %v2977, %v3003
        %v3063 = vadd.f32 %v2978, %v3007
        %v3064 = vadd.f32 %v2979, %v2995
        %v3065 = vadd.f32 %v2980, %v2999
        %v3066 = vadd.f32 %v2981, %v3003
        %v3067 = vadd.f32 %v2982, %v3007
        %v3068 = vadd.f32 %v2983, %v2995
        %v3069 = vadd.f32 %v2984, %v2999
        %v3070 = vadd.f32 %v2985, %v3003
        %v3071 = vadd.f32 %v2986, %v3007
        %v3072 = vadd.f32 %v2987, %v2995
        %v3073 = vadd.f32 %v2988, %v2999
        %v3074 = vadd.f32 %v2989, %v3003
        %v3075 = vadd.f32 %v2990, %v3007
        %v3076 = vmax.f32 %v3012, 0.0
        %v3077 = vmax.f32 %v3013, 0.0
        %v3078 = vmax.f32 %v3014, 0.0
        %v3079 = vmax.f32 %v3015, 0.0
        %v3080 = vmax.f32 %v3016, 0.0
        %v3081 = vmax.f32 %v3017, 0.0
        %v3082 = vmax.f32 %v3018, 0.0
        %v3083 = vmax.f32 %v3019, 0.0
        %v3084 = vmax.f32 %v3020, 0.0
        %v3085 = vmax.f32 %v3021, 0.0
        %v3086 = vmax.f32 %v3022, 0.0
        %v3087 = vmax.f32 %v3023, 0.0
        %v3088 = vmax.f32 %v3024, 0.0
        %v3089 = vmax.f32 %v3025, 0.0
        %v3090 = vmax.f32 %v3026, 0.0
        %v3091 = vmax.f32 %v3027, 0.0
        %v3092 = vmax.f32 %v3028, 0.0
        %v3093 = vmax.f32 %v3029, 0.0
        %v3094 = vmax.f32 %v3030, 0.0
        %v3095 = vmax.f32 %v3031, 0.0
        %v3096 = vmax.f32 %v3032, 0.0
        %v3097 = vmax.f32 %v3033, 0.0
        %v3098 = vmax.f32 %v3034, 0.0
        %v3099 = vmax.f32 %v3035, 0.0
        %v3100 = vmax.f32 %v3036, 0.0
        %v3101 = vmax.f32 %v3037, 0.0
        %v3102 = vmax.f32 %v3038, 0.0
        %v3103 = vmax.f32 %v3039, 0.0
        %v3104 = vmax.f32 %v3040, 0.0
        %v3105 = vmax.f32 %v3041, 0.0
        %v3106 = vmax.f32 %v3042, 0.0
        %v3107 = vmax.f32 %v3043, 0.0
        %v3108 = vmax.f32 %v3044, 0.0
        %v3109 = vmax.f32 %v3045, 0.0
        %v3110 = vmax.f32 %v3046, 0.0
        %v3111 = vmax.f32 %v3047, 0.0
        %v3112 = vmax.f32 %v3048, 0.0
        %v3113 = vmax.f32 %v3049, 0.0
        %v3114 = vmax.f32 %v3050, 0.0
        %v3115 = vmax.f32 %v3051, 0.0
        %v3116 = vmax.f32 %v3052, 0.0
        %v3117 = vmax.f32 %v3053, 0.0
        %v3118 = vmax.f32 %v3054, 0.0
        %v3119 = vmax.f32 %v3055, 0.0
        %v3120 = vmax.f32 %v3056, 0.0
        %v3121 = vmax.f32 %v3057, 0.0
        %v3122 = vmax.f32 %v3058, 0.0
        %v3123 = vmax.f32 %v3059, 0.0
        %v3124 = vmax.f32 %v3060, 0.0
        %v3125 = vmax.f32 %v3061, 0.0
        %v3126 = vmax.f32 %v3062, 0.0
        %v3127 = vmax.f32 %v3063, 0.0
        %v3128 = vmax.f32 %v3064, 0.0
        %v3129 = vmax.f32 %v3065, 0.0
        %v3130 = vmax.f32 %v3066, 0.0
        %v3131 = vmax.f32 %v3067, 0.0
        %v3132 = vmax.f32 %v3068, 0.0
        %v3133 = vmax.f32 %v3069, 0.0
        %v3134 = vmax.f32 %v3070, 0.0
        %v3135 = vmax.f32 %v3071, 0.0
        %v3136 = vmax.f32 %v3072, 0.0
        %v3137 = vmax.f32 %v3073, 0.0
        %v3138 = vmax.f32 %v3074, 0.0
        %v3139 = vmax.f32 %v3075, 0.0
        %v3140 = vpack.c.bf16 %v3080, %v3076
        %v3141 = vpack.c.bf16 %v3081, %v3077
        %v3142 = vpack.c.bf16 %v3082, %v3078
        %v3143 = vpack.c.bf16 %v3083, %v3079
        %v3144 = vpack.c.bf16 %v3088, %v3084
        %v3145 = vpack.c.bf16 %v3089, %v3085
        %v3146 = vpack.c.bf16 %v3090, %v3086
        %v3147 = vpack.c.bf16 %v3091, %v3087
        %v3148 = vpack.c.bf16 %v3096, %v3092
        %v3149 = vpack.c.bf16 %v3097, %v3093
        %v3150 = vpack.c.bf16 %v3098, %v3094
        %v3151 = vpack.c.bf16 %v3099, %v3095
        %v3152 = vpack.c.bf16 %v3104, %v3100
        %v3153 = vpack.c.bf16 %v3105, %v3101
        %v3154 = vpack.c.bf16 %v3106, %v3102
        %v3155 = vpack.c.bf16 %v3107, %v3103
        %v3156 = vpack.c.bf16 %v3112, %v3108
        %v3157 = vpack.c.bf16 %v3113, %v3109
        %v3158 = vpack.c.bf16 %v3114, %v3110
        %v3159 = vpack.c.bf16 %v3115, %v3111
        %v3160 = vpack.c.bf16 %v3120, %v3116
        %v3161 = vpack.c.bf16 %v3121, %v3117
        %v3162 = vpack.c.bf16 %v3122, %v3118
        %v3163 = vpack.c.bf16 %v3123, %v3119
        %v3164 = vpack.c.bf16 %v3128, %v3124
        %v3165 = vpack.c.bf16 %v3129, %v3125
        %v3166 = vpack.c.bf16 %v3130, %v3126
        %v3167 = vpack.c.bf16 %v3131, %v3127
        %v3168 = vpack.c.bf16 %v3136, %v3132
        %v3169 = vpack.c.bf16 %v3137, %v3133
        %v3170 = vpack.c.bf16 %v3138, %v3134
        %v3171 = vpack.c.bf16 %v3139, %v3135
        %v3172 = vld [vmem:[#allocation7] sm:$0xff]
        %v3173 = vld [vmem:[#allocation7 + $0x8] sm:$0xff]
        %v3174 = vld [vmem:[#allocation7 + $0x10] sm:$0xff]
        %v3175 = vld [vmem:[#allocation7 + $0x18] sm:$0xff]
        %v3176 = vld [vmem:[#allocation7 + $0x20] sm:$0xff]
        %v3177 = vld [vmem:[#allocation7 + $0x28] sm:$0xff]
        %v3178 = vld [vmem:[#allocation7 + $0x30] sm:$0xff]
        %v3179 = vld [vmem:[#allocation7 + $0x38] sm:$0xff]
        %v3180 = vld [vmem:[#allocation7 + $0x40] sm:$0xff]
        %v3181 = vld [vmem:[#allocation7 + $0x48] sm:$0xff]
        %v3182 = vld [vmem:[#allocation7 + $0x50] sm:$0xff]
        %v3183 = vld [vmem:[#allocation7 + $0x58] sm:$0xff]
        %v3184 = vld [vmem:[#allocation7 + $0x60] sm:$0xff]
        %v3185 = vld [vmem:[#allocation7 + $0x68] sm:$0xff]
        %v3186 = vld [vmem:[#allocation7 + $0x70] sm:$0xff]
        %v3187 = vld [vmem:[#allocation7 + $0x78] sm:$0xff]
        %v3188 = vld [vmem:[#allocation7 + $0x80] sm:$0xff]
        %v3189 = vld [vmem:[#allocation7 + $0x88] sm:$0xff]
        %v3190 = vld [vmem:[#allocation7 + $0x90] sm:$0xff]
        %v3191 = vld [vmem:[#allocation7 + $0x98] sm:$0xff]
        %v3192 = vld [vmem:[#allocation7 + $0xa0] sm:$0xff]
        %v3193 = vld [vmem:[#allocation7 + $0xa8] sm:$0xff]
        %v3194 = vld [vmem:[#allocation7 + $0xb0] sm:$0xff]
        %v3195 = vld [vmem:[#allocation7 + $0xb8] sm:$0xff]
        %v3196 = vld [vmem:[#allocation7 + $0xc0] sm:$0xff]
        %v3197 = vld [vmem:[#allocation7 + $0xc8] sm:$0xff]
        %v3198 = vld [vmem:[#allocation7 + $0xd0] sm:$0xff]
        %v3199 = vld [vmem:[#allocation7 + $0xd8] sm:$0xff]
        %v3200 = vld [vmem:[#allocation7 + $0xe0] sm:$0xff]
        %v3201 = vld [vmem:[#allocation7 + $0xe8] sm:$0xff]
        %v3202 = vld [vmem:[#allocation7 + $0xf0] sm:$0xff]
        %v3203 = vld [vmem:[#allocation7 + $0xf8] sm:$0xff]
        %v3204 = vld [vmem:[#allocation7 + $0x100] sm:$0xff]
        %v3205 = vld [vmem:[#allocation7 + $0x108] sm:$0xff]
        %v3206 = vld [vmem:[#allocation7 + $0x110] sm:$0xff]
        %v3207 = vld [vmem:[#allocation7 + $0x118] sm:$0xff]
        %v3208 = vld [vmem:[#allocation7 + $0x120] sm:$0xff]
        %v3209 = vld [vmem:[#allocation7 + $0x128] sm:$0xff]
        %v3210 = vld [vmem:[#allocation7 + $0x130] sm:$0xff]
        %v3211 = vld [vmem:[#allocation7 + $0x138] sm:$0xff]
        %v3212 = vld [vmem:[#allocation7 + $0x140] sm:$0xff]
        %v3213 = vld [vmem:[#allocation7 + $0x148] sm:$0xff]
        %v3214 = vld [vmem:[#allocation7 + $0x150] sm:$0xff]
        %v3215 = vld [vmem:[#allocation7 + $0x158] sm:$0xff]
        %v3216 = vld [vmem:[#allocation7 + $0x160] sm:$0xff]
        %v3217 = vld [vmem:[#allocation7 + $0x168] sm:$0xff]
        %v3218 = vld [vmem:[#allocation7 + $0x170] sm:$0xff]
        %v3219 = vld [vmem:[#allocation7 + $0x178] sm:$0xff]
        %v3220 = vld [vmem:[#allocation7 + $0x180] sm:$0xff]
        %v3221 = vld [vmem:[#allocation7 + $0x188] sm:$0xff]
        %v3222 = vld [vmem:[#allocation7 + $0x190] sm:$0xff]
        %v3223 = vld [vmem:[#allocation7 + $0x198] sm:$0xff]
        %v3224 = vld [vmem:[#allocation7 + $0x1a0] sm:$0xff]
        %v3225 = vld [vmem:[#allocation7 + $0x1a8] sm:$0xff]
        %v3226 = vld [vmem:[#allocation7 + $0x1b0] sm:$0xff]
        %v3227 = vld [vmem:[#allocation7 + $0x1b8] sm:$0xff]
        %v3228 = vld [vmem:[#allocation7 + $0x1c0] sm:$0xff]
        %v3229 = vld [vmem:[#allocation7 + $0x1c8] sm:$0xff]
        %v3230 = vld [vmem:[#allocation7 + $0x1d0] sm:$0xff]
        %v3231 = vld [vmem:[#allocation7 + $0x1d8] sm:$0xff]
        %v3232 = vld [vmem:[#allocation7 + $0x1e0] sm:$0xff]
        %v3233 = vld [vmem:[#allocation7 + $0x1e8] sm:$0xff]
        %v3234 = vld [vmem:[#allocation7 + $0x1f0] sm:$0xff]
        %v3235 = vld [vmem:[#allocation7 + $0x1f8] sm:$0xff]
        %v3236 = vunpack.c.l.s8.bf16 %v3172
        %v3237 = vunpack.c.l.s8.bf16 %v3173
        %v3238 = vunpack.c.l.s8.bf16 %v3174
        %v3239 = vunpack.c.l.s8.bf16 %v3175
        %v3240 = vunpack.c.h.s8.bf16 %v3172
        %v3241 = vunpack.c.h.s8.bf16 %v3173
        %v3242 = vunpack.c.h.s8.bf16 %v3174
        %v3243 = vunpack.c.h.s8.bf16 %v3175
        %v3244 = vunpack.c.l.s8.bf16 %v3176
        %v3245 = vunpack.c.l.s8.bf16 %v3177
        %v3246 = vunpack.c.l.s8.bf16 %v3178
        %v3247 = vunpack.c.l.s8.bf16 %v3179
        %v3248 = vunpack.c.h.s8.bf16 %v3176
        %v3249 = vunpack.c.h.s8.bf16 %v3177
        %v3250 = vunpack.c.h.s8.bf16 %v3178
        %v3251 = vunpack.c.h.s8.bf16 %v3179
        %v3252 = vunpack.c.l.s8.bf16 %v3180
        %v3253 = vunpack.c.l.s8.bf16 %v3181
        %v3254 = vunpack.c.l.s8.bf16 %v3182
        %v3255 = vunpack.c.l.s8.bf16 %v3183
        %v3256 = vunpack.c.h.s8.bf16 %v3180
        %v3257 = vunpack.c.h.s8.bf16 %v3181
        %v3258 = vunpack.c.h.s8.bf16 %v3182
        %v3259 = vunpack.c.h.s8.bf16 %v3183
        %v3260 = vunpack.c.l.s8.bf16 %v3184
        %v3261 = vunpack.c.l.s8.bf16 %v3185
        %v3262 = vunpack.c.l.s8.bf16 %v3186
        %v3263 = vunpack.c.l.s8.bf16 %v3187
        %v3264 = vunpack.c.h.s8.bf16 %v3184
        %v3265 = vunpack.c.h.s8.bf16 %v3185
        %v3266 = vunpack.c.h.s8.bf16 %v3186
        %v3267 = vunpack.c.h.s8.bf16 %v3187
        %v3268 = vunpack.c.l.s8.bf16 %v3188
        %v3269 = vunpack.c.l.s8.bf16 %v3189
        %v3270 = vunpack.c.l.s8.bf16 %v3190
        %v3271 = vunpack.c.l.s8.bf16 %v3191
        %v3272 = vunpack.c.h.s8.bf16 %v3188
        %v3273 = vunpack.c.h.s8.bf16 %v3189
        %v3274 = vunpack.c.h.s8.bf16 %v3190
        %v3275 = vunpack.c.h.s8.bf16 %v3191
        %v3276 = vunpack.c.l.s8.bf16 %v3192
        %v3277 = vunpack.c.l.s8.bf16 %v3193
        %v3278 = vunpack.c.l.s8.bf16 %v3194
        %v3279 = vunpack.c.l.s8.bf16 %v3195
        %v3280 = vunpack.c.h.s8.bf16 %v3192
        %v3281 = vunpack.c.h.s8.bf16 %v3193
        %v3282 = vunpack.c.h.s8.bf16 %v3194
        %v3283 = vunpack.c.h.s8.bf16 %v3195
        %v3284 = vunpack.c.l.s8.bf16 %v3196
        %v3285 = vunpack.c.l.s8.bf16 %v3197
        %v3286 = vunpack.c.l.s8.bf16 %v3198
        %v3287 = vunpack.c.l.s8.bf16 %v3199
        %v3288 = vunpack.c.h.s8.bf16 %v3196
        %v3289 = vunpack.c.h.s8.bf16 %v3197
        %v3290 = vunpack.c.h.s8.bf16 %v3198
        %v3291 = vunpack.c.h.s8.bf16 %v3199
        %v3292 = vunpack.c.l.s8.bf16 %v3200
        %v3293 = vunpack.c.l.s8.bf16 %v3201
        %v3294 = vunpack.c.l.s8.bf16 %v3202
        %v3295 = vunpack.c.l.s8.bf16 %v3203
        %v3296 = vunpack.c.h.s8.bf16 %v3200
        %v3297 = vunpack.c.h.s8.bf16 %v3201
        %v3298 = vunpack.c.h.s8.bf16 %v3202
        %v3299 = vunpack.c.h.s8.bf16 %v3203
        %v3300 = vunpack.c.l.s8.bf16 %v3204
        %v3301 = vunpack.c.l.s8.bf16 %v3205
        %v3302 = vunpack.c.l.s8.bf16 %v3206
        %v3303 = vunpack.c.l.s8.bf16 %v3207
        %v3304 = vunpack.c.h.s8.bf16 %v3204
        %v3305 = vunpack.c.h.s8.bf16 %v3205
        %v3306 = vunpack.c.h.s8.bf16 %v3206
        %v3307 = vunpack.c.h.s8.bf16 %v3207
        %v3308 = vunpack.c.l.s8.bf16 %v3208
        %v3309 = vunpack.c.l.s8.bf16 %v3209
        %v3310 = vunpack.c.l.s8.bf16 %v3210
        %v3311 = vunpack.c.l.s8.bf16 %v3211
        %v3312 = vunpack.c.h.s8.bf16 %v3208
        %v3313 = vunpack.c.h.s8.bf16 %v3209
        %v3314 = vunpack.c.h.s8.bf16 %v3210
        %v3315 = vunpack.c.h.s8.bf16 %v3211
        %v3316 = vunpack.c.l.s8.bf16 %v3212
        %v3317 = vunpack.c.l.s8.bf16 %v3213
        %v3318 = vunpack.c.l.s8.bf16 %v3214
        %v3319 = vunpack.c.l.s8.bf16 %v3215
        %v3320 = vunpack.c.h.s8.bf16 %v3212
        %v3321 = vunpack.c.h.s8.bf16 %v3213
        %v3322 = vunpack.c.h.s8.bf16 %v3214
        %v3323 = vunpack.c.h.s8.bf16 %v3215
        %v3324 = vunpack.c.l.s8.bf16 %v3216
        %v3325 = vunpack.c.l.s8.bf16 %v3217
        %v3326 = vunpack.c.l.s8.bf16 %v3218
        %v3327 = vunpack.c.l.s8.bf16 %v3219
        %v3328 = vunpack.c.h.s8.bf16 %v3216
        %v3329 = vunpack.c.h.s8.bf16 %v3217
        %v3330 = vunpack.c.h.s8.bf16 %v3218
        %v3331 = vunpack.c.h.s8.bf16 %v3219
        %v3332 = vunpack.c.l.s8.bf16 %v3220
        %v3333 = vunpack.c.l.s8.bf16 %v3221
        %v3334 = vunpack.c.l.s8.bf16 %v3222
        %v3335 = vunpack.c.l.s8.bf16 %v3223
        %v3336 = vunpack.c.h.s8.bf16 %v3220
        %v3337 = vunpack.c.h.s8.bf16 %v3221
        %v3338 = vunpack.c.h.s8.bf16 %v3222
        %v3339 = vunpack.c.h.s8.bf16 %v3223
        %v3340 = vunpack.c.l.s8.bf16 %v3224
        %v3341 = vunpack.c.l.s8.bf16 %v3225
        %v3342 = vunpack.c.l.s8.bf16 %v3226
        %v3343 = vunpack.c.l.s8.bf16 %v3227
        %v3344 = vunpack.c.h.s8.bf16 %v3224
        %v3345 = vunpack.c.h.s8.bf16 %v3225
        %v3346 = vunpack.c.h.s8.bf16 %v3226
        %v3347 = vunpack.c.h.s8.bf16 %v3227
        %v3348 = vunpack.c.l.s8.bf16 %v3228
        %v3349 = vunpack.c.l.s8.bf16 %v3229
        %v3350 = vunpack.c.l.s8.bf16 %v3230
        %v3351 = vunpack.c.l.s8.bf16 %v3231
        %v3352 = vunpack.c.h.s8.bf16 %v3228
        %v3353 = vunpack.c.h.s8.bf16 %v3229
        %v3354 = vunpack.c.h.s8.bf16 %v3230
        %v3355 = vunpack.c.h.s8.bf16 %v3231
        %v3356 = vunpack.c.l.s8.bf16 %v3232
        %v3357 = vunpack.c.l.s8.bf16 %v3233
        %v3358 = vunpack.c.l.s8.bf16 %v3234
        %v3359 = vunpack.c.l.s8.bf16 %v3235
        %v3360 = vunpack.c.h.s8.bf16 %v3232
        %v3361 = vunpack.c.h.s8.bf16 %v3233
        %v3362 = vunpack.c.h.s8.bf16 %v3234
        %v3363 = vunpack.c.h.s8.bf16 %v3235
        %3364 = vmatprep.subr.bf16.mxu0 %v3237
        %3365 = vmatpush1.bf16.msra.mxu0 %v3236
        %3366 = vmatprep.subr.bf16.mxu0 %v3241
        %3367 = vmatpush1.bf16.msra.mxu0 %v3240
        %3368 = vmatprep.subr.bf16.mxu0 %v3245
        %3369 = vmatpush1.bf16.msra.mxu0 %v3244
        %3370 = vmatprep.subr.bf16.mxu0 %v3249
        %3371 = vmatpush1.bf16.msra.mxu0 %v3248
        %3372 = vmatprep.subr.bf16.mxu0 %v3253
        %3373 = vmatpush1.bf16.msra.mxu0 %v3252
        %3374 = vmatprep.subr.bf16.mxu0 %v3257
        %3375 = vmatpush1.bf16.msra.mxu0 %v3256
        %3376 = vmatprep.subr.bf16.mxu0 %v3261
        %3377 = vmatpush1.bf16.msra.mxu0 %v3260
        %3378 = vmatprep.subr.bf16.mxu0 %v3265
        %3379 = vmatpush1.bf16.msra.mxu0 %v3264
        %3380 = vmatprep.subr.bf16.mxu0 %v3269
        %3381 = vmatpush1.bf16.msra.mxu0 %v3268
        %3382 = vmatprep.subr.bf16.mxu0 %v3273
        %3383 = vmatpush1.bf16.msra.mxu0 %v3272
        %3384 = vmatprep.subr.bf16.mxu0 %v3277
        %3385 = vmatpush1.bf16.msra.mxu0 %v3276
        %3386 = vmatprep.subr.bf16.mxu0 %v3281
        %3387 = vmatpush1.bf16.msra.mxu0 %v3280
        %3388 = vmatprep.subr.bf16.mxu0 %v3285
        %3389 = vmatpush1.bf16.msra.mxu0 %v3284
        %3390 = vmatprep.subr.bf16.mxu0 %v3289
        %3391 = vmatpush1.bf16.msra.mxu0 %v3288
        %3392 = vmatprep.subr.bf16.mxu0 %v3293
        %3393 = vmatpush1.bf16.msra.mxu0 %v3292
        %3394 = vmatprep.subr.bf16.mxu0 %v3297
        %3395 = vmatpush1.bf16.msra.mxu0 %v3296
        %3396 = vmatprep.mubr.bf16.mxu0 %v3141
        %3397 = vmatmul.mubr.bf16.gmra.mrb[0].mxu0 %v3140
        %v3398 = vpop.f32.mrb[0].mxu0
        %v3399 = vadd.f32 0.0, %v3398
        %v3400 = vpop.f32.mrb[0].mxu0
        %v3401 = vadd.f32 0.0, %v3400
        %v3402 = vpop.f32.mrb[0].mxu0
        %v3403 = vadd.f32 0.0, %v3402
        %v3404 = vpop.f32.mrb[0].mxu0
        %v3405 = vadd.f32 0.0, %v3404
        %3406 = vmatprep.mubr.bf16.mxu0 %v3145
        %3407 = vmatmul.mubr.bf16.gmra.mrb[0].mxu0 %v3144
        %v3408 = vpop.f32.mrb[0].mxu0
        %v3409 = vadd.f32 0.0, %v3408
        %v3410 = vpop.f32.mrb[0].mxu0
        %v3411 = vadd.f32 0.0, %v3410
        %v3412 = vpop.f32.mrb[0].mxu0
        %v3413 = vadd.f32 0.0, %v3412
        %v3414 = vpop.f32.mrb[0].mxu0
        %v3415 = vadd.f32 0.0, %v3414
        %3416 = vmatprep.mubr.bf16.mxu0 %v3149
        %3417 = vmatmul.mubr.bf16.gmra.mrb[0].mxu0 %v3148
        %v3418 = vpop.f32.mrb[0].mxu0
        %v3419 = vadd.f32 0.0, %v3418
        %v3420 = vpop.f32.mrb[0].mxu0
        %v3421 = vadd.f32 0.0, %v3420
        %v3422 = vpop.f32.mrb[0].mxu0
        %v3423 = vadd.f32 0.0, %v3422
        %v3424 = vpop.f32.mrb[0].mxu0
        %v3425 = vadd.f32 0.0, %v3424
        %3426 = vmatprep.mubr.bf16.mxu0 %v3153
        %3427 = vmatmul.mubr.bf16.gmra.mrb[0].mxu0 %v3152
        %v3428 = vpop.f32.mrb[0].mxu0
        %v3429 = vadd.f32 0.0, %v3428
        %v3430 = vpop.f32.mrb[0].mxu0
        %v3431 = vadd.f32 0.0, %v3430
        %v3432 = vpop.f32.mrb[0].mxu0
        %v3433 = vadd.f32 0.0, %v3432
        %v3434 = vpop.f32.mrb[0].mxu0
        %v3435 = vadd.f32 0.0, %v3434
        %3436 = vmatprep.mubr.bf16.mxu0 %v3157
        %3437 = vmatmul.mubr.bf16.gmra.mrb[0].mxu0 %v3156
        %v3438 = vpop.f32.mrb[0].mxu0
        %v3439 = vadd.f32 0.0, %v3438
        %v3440 = vpop.f32.mrb[0].mxu0
        %v3441 = vadd.f32 0.0, %v3440
        %v3442 = vpop.f32.mrb[0].mxu0
        %v3443 = vadd.f32 0.0, %v3442
        %v3444 = vpop.f32.mrb[0].mxu0
        %v3445 = vadd.f32 0.0, %v3444
        %3446 = vmatprep.mubr.bf16.mxu0 %v3161
        %3447 = vmatmul.mubr.bf16.gmra.mrb[0].mxu0 %v3160
        %v3448 = vpop.f32.mrb[0].mxu0
        %v3449 = vadd.f32 0.0, %v3448
        %v3450 = vpop.f32.mrb[0].mxu0
        %v3451 = vadd.f32 0.0, %v3450
        %v3452 = vpop.f32.mrb[0].mxu0
        %v3453 = vadd.f32 0.0, %v3452
        %v3454 = vpop.f32.mrb[0].mxu0
        %v3455 = vadd.f32 0.0, %v3454
        %3456 = vmatprep.mubr.bf16.mxu0 %v3165
        %3457 = vmatmul.mubr.bf16.gmra.mrb[0].mxu0 %v3164
        %v3458 = vpop.f32.mrb[0].mxu0
        %v3459 = vadd.f32 0.0, %v3458
        %v3460 = vpop.f32.mrb[0].mxu0
        %v3461 = vadd.f32 0.0, %v3460
        %v3462 = vpop.f32.mrb[0].mxu0
        %v3463 = vadd.f32 0.0, %v3462
        %v3464 = vpop.f32.mrb[0].mxu0
        %v3465 = vadd.f32 0.0, %v3464
        %3466 = vmatprep.mubr.bf16.mxu0 %v3169
        %3467 = vmatmul.mubr.bf16.gmra.mrb[0].mxu0 %v3168
        %v3468 = vpop.f32.mrb[0].mxu0
        %v3469 = vadd.f32 0.0, %v3468
        %v3470 = vpop.f32.mrb[0].mxu0
        %v3471 = vadd.f32 0.0, %v3470
        %v3472 = vpop.f32.mrb[0].mxu0
        %v3473 = vadd.f32 0.0, %v3472
        %v3474 = vpop.f32.mrb[0].mxu0
        %v3475 = vadd.f32 0.0, %v3474
        %3476 = vdwg.mxu0
        %3477 = vmatprep.subr.bf16.mxu0 %v3301
        %3478 = vmatpush1.bf16.msra.mxu0 %v3300
        %3479 = vmatprep.subr.bf16.mxu0 %v3305
        %3480 = vmatpush1.bf16.msra.mxu0 %v3304
        %3481 = vmatprep.subr.bf16.mxu0 %v3309
        %3482 = vmatpush1.bf16.msra.mxu0 %v3308
        %3483 = vmatprep.subr.bf16.mxu0 %v3313
        %3484 = vmatpush1.bf16.msra.mxu0 %v3312
        %3485 = vmatprep.subr.bf16.mxu0 %v3317
        %3486 = vmatpush1.bf16.msra.mxu0 %v3316
        %3487 = vmatprep.subr.bf16.mxu0 %v3321
        %3488 = vmatpush1.bf16.msra.mxu0 %v3320
        %3489 = vmatprep.subr.bf16.mxu0 %v3325
        %3490 = vmatpush1.bf16.msra.mxu0 %v3324
        %3491 = vmatprep.subr.bf16.mxu0 %v3329
        %3492 = vmatpush1.bf16.msra.mxu0 %v3328
        %3493 = vmatprep.subr.bf16.mxu0 %v3333
        %3494 = vmatpush1.bf16.msra.mxu0 %v3332
        %3495 = vmatprep.subr.bf16.mxu0 %v3337
        %3496 = vmatpush1.bf16.msra.mxu0 %v3336
        %3497 = vmatprep.subr.bf16.mxu0 %v3341
        %3498 = vmatpush1.bf16.msra.mxu0 %v3340
        %3499 = vmatprep.subr.bf16.mxu0 %v3345
        %3500 = vmatpush1.bf16.msra.mxu0 %v3344
        %3501 = vmatprep.subr.bf16.mxu0 %v3349
        %3502 = vmatpush1.bf16.msra.mxu0 %v3348
        %3503 = vmatprep.subr.bf16.mxu0 %v3353
        %3504 = vmatpush1.bf16.msra.mxu0 %v3352
        %3505 = vmatprep.subr.bf16.mxu0 %v3357
        %3506 = vmatpush1.bf16.msra.mxu0 %v3356
        %3507 = vmatprep.subr.bf16.mxu0 %v3361
        %3508 = vmatpush1.bf16.msra.mxu0 %v3360
        %3509 = vmatprep.mubr.bf16.mxu0 %v3143
        %3510 = vmatmul.mubr.bf16.gmra.mrb[0].mxu0 %v3142
        %v3511 = vpop.f32.mrb[0].mxu0
        %v3512 = vadd.f32 %v3399, %v3511
        %v3513 = vpop.f32.mrb[0].mxu0
        %v3514 = vadd.f32 %v3401, %v3513
        %v3515 = vpop.f32.mrb[0].mxu0
        %v3516 = vadd.f32 %v3403, %v3515
        %v3517 = vpop.f32.mrb[0].mxu0
        %v3518 = vadd.f32 %v3405, %v3517
        %3519 = vmatprep.mubr.bf16.mxu0 %v3147
        %3520 = vmatmul.mubr.bf16.gmra.mrb[0].mxu0 %v3146
        %v3521 = vpop.f32.mrb[0].mxu0
        %v3522 = vadd.f32 %v3409, %v3521
        %v3523 = vpop.f32.mrb[0].mxu0
        %v3524 = vadd.f32 %v3411, %v3523
        %v3525 = vpop.f32.mrb[0].mxu0
        %v3526 = vadd.f32 %v3413, %v3525
        %v3527 = vpop.f32.mrb[0].mxu0
        %v3528 = vadd.f32 %v3415, %v3527
        %3529 = vmatprep.mubr.bf16.mxu0 %v3151
        %3530 = vmatmul.mubr.bf16.gmra.mrb[0].mxu0 %v3150
        %v3531 = vpop.f32.mrb[0].mxu0
        %v3532 = vadd.f32 %v3419, %v3531
        %v3533 = vpop.f32.mrb[0].mxu0
        %v3534 = vadd.f32 %v3421, %v3533
        %v3535 = vpop.f32.mrb[0].mxu0
        %v3536 = vadd.f32 %v3423, %v3535
        %v3537 = vpop.f32.mrb[0].mxu0
        %v3538 = vadd.f32 %v3425, %v3537
        %3539 = vmatprep.mubr.bf16.mxu0 %v3155
        %3540 = vmatmul.mubr.bf16.gmra.mrb[0].mxu0 %v3154
        %v3541 = vpop.f32.mrb[0].mxu0
        %v3542 = vadd.f32 %v3429, %v3541
        %v3543 = vpop.f32.mrb[0].mxu0
        %v3544 = vadd.f32 %v3431, %v3543
        %v3545 = vpop.f32.mrb[0].mxu0
        %v3546 = vadd.f32 %v3433, %v3545
        %v3547 = vpop.f32.mrb[0].mxu0
        %v3548 = vadd.f32 %v3435, %v3547
        %3549 = vmatprep.mubr.bf16.mxu0 %v3159
        %3550 = vmatmul.mubr.bf16.gmra.mrb[0].mxu0 %v3158
        %v3551 = vpop.f32.mrb[0].mxu0
        %v3552 = vadd.f32 %v3439, %v3551
        %v3553 = vpop.f32.mrb[0].mxu0
        %v3554 = vadd.f32 %v3441, %v3553
        %v3555 = vpop.f32.mrb[0].mxu0
        %v3556 = vadd.f32 %v3443, %v3555
        %v3557 = vpop.f32.mrb[0].mxu0
        %v3558 = vadd.f32 %v3445, %v3557
        %3559 = vmatprep.mubr.bf16.mxu0 %v3163
        %3560 = vmatmul.mubr.bf16.gmra.mrb[0].mxu0 %v3162
        %v3561 = vpop.f32.mrb[0].mxu0
        %v3562 = vadd.f32 %v3449, %v3561
        %v3563 = vpop.f32.mrb[0].mxu0
        %v3564 = vadd.f32 %v3451, %v3563
        %v3565 = vpop.f32.mrb[0].mxu0
        %v3566 = vadd.f32 %v3453, %v3565
        %v3567 = vpop.f32.mrb[0].mxu0
        %v3568 = vadd.f32 %v3455, %v3567
        %3569 = vmatprep.mubr.bf16.mxu0 %v3167
        %3570 = vmatmul.mubr.bf16.gmra.mrb[0].mxu0 %v3166
        %v3571 = vpop.f32.mrb[0].mxu0
        %v3572 = vadd.f32 %v3459, %v3571
        %v3573 = vpop.f32.mrb[0].mxu0
        %v3574 = vadd.f32 %v3461, %v3573
        %v3575 = vpop.f32.mrb[0].mxu0
        %v3576 = vadd.f32 %v3463, %v3575
        %v3577 = vpop.f32.mrb[0].mxu0
        %v3578 = vadd.f32 %v3465, %v3577
        %3579 = vmatprep.mubr.bf16.mxu0 %v3171
        %3580 = vmatmul.mubr.bf16.gmra.mrb[0].mxu0 %v3170
        %v3581 = vpop.f32.mrb[0].mxu0
        %v3582 = vadd.f32 %v3469, %v3581
        %v3583 = vpop.f32.mrb[0].mxu0
        %v3584 = vadd.f32 %v3471, %v3583
        %v3585 = vpop.f32.mrb[0].mxu0
        %v3586 = vadd.f32 %v3473, %v3585
        %v3587 = vpop.f32.mrb[0].mxu0
        %v3588 = vadd.f32 %v3475, %v3587
        %3589 = vdwg.mxu0
        %3590 = vmatprep.subr.bf16.mxu0 %v3239
        %3591 = vmatpush1.bf16.msra.mxu0 %v3238
        %3592 = vmatprep.subr.bf16.mxu0 %v3243
        %3593 = vmatpush1.bf16.msra.mxu0 %v3242
        %3594 = vmatprep.subr.bf16.mxu0 %v3247
        %3595 = vmatpush1.bf16.msra.mxu0 %v3246
        %3596 = vmatprep.subr.bf16.mxu0 %v3251
        %3597 = vmatpush1.bf16.msra.mxu0 %v3250
        %3598 = vmatprep.subr.bf16.mxu0 %v3255
        %3599 = vmatpush1.bf16.msra.mxu0 %v3254
        %3600 = vmatprep.subr.bf16.mxu0 %v3259
        %3601 = vmatpush1.bf16.msra.mxu0 %v3258
        %3602 = vmatprep.subr.bf16.mxu0 %v3263
        %3603 = vmatpush1.bf16.msra.mxu0 %v3262
        %3604 = vmatprep.subr.bf16.mxu0 %v3267
        %3605 = vmatpush1.bf16.msra.mxu0 %v3266
        %3606 = vmatprep.subr.bf16.mxu0 %v3271
        %3607 = vmatpush1.bf16.msra.mxu0 %v3270
        %3608 = vmatprep.subr.bf16.mxu0 %v3275
        %3609 = vmatpush1.bf16.msra.mxu0 %v3274
        %3610 = vmatprep.subr.bf16.mxu0 %v3279
        %3611 = vmatpush1.bf16.msra.mxu0 %v3278
        %3612 = vmatprep.subr.bf16.mxu0 %v3283
        %3613 = vmatpush1.bf16.msra.mxu0 %v3282
        %3614 = vmatprep.subr.bf16.mxu0 %v3287
        %3615 = vmatpush1.bf16.msra.mxu0 %v3286
        %3616 = vmatprep.subr.bf16.mxu0 %v3291
        %3617 = vmatpush1.bf16.msra.mxu0 %v3290
        %3618 = vmatprep.subr.bf16.mxu0 %v3295
        %3619 = vmatpush1.bf16.msra.mxu0 %v3294
        %3620 = vmatprep.subr.bf16.mxu0 %v3299
        %3621 = vmatpush1.bf16.msra.mxu0 %v3298
        %3622 = vmatprep.mubr.bf16.mxu0 %v3141
        %3623 = vmatmul.mubr.bf16.gmra.mrb[0].mxu0 %v3140
        %v3624 = vpop.f32.mrb[0].mxu0
        %v3625 = vadd.f32 0.0, %v3624
        %v3626 = vpop.f32.mrb[0].mxu0
        %v3627 = vadd.f32 0.0, %v3626
        %v3628 = vpop.f32.mrb[0].mxu0
        %v3629 = vadd.f32 0.0, %v3628
        %v3630 = vpop.f32.mrb[0].mxu0
        %v3631 = vadd.f32 0.0, %v3630
        %3632 = vmatprep.mubr.bf16.mxu0 %v3145
        %3633 = vmatmul.mubr.bf16.gmra.mrb[0].mxu0 %v3144
        %v3634 = vpop.f32.mrb[0].mxu0
        %v3635 = vadd.f32 0.0, %v3634
        %v3636 = vpop.f32.mrb[0].mxu0
        %v3637 = vadd.f32 0.0, %v3636
        %v3638 = vpop.f32.mrb[0].mxu0
        %v3639 = vadd.f32 0.0, %v3638
        %v3640 = vpop.f32.mrb[0].mxu0
        %v3641 = vadd.f32 0.0, %v3640
        %3642 = vmatprep.mubr.bf16.mxu0 %v3149
        %3643 = vmatmul.mubr.bf16.gmra.mrb[0].mxu0 %v3148
        %v3644 = vpop.f32.mrb[0].mxu0
        %v3645 = vadd.f32 0.0, %v3644
        %v3646 = vpop.f32.mrb[0].mxu0
        %v3647 = vadd.f32 0.0, %v3646
        %v3648 = vpop.f32.mrb[0].mxu0
        %v3649 = vadd.f32 0.0, %v3648
        %v3650 = vpop.f32.mrb[0].mxu0
        %v3651 = vadd.f32 0.0, %v3650
        %3652 = vmatprep.mubr.bf16.mxu0 %v3153
        %3653 = vmatmul.mubr.bf16.gmra.mrb[0].mxu0 %v3152
        %v3654 = vpop.f32.mrb[0].mxu0
        %v3655 = vadd.f32 0.0, %v3654
        %v3656 = vpop.f32.mrb[0].mxu0
        %v3657 = vadd.f32 0.0, %v3656
        %v3658 = vpop.f32.mrb[0].mxu0
        %v3659 = vadd.f32 0.0, %v3658
        %v3660 = vpop.f32.mrb[0].mxu0
        %v3661 = vadd.f32 0.0, %v3660
        %3662 = vmatprep.mubr.bf16.mxu0 %v3157
        %3663 = vmatmul.mubr.bf16.gmra.mrb[0].mxu0 %v3156
        %v3664 = vpop.f32.mrb[0].mxu0
        %v3665 = vadd.f32 0.0, %v3664
        %v3666 = vpop.f32.mrb[0].mxu0
        %v3667 = vadd.f32 0.0, %v3666
        %v3668 = vpop.f32.mrb[0].mxu0
        %v3669 = vadd.f32 0.0, %v3668
        %v3670 = vpop.f32.mrb[0].mxu0
        %v3671 = vadd.f32 0.0, %v3670
        %3672 = vmatprep.mubr.bf16.mxu0 %v3161
        %3673 = vmatmul.mubr.bf16.gmra.mrb[0].mxu0 %v3160
        %v3674 = vpop.f32.mrb[0].mxu0
        %v3675 = vadd.f32 0.0, %v3674
        %v3676 = vpop.f32.mrb[0].mxu0
        %v3677 = vadd.f32 0.0, %v3676
        %v3678 = vpop.f32.mrb[0].mxu0
        %v3679 = vadd.f32 0.0, %v3678
        %v3680 = vpop.f32.mrb[0].mxu0
        %v3681 = vadd.f32 0.0, %v3680
        %3682 = vmatprep.mubr.bf16.mxu0 %v3165
        %3683 = vmatmul.mubr.bf16.gmra.mrb[0].mxu0 %v3164
        %v3684 = vpop.f32.mrb[0].mxu0
        %v3685 = vadd.f32 0.0, %v3684
        %v3686 = vpop.f32.mrb[0].mxu0
        %v3687 = vadd.f32 0.0, %v3686
        %v3688 = vpop.f32.mrb[0].mxu0
        %v3689 = vadd.f32 0.0, %v3688
        %v3690 = vpop.f32.mrb[0].mxu0
        %v3691 = vadd.f32 0.0, %v3690
        %3692 = vmatprep.mubr.bf16.mxu0 %v3169
        %3693 = vmatmul.mubr.bf16.gmra.mrb[0].mxu0 %v3168
        %v3694 = vpop.f32.mrb[0].mxu0
        %v3695 = vadd.f32 0.0, %v3694
        %v3696 = vpop.f32.mrb[0].mxu0
        %v3697 = vadd.f32 0.0, %v3696
        %v3698 = vpop.f32.mrb[0].mxu0
        %v3699 = vadd.f32 0.0, %v3698
        %v3700 = vpop.f32.mrb[0].mxu0
        %v3701 = vadd.f32 0.0, %v3700
        %3702 = vdwg.mxu0
        %3703 = vmatprep.subr.bf16.mxu0 %v3303
        %3704 = vmatpush1.bf16.msra.mxu0 %v3302
        %3705 = vmatprep.subr.bf16.mxu0 %v3307
        %3706 = vmatpush1.bf16.msra.mxu0 %v3306
        %3707 = vmatprep.subr.bf16.mxu0 %v3311
        %3708 = vmatpush1.bf16.msra.mxu0 %v3310
        %3709 = vmatprep.subr.bf16.mxu0 %v3315
        %3710 = vmatpush1.bf16.msra.mxu0 %v3314
        %3711 = vmatprep.subr.bf16.mxu0 %v3319
        %3712 = vmatpush1.bf16.msra.mxu0 %v3318
        %3713 = vmatprep.subr.bf16.mxu0 %v3323
        %3714 = vmatpush1.bf16.msra.mxu0 %v3322
        %3715 = vmatprep.subr.bf16.mxu0 %v3327
        %3716 = vmatpush1.bf16.msra.mxu0 %v3326
        %3717 = vmatprep.subr.bf16.mxu0 %v3331
        %3718 = vmatpush1.bf16.msra.mxu0 %v3330
        %3719 = vmatprep.subr.bf16.mxu0 %v3335
        %3720 = vmatpush1.bf16.msra.mxu0 %v3334
        %3721 = vmatprep.subr.bf16.mxu0 %v3339
        %3722 = vmatpush1.bf16.msra.mxu0 %v3338
        %3723 = vmatprep.subr.bf16.mxu0 %v3343
        %3724 = vmatpush1.bf16.msra.mxu0 %v3342
        %3725 = vmatprep.subr.bf16.mxu0 %v3347
        %3726 = vmatpush1.bf16.msra.mxu0 %v3346
        %3727 = vmatprep.subr.bf16.mxu0 %v3351
        %3728 = vmatpush1.bf16.msra.mxu0 %v3350
        %3729 = vmatprep.subr.bf16.mxu0 %v3355
        %3730 = vmatpush1.bf16.msra.mxu0 %v3354
        %3731 = vmatprep.subr.bf16.mxu0 %v3359
        %3732 = vmatpush1.bf16.msra.mxu0 %v3358
        %3733 = vmatprep.subr.bf16.mxu0 %v3363
        %3734 = vmatpush1.bf16.msra.mxu0 %v3362
        %3735 = vmatprep.mubr.bf16.mxu0 %v3143
        %3736 = vmatmul.mubr.bf16.gmra.mrb[0].mxu0 %v3142
        %v3737 = vpop.f32.mrb[0].mxu0
        %v3738 = vadd.f32 %v3625, %v3737
        %v3739 = vpop.f32.mrb[0].mxu0
        %v3740 = vadd.f32 %v3627, %v3739
        %v3741 = vpop.f32.mrb[0].mxu0
        %v3742 = vadd.f32 %v3629, %v3741
        %v3743 = vpop.f32.mrb[0].mxu0
        %v3744 = vadd.f32 %v3631, %v3743
        %3745 = vmatprep.mubr.bf16.mxu0 %v3147
        %3746 = vmatmul.mubr.bf16.gmra.mrb[0].mxu0 %v3146
        %v3747 = vpop.f32.mrb[0].mxu0
        %v3748 = vadd.f32 %v3635, %v3747
        %v3749 = vpop.f32.mrb[0].mxu0
        %v3750 = vadd.f32 %v3637, %v3749
        %v3751 = vpop.f32.mrb[0].mxu0
        %v3752 = vadd.f32 %v3639, %v3751
        %v3753 = vpop.f32.mrb[0].mxu0
        %v3754 = vadd.f32 %v3641, %v3753
        %3755 = vmatprep.mubr.bf16.mxu0 %v3151
        %3756 = vmatmul.mubr.bf16.gmra.mrb[0].mxu0 %v3150
        %v3757 = vpop.f32.mrb[0].mxu0
        %v3758 = vadd.f32 %v3645, %v3757
        %v3759 = vpop.f32.mrb[0].mxu0
        %v3760 = vadd.f32 %v3647, %v3759
        %v3761 = vpop.f32.mrb[0].mxu0
        %v3762 = vadd.f32 %v3649, %v3761
        %v3763 = vpop.f32.mrb[0].mxu0
        %v3764 = vadd.f32 %v3651, %v3763
        %3765 = vmatprep.mubr.bf16.mxu0 %v3155
        %3766 = vmatmul.mubr.bf16.gmra.mrb[0].mxu0 %v3154
        %v3767 = vpop.f32.mrb[0].mxu0
        %v3768 = vadd.f32 %v3655, %v3767
        %v3769 = vpop.f32.mrb[0].mxu0
        %v3770 = vadd.f32 %v3657, %v3769
        %v3771 = vpop.f32.mrb[0].mxu0
        %v3772 = vadd.f32 %v3659, %v3771
        %v3773 = vpop.f32.mrb[0].mxu0
        %v3774 = vadd.f32 %v3661, %v3773
        %3775 = vmatprep.mubr.bf16.mxu0 %v3159
        %3776 = vmatmul.mubr.bf16.gmra.mrb[0].mxu0 %v3158
        %v3777 = vpop.f32.mrb[0].mxu0
        %v3778 = vadd.f32 %v3665, %v3777
        %v3779 = vpop.f32.mrb[0].mxu0
        %v3780 = vadd.f32 %v3667, %v3779
        %v3781 = vpop.f32.mrb[0].mxu0
        %v3782 = vadd.f32 %v3669, %v3781
        %v3783 = vpop.f32.mrb[0].mxu0
        %v3784 = vadd.f32 %v3671, %v3783
        %3785 = vmatprep.mubr.bf16.mxu0 %v3163
        %3786 = vmatmul.mubr.bf16.gmra.mrb[0].mxu0 %v3162
        %v3787 = vpop.f32.mrb[0].mxu0
        %v3788 = vadd.f32 %v3675, %v3787
        %v3789 = vpop.f32.mrb[0].mxu0
        %v3790 = vadd.f32 %v3677, %v3789
        %v3791 = vpop.f32.mrb[0].mxu0
        %v3792 = vadd.f32 %v3679, %v3791
        %v3793 = vpop.f32.mrb[0].mxu0
        %v3794 = vadd.f32 %v3681, %v3793
        %3795 = vmatprep.mubr.bf16.mxu0 %v3167
        %3796 = vmatmul.mubr.bf16.gmra.mrb[0].mxu0 %v3166
        %v3797 = vpop.f32.mrb[0].mxu0
        %v3798 = vadd.f32 %v3685, %v3797
        %v3799 = vpop.f32.mrb[0].mxu0
        %v3800 = vadd.f32 %v3687, %v3799
        %v3801 = vpop.f32.mrb[0].mxu0
        %v3802 = vadd.f32 %v3689, %v3801
        %v3803 = vpop.f32.mrb[0].mxu0
        %v3804 = vadd.f32 %v3691, %v3803
        %3805 = vmatprep.mubr.bf16.mxu0 %v3171
        %3806 = vmatmul.mubr.bf16.gmra.mrb[0].mxu0 %v3170
        %v3807 = vpop.f32.mrb[0].mxu0
        %v3808 = vadd.f32 %v3695, %v3807
        %v3809 = vpop.f32.mrb[0].mxu0
        %v3810 = vadd.f32 %v3697, %v3809
        %v3811 = vpop.f32.mrb[0].mxu0
        %v3812 = vadd.f32 %v3699, %v3811
        %v3813 = vpop.f32.mrb[0].mxu0
        %v3814 = vadd.f32 %v3701, %v3813
        %3815 = vdwg.mxu0
        %s3816 = scalar_lea.vmem [#allocation10], 2
        %v3817 = vld [vmem:[%s3816] ss:$8 sm:$0xf]
        %s3818 = scalar_lea.vmem [#allocation10], 3
        %v3819 = vld [vmem:[%s3818] ss:$8 sm:$0xf]
        %v3821 = vlaneseq
        %v3822 = vshrl.u32 %v3821, 7
        %v3823 = vsub.s32 0, %v3822
        %v3824 = vrot.slane %v3817, %v3823
        %v3825 = vlaneseq
        %v3826 = vshrl.u32 %v3825, 7
        %v3827 = vsub.s32 1, %v3826
        %v3828 = vrot.slane %v3817, %v3827
        %v3829 = vlaneseq
        %v3830 = vshrl.u32 %v3829, 7
        %v3831 = vsub.s32 2, %v3830
        %v3832 = vrot.slane %v3817, %v3831
        %v3833 = vlaneseq
        %v3834 = vshrl.u32 %v3833, 7
        %v3835 = vsub.s32 3, %v3834
        %v3836 = vrot.slane %v3817, %v3835
        %v3841 = vmul.f32 %v3512, %v3824
        %v3842 = vmul.f32 %v3514, %v3828
        %v3843 = vmul.f32 %v3738, %v3832
        %v3844 = vmul.f32 %v3740, %v3836
        %v3845 = vmul.f32 %v3516, %v3824
        %v3846 = vmul.f32 %v3518, %v3828
        %v3847 = vmul.f32 %v3742, %v3832
        %v3848 = vmul.f32 %v3744, %v3836
        %v3849 = vmul.f32 %v3522, %v3824
        %v3850 = vmul.f32 %v3524, %v3828
        %v3851 = vmul.f32 %v3748, %v3832
        %v3852 = vmul.f32 %v3750, %v3836
        %v3853 = vmul.f32 %v3526, %v3824
        %v3854 = vmul.f32 %v3528, %v3828
        %v3855 = vmul.f32 %v3752, %v3832
        %v3856 = vmul.f32 %v3754, %v3836
        %v3857 = vmul.f32 %v3532, %v3824
        %v3858 = vmul.f32 %v3534, %v3828
        %v3859 = vmul.f32 %v3758, %v3832
        %v3860 = vmul.f32 %v3760, %v3836
        %v3861 = vmul.f32 %v3536, %v3824
        %v3862 = vmul.f32 %v3538, %v3828
        %v3863 = vmul.f32 %v3762, %v3832
        %v3864 = vmul.f32 %v3764, %v3836
        %v3865 = vmul.f32 %v3542, %v3824
        %v3866 = vmul.f32 %v3544, %v3828
        %v3867 = vmul.f32 %v3768, %v3832
        %v3868 = vmul.f32 %v3770, %v3836
        %v3869 = vmul.f32 %v3546, %v3824
        %v3870 = vmul.f32 %v3548, %v3828
        %v3871 = vmul.f32 %v3772, %v3832
        %v3872 = vmul.f32 %v3774, %v3836
        %v3873 = vmul.f32 %v3552, %v3824
        %v3874 = vmul.f32 %v3554, %v3828
        %v3875 = vmul.f32 %v3778, %v3832
        %v3876 = vmul.f32 %v3780, %v3836
        %v3877 = vmul.f32 %v3556, %v3824
        %v3878 = vmul.f32 %v3558, %v3828
        %v3879 = vmul.f32 %v3782, %v3832
        %v3880 = vmul.f32 %v3784, %v3836
        %v3881 = vmul.f32 %v3562, %v3824
        %v3882 = vmul.f32 %v3564, %v3828
        %v3883 = vmul.f32 %v3788, %v3832
        %v3884 = vmul.f32 %v3790, %v3836
        %v3885 = vmul.f32 %v3566, %v3824
        %v3886 = vmul.f32 %v3568, %v3828
        %v3887 = vmul.f32 %v3792, %v3832
        %v3888 = vmul.f32 %v3794, %v3836
        %v3889 = vmul.f32 %v3572, %v3824
        %v3890 = vmul.f32 %v3574, %v3828
        %v3891 = vmul.f32 %v3798, %v3832
        %v3892 = vmul.f32 %v3800, %v3836
        %v3893 = vmul.f32 %v3576, %v3824
        %v3894 = vmul.f32 %v3578, %v3828
        %v3895 = vmul.f32 %v3802, %v3832
        %v3896 = vmul.f32 %v3804, %v3836
        %v3897 = vmul.f32 %v3582, %v3824
        %v3898 = vmul.f32 %v3584, %v3828
        %v3899 = vmul.f32 %v3808, %v3832
        %v3900 = vmul.f32 %v3810, %v3836
        %v3901 = vmul.f32 %v3586, %v3824
        %v3902 = vmul.f32 %v3588, %v3828
        %v3903 = vmul.f32 %v3812, %v3832
        %v3904 = vmul.f32 %v3814, %v3836
        %v3906 = vlaneseq
        %v3907 = vshrl.u32 %v3906, 7
        %v3908 = vsub.s32 0, %v3907
        %v3909 = vrot.slane %v3819, %v3908
        %v3910 = vlaneseq
        %v3911 = vshrl.u32 %v3910, 7
        %v3912 = vsub.s32 1, %v3911
        %v3913 = vrot.slane %v3819, %v3912
        %v3914 = vlaneseq
        %v3915 = vshrl.u32 %v3914, 7
        %v3916 = vsub.s32 2, %v3915
        %v3917 = vrot.slane %v3819, %v3916
        %v3918 = vlaneseq
        %v3919 = vshrl.u32 %v3918, 7
        %v3920 = vsub.s32 3, %v3919
        %v3921 = vrot.slane %v3819, %v3920
        %v3926 = vadd.f32 %v3841, %v3909
        %v3927 = vadd.f32 %v3842, %v3913
        %v3928 = vadd.f32 %v3843, %v3917
        %v3929 = vadd.f32 %v3844, %v3921
        %v3930 = vadd.f32 %v3845, %v3909
        %v3931 = vadd.f32 %v3846, %v3913
        %v3932 = vadd.f32 %v3847, %v3917
        %v3933 = vadd.f32 %v3848, %v3921
        %v3934 = vadd.f32 %v3849, %v3909
        %v3935 = vadd.f32 %v3850, %v3913
        %v3936 = vadd.f32 %v3851, %v3917
        %v3937 = vadd.f32 %v3852, %v3921
        %v3938 = vadd.f32 %v3853, %v3909
        %v3939 = vadd.f32 %v3854, %v3913
        %v3940 = vadd.f32 %v3855, %v3917
        %v3941 = vadd.f32 %v3856, %v3921
        %v3942 = vadd.f32 %v3857, %v3909
        %v3943 = vadd.f32 %v3858, %v3913
        %v3944 = vadd.f32 %v3859, %v3917
        %v3945 = vadd.f32 %v3860, %v3921
        %v3946 = vadd.f32 %v3861, %v3909
        %v3947 = vadd.f32 %v3862, %v3913
        %v3948 = vadd.f32 %v3863, %v3917
        %v3949 = vadd.f32 %v3864, %v3921
        %v3950 = vadd.f32 %v3865, %v3909
        %v3951 = vadd.f32 %v3866, %v3913
        %v3952 = vadd.f32 %v3867, %v3917
        %v3953 = vadd.f32 %v3868, %v3921
        %v3954 = vadd.f32 %v3869, %v3909
        %v3955 = vadd.f32 %v3870, %v3913
        %v3956 = vadd.f32 %v3871, %v3917
        %v3957 = vadd.f32 %v3872, %v3921
        %v3958 = vadd.f32 %v3873, %v3909
        %v3959 = vadd.f32 %v3874, %v3913
        %v3960 = vadd.f32 %v3875, %v3917
        %v3961 = vadd.f32 %v3876, %v3921
        %v3962 = vadd.f32 %v3877, %v3909
        %v3963 = vadd.f32 %v3878, %v3913
        %v3964 = vadd.f32 %v3879, %v3917
        %v3965 = vadd.f32 %v3880, %v3921
        %v3966 = vadd.f32 %v3881, %v3909
        %v3967 = vadd.f32 %v3882, %v3913
        %v3968 = vadd.f32 %v3883, %v3917
        %v3969 = vadd.f32 %v3884, %v3921
        %v3970 = vadd.f32 %v3885, %v3909
        %v3971 = vadd.f32 %v3886, %v3913
        %v3972 = vadd.f32 %v3887, %v3917
        %v3973 = vadd.f32 %v3888, %v3921
        %v3974 = vadd.f32 %v3889, %v3909
        %v3975 = vadd.f32 %v3890, %v3913
        %v3976 = vadd.f32 %v3891, %v3917
        %v3977 = vadd.f32 %v3892, %v3921
        %v3978 = vadd.f32 %v3893, %v3909
        %v3979 = vadd.f32 %v3894, %v3913
        %v3980 = vadd.f32 %v3895, %v3917
        %v3981 = vadd.f32 %v3896, %v3921
        %v3982 = vadd.f32 %v3897, %v3909
        %v3983 = vadd.f32 %v3898, %v3913
        %v3984 = vadd.f32 %v3899, %v3917
        %v3985 = vadd.f32 %v3900, %v3921
        %v3986 = vadd.f32 %v3901, %v3909
        %v3987 = vadd.f32 %v3902, %v3913
        %v3988 = vadd.f32 %v3903, %v3917
        %v3989 = vadd.f32 %v3904, %v3921
        %v3990 = vmax.f32 %v3926, 0.0
        %v3991 = vmax.f32 %v3927, 0.0
        %v3992 = vmax.f32 %v3928, 0.0
        %v3993 = vmax.f32 %v3929, 0.0
        %v3994 = vmax.f32 %v3930, 0.0
        %v3995 = vmax.f32 %v3931, 0.0
        %v3996 = vmax.f32 %v3932, 0.0
        %v3997 = vmax.f32 %v3933, 0.0
        %v3998 = vmax.f32 %v3934, 0.0
        %v3999 = vmax.f32 %v3935, 0.0
        %v4000 = vmax.f32 %v3936, 0.0
        %v4001 = vmax.f32 %v3937, 0.0
        %v4002 = vmax.f32 %v3938, 0.0
        %v4003 = vmax.f32 %v3939, 0.0
        %v4004 = vmax.f32 %v3940, 0.0
        %v4005 = vmax.f32 %v3941, 0.0
        %v4006 = vmax.f32 %v3942, 0.0
        %v4007 = vmax.f32 %v3943, 0.0
        %v4008 = vmax.f32 %v3944, 0.0
        %v4009 = vmax.f32 %v3945, 0.0
        %v4010 = vmax.f32 %v3946, 0.0
        %v4011 = vmax.f32 %v3947, 0.0
        %v4012 = vmax.f32 %v3948, 0.0
        %v4013 = vmax.f32 %v3949, 0.0
        %v4014 = vmax.f32 %v3950, 0.0
        %v4015 = vmax.f32 %v3951, 0.0
        %v4016 = vmax.f32 %v3952, 0.0
        %v4017 = vmax.f32 %v3953, 0.0
        %v4018 = vmax.f32 %v3954, 0.0
        %v4019 = vmax.f32 %v3955, 0.0
        %v4020 = vmax.f32 %v3956, 0.0
        %v4021 = vmax.f32 %v3957, 0.0
        %v4022 = vmax.f32 %v3958, 0.0
        %v4023 = vmax.f32 %v3959, 0.0
        %v4024 = vmax.f32 %v3960, 0.0
        %v4025 = vmax.f32 %v3961, 0.0
        %v4026 = vmax.f32 %v3962, 0.0
        %v4027 = vmax.f32 %v3963, 0.0
        %v4028 = vmax.f32 %v3964, 0.0
        %v4029 = vmax.f32 %v3965, 0.0
        %v4030 = vmax.f32 %v3966, 0.0
        %v4031 = vmax.f32 %v3967, 0.0
        %v4032 = vmax.f32 %v3968, 0.0
        %v4033 = vmax.f32 %v3969, 0.0
        %v4034 = vmax.f32 %v3970, 0.0
        %v4035 = vmax.f32 %v3971, 0.0
        %v4036 = vmax.f32 %v3972, 0.0
        %v4037 = vmax.f32 %v3973, 0.0
        %v4038 = vmax.f32 %v3974, 0.0
        %v4039 = vmax.f32 %v3975, 0.0
        %v4040 = vmax.f32 %v3976, 0.0
        %v4041 = vmax.f32 %v3977, 0.0
        %v4042 = vmax.f32 %v3978, 0.0
        %v4043 = vmax.f32 %v3979, 0.0
        %v4044 = vmax.f32 %v3980, 0.0
        %v4045 = vmax.f32 %v3981, 0.0
        %v4046 = vmax.f32 %v3982, 0.0
        %v4047 = vmax.f32 %v3983, 0.0
        %v4048 = vmax.f32 %v3984, 0.0
        %v4049 = vmax.f32 %v3985, 0.0
        %v4050 = vmax.f32 %v3986, 0.0
        %v4051 = vmax.f32 %v3987, 0.0
        %v4052 = vmax.f32 %v3988, 0.0
        %v4053 = vmax.f32 %v3989, 0.0
        %v4054 = vpack.c.bf16 %v3994, %v3990
        %v4055 = vpack.c.bf16 %v3995, %v3991
        %v4056 = vpack.c.bf16 %v3996, %v3992
        %v4057 = vpack.c.bf16 %v3997, %v3993
        %v4058 = vpack.c.bf16 %v4002, %v3998
        %v4059 = vpack.c.bf16 %v4003, %v3999
        %v4060 = vpack.c.bf16 %v4004, %v4000
        %v4061 = vpack.c.bf16 %v4005, %v4001
        %v4062 = vpack.c.bf16 %v4010, %v4006
        %v4063 = vpack.c.bf16 %v4011, %v4007
        %v4064 = vpack.c.bf16 %v4012, %v4008
        %v4065 = vpack.c.bf16 %v4013, %v4009
        %v4066 = vpack.c.bf16 %v4018, %v4014
        %v4067 = vpack.c.bf16 %v4019, %v4015
        %v4068 = vpack.c.bf16 %v4020, %v4016
        %v4069 = vpack.c.bf16 %v4021, %v4017
        %v4070 = vpack.c.bf16 %v4026, %v4022
        %v4071 = vpack.c.bf16 %v4027, %v4023
        %v4072 = vpack.c.bf16 %v4028, %v4024
        %v4073 = vpack.c.bf16 %v4029, %v4025
        %v4074 = vpack.c.bf16 %v4034, %v4030
        %v4075 = vpack.c.bf16 %v4035, %v4031
        %v4076 = vpack.c.bf16 %v4036, %v4032
        %v4077 = vpack.c.bf16 %v4037, %v4033
        %v4078 = vpack.c.bf16 %v4042, %v4038
        %v4079 = vpack.c.bf16 %v4043, %v4039
        %v4080 = vpack.c.bf16 %v4044, %v4040
        %v4081 = vpack.c.bf16 %v4045, %v4041
        %v4082 = vpack.c.bf16 %v4050, %v4046
        %v4083 = vpack.c.bf16 %v4051, %v4047
        %v4084 = vpack.c.bf16 %v4052, %v4048
        %v4085 = vpack.c.bf16 %v4053, %v4049
        %s4086 = scalar_lea.vmem [#allocation7], 512
        %v4087 = vld [vmem:[%s4086] sm:$0xff]
        %v4088 = vld [vmem:[%s4086 + $0x8] sm:$0xff]
        %v4089 = vld [vmem:[%s4086 + $0x10] sm:$0xff]
        %v4090 = vld [vmem:[%s4086 + $0x18] sm:$0xff]
        %v4091 = vld [vmem:[%s4086 + $0x20] sm:$0xff]
        %v4092 = vld [vmem:[%s4086 + $0x28] sm:$0xff]
        %v4093 = vld [vmem:[%s4086 + $0x30] sm:$0xff]
        %v4094 = vld [vmem:[%s4086 + $0x38] sm:$0xff]
        %v4095 = vld [vmem:[%s4086 + $0x40] sm:$0xff]
        %v4096 = vld [vmem:[%s4086 + $0x48] sm:$0xff]
        %v4097 = vld [vmem:[%s4086 + $0x50] sm:$0xff]
        %v4098 = vld [vmem:[%s4086 + $0x58] sm:$0xff]
        %v4099 = vld [vmem:[%s4086 + $0x60] sm:$0xff]
        %v4100 = vld [vmem:[%s4086 + $0x68] sm:$0xff]
        %v4101 = vld [vmem:[%s4086 + $0x70] sm:$0xff]
        %v4102 = vld [vmem:[%s4086 + $0x78] sm:$0xff]
        %v4103 = vld [vmem:[%s4086 + $0x80] sm:$0xff]
        %v4104 = vld [vmem:[%s4086 + $0x88] sm:$0xff]
        %v4105 = vld [vmem:[%s4086 + $0x90] sm:$0xff]
        %v4106 = vld [vmem:[%s4086 + $0x98] sm:$0xff]
        %v4107 = vld [vmem:[%s4086 + $0xa0] sm:$0xff]
        %v4108 = vld [vmem:[%s4086 + $0xa8] sm:$0xff]
        %v4109 = vld [vmem:[%s4086 + $0xb0] sm:$0xff]
        %v4110 = vld [vmem:[%s4086 + $0xb8] sm:$0xff]
        %v4111 = vld [vmem:[%s4086 + $0xc0] sm:$0xff]
        %v4112 = vld [vmem:[%s4086 + $0xc8] sm:$0xff]
        %v4113 = vld [vmem:[%s4086 + $0xd0] sm:$0xff]
        %v4114 = vld [vmem:[%s4086 + $0xd8] sm:$0xff]
        %v4115 = vld [vmem:[%s4086 + $0xe0] sm:$0xff]
        %v4116 = vld [vmem:[%s4086 + $0xe8] sm:$0xff]
        %v4117 = vld [vmem:[%s4086 + $0xf0] sm:$0xff]
        %v4118 = vld [vmem:[%s4086 + $0xf8] sm:$0xff]
        %v4119 = vld [vmem:[%s4086 + $0x100] sm:$0xff]
        %v4120 = vld [vmem:[%s4086 + $0x108] sm:$0xff]
        %v4121 = vld [vmem:[%s4086 + $0x110] sm:$0xff]
        %v4122 = vld [vmem:[%s4086 + $0x118] sm:$0xff]
        %v4123 = vld [vmem:[%s4086 + $0x120] sm:$0xff]
        %v4124 = vld [vmem:[%s4086 + $0x128] sm:$0xff]
        %v4125 = vld [vmem:[%s4086 + $0x130] sm:$0xff]
        %v4126 = vld [vmem:[%s4086 + $0x138] sm:$0xff]
        %v4127 = vld [vmem:[%s4086 + $0x140] sm:$0xff]
        %v4128 = vld [vmem:[%s4086 + $0x148] sm:$0xff]
        %v4129 = vld [vmem:[%s4086 + $0x150] sm:$0xff]
        %v4130 = vld [vmem:[%s4086 + $0x158] sm:$0xff]
        %v4131 = vld [vmem:[%s4086 + $0x160] sm:$0xff]
        %v4132 = vld [vmem:[%s4086 + $0x168] sm:$0xff]
        %v4133 = vld [vmem:[%s4086 + $0x170] sm:$0xff]
        %v4134 = vld [vmem:[%s4086 + $0x178] sm:$0xff]
        %v4135 = vld [vmem:[%s4086 + $0x180] sm:$0xff]
        %v4136 = vld [vmem:[%s4086 + $0x188] sm:$0xff]
        %v4137 = vld [vmem:[%s4086 + $0x190] sm:$0xff]
        %v4138 = vld [vmem:[%s4086 + $0x198] sm:$0xff]
        %v4139 = vld [vmem:[%s4086 + $0x1a0] sm:$0xff]
        %v4140 = vld [vmem:[%s4086 + $0x1a8] sm:$0xff]
        %v4141 = vld [vmem:[%s4086 + $0x1b0] sm:$0xff]
        %v4142 = vld [vmem:[%s4086 + $0x1b8] sm:$0xff]
        %v4143 = vld [vmem:[%s4086 + $0x1c0] sm:$0xff]
        %v4144 = vld [vmem:[%s4086 + $0x1c8] sm:$0xff]
        %v4145 = vld [vmem:[%s4086 + $0x1d0] sm:$0xff]
        %v4146 = vld [vmem:[%s4086 + $0x1d8] sm:$0xff]
        %v4147 = vld [vmem:[%s4086 + $0x1e0] sm:$0xff]
        %v4148 = vld [vmem:[%s4086 + $0x1e8] sm:$0xff]
        %v4149 = vld [vmem:[%s4086 + $0x1f0] sm:$0xff]
        %v4150 = vld [vmem:[%s4086 + $0x1f8] sm:$0xff]
        %v4151 = vunpack.c.l.s8.bf16 %v4087
        %v4152 = vunpack.c.l.s8.bf16 %v4088
        %v4153 = vunpack.c.l.s8.bf16 %v4089
        %v4154 = vunpack.c.l.s8.bf16 %v4090
        %v4155 = vunpack.c.h.s8.bf16 %v4087
        %v4156 = vunpack.c.h.s8.bf16 %v4088
        %v4157 = vunpack.c.h.s8.bf16 %v4089
        %v4158 = vunpack.c.h.s8.bf16 %v4090
        %v4159 = vunpack.c.l.s8.bf16 %v4091
        %v4160 = vunpack.c.l.s8.bf16 %v4092
        %v4161 = vunpack.c.l.s8.bf16 %v4093
        %v4162 = vunpack.c.l.s8.bf16 %v4094
        %v4163 = vunpack.c.h.s8.bf16 %v4091
        %v4164 = vunpack.c.h.s8.bf16 %v4092
        %v4165 = vunpack.c.h.s8.bf16 %v4093
        %v4166 = vunpack.c.h.s8.bf16 %v4094
        %v4167 = vunpack.c.l.s8.bf16 %v4095
        %v4168 = vunpack.c.l.s8.bf16 %v4096
        %v4169 = vunpack.c.l.s8.bf16 %v4097
        %v4170 = vunpack.c.l.s8.bf16 %v4098
        %v4171 = vunpack.c.h.s8.bf16 %v4095
        %v4172 = vunpack.c.h.s8.bf16 %v4096
        %v4173 = vunpack.c.h.s8.bf16 %v4097
        %v4174 = vunpack.c.h.s8.bf16 %v4098
        %v4175 = vunpack.c.l.s8.bf16 %v4099
        %v4176 = vunpack.c.l.s8.bf16 %v4100
        %v4177 = vunpack.c.l.s8.bf16 %v4101
        %v4178 = vunpack.c.l.s8.bf16 %v4102
        %v4179 = vunpack.c.h.s8.bf16 %v4099
        %v4180 = vunpack.c.h.s8.bf16 %v4100
        %v4181 = vunpack.c.h.s8.bf16 %v4101
        %v4182 = vunpack.c.h.s8.bf16 %v4102
        %v4183 = vunpack.c.l.s8.bf16 %v4103
        %v4184 = vunpack.c.l.s8.bf16 %v4104
        %v4185 = vunpack.c.l.s8.bf16 %v4105
        %v4186 = vunpack.c.l.s8.bf16 %v4106
        %v4187 = vunpack.c.h.s8.bf16 %v4103
        %v4188 = vunpack.c.h.s8.bf16 %v4104
        %v4189 = vunpack.c.h.s8.bf16 %v4105
        %v4190 = vunpack.c.h.s8.bf16 %v4106
        %v4191 = vunpack.c.l.s8.bf16 %v4107
        %v4192 = vunpack.c.l.s8.bf16 %v4108
        %v4193 = vunpack.c.l.s8.bf16 %v4109
        %v4194 = vunpack.c.l.s8.bf16 %v4110
        %v4195 = vunpack.c.h.s8.bf16 %v4107
        %v4196 = vunpack.c.h.s8.bf16 %v4108
        %v4197 = vunpack.c.h.s8.bf16 %v4109
        %v4198 = vunpack.c.h.s8.bf16 %v4110
        %v4199 = vunpack.c.l.s8.bf16 %v4111
        %v4200 = vunpack.c.l.s8.bf16 %v4112
        %v4201 = vunpack.c.l.s8.bf16 %v4113
        %v4202 = vunpack.c.l.s8.bf16 %v4114
        %v4203 = vunpack.c.h.s8.bf16 %v4111
        %v4204 = vunpack.c.h.s8.bf16 %v4112
        %v4205 = vunpack.c.h.s8.bf16 %v4113
        %v4206 = vunpack.c.h.s8.bf16 %v4114
        %v4207 = vunpack.c.l.s8.bf16 %v4115
        %v4208 = vunpack.c.l.s8.bf16 %v4116
        %v4209 = vunpack.c.l.s8.bf16 %v4117
        %v4210 = vunpack.c.l.s8.bf16 %v4118
        %v4211 = vunpack.c.h.s8.bf16 %v4115
        %v4212 = vunpack.c.h.s8.bf16 %v4116
        %v4213 = vunpack.c.h.s8.bf16 %v4117
        %v4214 = vunpack.c.h.s8.bf16 %v4118
        %v4215 = vunpack.c.l.s8.bf16 %v4119
        %v4216 = vunpack.c.l.s8.bf16 %v4120
        %v4217 = vunpack.c.l.s8.bf16 %v4121
        %v4218 = vunpack.c.l.s8.bf16 %v4122
        %v4219 = vunpack.c.h.s8.bf16 %v4119
        %v4220 = vunpack.c.h.s8.bf16 %v4120
        %v4221 = vunpack.c.h.s8.bf16 %v4121
        %v4222 = vunpack.c.h.s8.bf16 %v4122
        %v4223 = vunpack.c.l.s8.bf16 %v4123
        %v4224 = vunpack.c.l.s8.bf16 %v4124
        %v4225 = vunpack.c.l.s8.bf16 %v4125
        %v4226 = vunpack.c.l.s8.bf16 %v4126
        %v4227 = vunpack.c.h.s8.bf16 %v4123
        %v4228 = vunpack.c.h.s8.bf16 %v4124
        %v4229 = vunpack.c.h.s8.bf16 %v4125
        %v4230 = vunpack.c.h.s8.bf16 %v4126
        %v4231 = vunpack.c.l.s8.bf16 %v4127
        %v4232 = vunpack.c.l.s8.bf16 %v4128
        %v4233 = vunpack.c.l.s8.bf16 %v4129
        %v4234 = vunpack.c.l.s8.bf16 %v4130
        %v4235 = vunpack.c.h.s8.bf16 %v4127
        %v4236 = vunpack.c.h.s8.bf16 %v4128
        %v4237 = vunpack.c.h.s8.bf16 %v4129
        %v4238 = vunpack.c.h.s8.bf16 %v4130
        %v4239 = vunpack.c.l.s8.bf16 %v4131
        %v4240 = vunpack.c.l.s8.bf16 %v4132
        %v4241 = vunpack.c.l.s8.bf16 %v4133
        %v4242 = vunpack.c.l.s8.bf16 %v4134
        %v4243 = vunpack.c.h.s8.bf16 %v4131
        %v4244 = vunpack.c.h.s8.bf16 %v4132
        %v4245 = vunpack.c.h.s8.bf16 %v4133
        %v4246 = vunpack.c.h.s8.bf16 %v4134
        %v4247 = vunpack.c.l.s8.bf16 %v4135
        %v4248 = vunpack.c.l.s8.bf16 %v4136
        %v4249 = vunpack.c.l.s8.bf16 %v4137
        %v4250 = vunpack.c.l.s8.bf16 %v4138
        %v4251 = vunpack.c.h.s8.bf16 %v4135
        %v4252 = vunpack.c.h.s8.bf16 %v4136
        %v4253 = vunpack.c.h.s8.bf16 %v4137
        %v4254 = vunpack.c.h.s8.bf16 %v4138
        %v4255 = vunpack.c.l.s8.bf16 %v4139
        %v4256 = vunpack.c.l.s8.bf16 %v4140
        %v4257 = vunpack.c.l.s8.bf16 %v4141
        %v4258 = vunpack.c.l.s8.bf16 %v4142
        %v4259 = vunpack.c.h.s8.bf16 %v4139
        %v4260 = vunpack.c.h.s8.bf16 %v4140
        %v4261 = vunpack.c.h.s8.bf16 %v4141
        %v4262 = vunpack.c.h.s8.bf16 %v4142
        %v4263 = vunpack.c.l.s8.bf16 %v4143
        %v4264 = vunpack.c.l.s8.bf16 %v4144
        %v4265 = vunpack.c.l.s8.bf16 %v4145
        %v4266 = vunpack.c.l.s8.bf16 %v4146
        %v4267 = vunpack.c.h.s8.bf16 %v4143
        %v4268 = vunpack.c.h.s8.bf16 %v4144
        %v4269 = vunpack.c.h.s8.bf16 %v4145
        %v4270 = vunpack.c.h.s8.bf16 %v4146
        %v4271 = vunpack.c.l.s8.bf16 %v4147
        %v4272 = vunpack.c.l.s8.bf16 %v4148
        %v4273 = vunpack.c.l.s8.bf16 %v4149
        %v4274 = vunpack.c.l.s8.bf16 %v4150
        %v4275 = vunpack.c.h.s8.bf16 %v4147
        %v4276 = vunpack.c.h.s8.bf16 %v4148
        %v4277 = vunpack.c.h.s8.bf16 %v4149
        %v4278 = vunpack.c.h.s8.bf16 %v4150
        %4279 = vmatprep.subr.bf16.mxu0 %v4152
        %4280 = vmatpush1.bf16.msra.mxu0 %v4151
        %4281 = vmatprep.subr.bf16.mxu0 %v4156
        %4282 = vmatpush1.bf16.msra.mxu0 %v4155
        %4283 = vmatprep.subr.bf16.mxu0 %v4160
        %4284 = vmatpush1.bf16.msra.mxu0 %v4159
        %4285 = vmatprep.subr.bf16.mxu0 %v4164
        %4286 = vmatpush1.bf16.msra.mxu0 %v4163
        %4287 = vmatprep.subr.bf16.mxu0 %v4168
        %4288 = vmatpush1.bf16.msra.mxu0 %v4167
        %4289 = vmatprep.subr.bf16.mxu0 %v4172
        %4290 = vmatpush1.bf16.msra.mxu0 %v4171
        %4291 = vmatprep.subr.bf16.mxu0 %v4176
        %4292 = vmatpush1.bf16.msra.mxu0 %v4175
        %4293 = vmatprep.subr.bf16.mxu0 %v4180
        %4294 = vmatpush1.bf16.msra.mxu0 %v4179
        %4295 = vmatprep.subr.bf16.mxu0 %v4184
        %4296 = vmatpush1.bf16.msra.mxu0 %v4183
        %4297 = vmatprep.subr.bf16.mxu0 %v4188
        %4298 = vmatpush1.bf16.msra.mxu0 %v4187
        %4299 = vmatprep.subr.bf16.mxu0 %v4192
        %4300 = vmatpush1.bf16.msra.mxu0 %v4191
        %4301 = vmatprep.subr.bf16.mxu0 %v4196
        %4302 = vmatpush1.bf16.msra.mxu0 %v4195
        %4303 = vmatprep.subr.bf16.mxu0 %v4200
        %4304 = vmatpush1.bf16.msra.mxu0 %v4199
        %4305 = vmatprep.subr.bf16.mxu0 %v4204
        %4306 = vmatpush1.bf16.msra.mxu0 %v4203
        %4307 = vmatprep.subr.bf16.mxu0 %v4208
        %4308 = vmatpush1.bf16.msra.mxu0 %v4207
        %4309 = vmatprep.subr.bf16.mxu0 %v4212
        %4310 = vmatpush1.bf16.msra.mxu0 %v4211
        %4311 = vmatprep.mubr.bf16.mxu0 %v4055
        %4312 = vmatmul.mubr.bf16.gmra.mrb[0].mxu0 %v4054
        %v4313 = vpop.f32.mrb[0].mxu0
        %v4314 = vadd.f32 0.0, %v4313
        %v4315 = vpop.f32.mrb[0].mxu0
        %v4316 = vadd.f32 0.0, %v4315
        %v4317 = vpop.f32.mrb[0].mxu0
        %v4318 = vadd.f32 0.0, %v4317
        %v4319 = vpop.f32.mrb[0].mxu0
        %v4320 = vadd.f32 0.0, %v4319
        %4321 = vmatprep.mubr.bf16.mxu0 %v4059
        %4322 = vmatmul.mubr.bf16.gmra.mrb[0].mxu0 %v4058
        %v4323 = vpop.f32.mrb[0].mxu0
        %v4324 = vadd.f32 0.0, %v4323
        %v4325 = vpop.f32.mrb[0].mxu0
        %v4326 = vadd.f32 0.0, %v4325
        %v4327 = vpop.f32.mrb[0].mxu0
        %v4328 = vadd.f32 0.0, %v4327
        %v4329 = vpop.f32.mrb[0].mxu0
        %v4330 = vadd.f32 0.0, %v4329
        %4331 = vmatprep.mubr.bf16.mxu0 %v4063
        %4332 = vmatmul.mubr.bf16.gmra.mrb[0].mxu0 %v4062
        %v4333 = vpop.f32.mrb[0].mxu0
        %v4334 = vadd.f32 0.0, %v4333
        %v4335 = vpop.f32.mrb[0].mxu0
        %v4336 = vadd.f32 0.0, %v4335
        %v4337 = vpop.f32.mrb[0].mxu0
        %v4338 = vadd.f32 0.0, %v4337
        %v4339 = vpop.f32.mrb[0].mxu0
        %v4340 = vadd.f32 0.0, %v4339
        %4341 = vmatprep.mubr.bf16.mxu0 %v4067
        %4342 = vmatmul.mubr.bf16.gmra.mrb[0].mxu0 %v4066
        %v4343 = vpop.f32.mrb[0].mxu0
        %v4344 = vadd.f32 0.0, %v4343
        %v4345 = vpop.f32.mrb[0].mxu0
        %v4346 = vadd.f32 0.0, %v4345
        %v4347 = vpop.f32.mrb[0].mxu0
        %v4348 = vadd.f32 0.0, %v4347
        %v4349 = vpop.f32.mrb[0].mxu0
        %v4350 = vadd.f32 0.0, %v4349
        %4351 = vmatprep.mubr.bf16.mxu0 %v4071
        %4352 = vmatmul.mubr.bf16.gmra.mrb[0].mxu0 %v4070
        %v4353 = vpop.f32.mrb[0].mxu0
        %v4354 = vadd.f32 0.0, %v4353
        %v4355 = vpop.f32.mrb[0].mxu0
        %v4356 = vadd.f32 0.0, %v4355
        %v4357 = vpop.f32.mrb[0].mxu0
        %v4358 = vadd.f32 0.0, %v4357
        %v4359 = vpop.f32.mrb[0].mxu0
        %v4360 = vadd.f32 0.0, %v4359
        %4361 = vmatprep.mubr.bf16.mxu0 %v4075
        %4362 = vmatmul.mubr.bf16.gmra.mrb[0].mxu0 %v4074
        %v4363 = vpop.f32.mrb[0].mxu0
        %v4364 = vadd.f32 0.0, %v4363
        %v4365 = vpop.f32.mrb[0].mxu0
        %v4366 = vadd.f32 0.0, %v4365
        %v4367 = vpop.f32.mrb[0].mxu0
        %v4368 = vadd.f32 0.0, %v4367
        %v4369 = vpop.f32.mrb[0].mxu0
        %v4370 = vadd.f32 0.0, %v4369
        %4371 = vmatprep.mubr.bf16.mxu0 %v4079
        %4372 = vmatmul.mubr.bf16.gmra.mrb[0].mxu0 %v4078
        %v4373 = vpop.f32.mrb[0].mxu0
        %v4374 = vadd.f32 0.0, %v4373
        %v4375 = vpop.f32.mrb[0].mxu0
        %v4376 = vadd.f32 0.0, %v4375
        %v4377 = vpop.f32.mrb[0].mxu0
        %v4378 = vadd.f32 0.0, %v4377
        %v4379 = vpop.f32.mrb[0].mxu0
        %v4380 = vadd.f32 0.0, %v4379
        %4381 = vmatprep.mubr.bf16.mxu0 %v4083
        %4382 = vmatmul.mubr.bf16.gmra.mrb[0].mxu0 %v4082
        %v4383 = vpop.f32.mrb[0].mxu0
        %v4384 = vadd.f32 0.0, %v4383
        %v4385 = vpop.f32.mrb[0].mxu0
        %v4386 = vadd.f32 0.0, %v4385
        %v4387 = vpop.f32.mrb[0].mxu0
        %v4388 = vadd.f32 0.0, %v4387
        %v4389 = vpop.f32.mrb[0].mxu0
        %v4390 = vadd.f32 0.0, %v4389
        %4391 = vdwg.mxu0
        %4392 = vmatprep.subr.bf16.mxu0 %v4216
        %4393 = vmatpush1.bf16.msra.mxu0 %v4215
        %4394 = vmatprep.subr.bf16.mxu0 %v4220
        %4395 = vmatpush1.bf16.msra.mxu0 %v4219
        %4396 = vmatprep.subr.bf16.mxu0 %v4224
        %4397 = vmatpush1.bf16.msra.mxu0 %v4223
        %4398 = vmatprep.subr.bf16.mxu0 %v4228
        %4399 = vmatpush1.bf16.msra.mxu0 %v4227
        %4400 = vmatprep.subr.bf16.mxu0 %v4232
        %4401 = vmatpush1.bf16.msra.mxu0 %v4231
        %4402 = vmatprep.subr.bf16.mxu0 %v4236
        %4403 = vmatpush1.bf16.msra.mxu0 %v4235
        %4404 = vmatprep.subr.bf16.mxu0 %v4240
        %4405 = vmatpush1.bf16.msra.mxu0 %v4239
        %4406 = vmatprep.subr.bf16.mxu0 %v4244
        %4407 = vmatpush1.bf16.msra.mxu0 %v4243
        %4408 = vmatprep.subr.bf16.mxu0 %v4248
        %4409 = vmatpush1.bf16.msra.mxu0 %v4247
        %4410 = vmatprep.subr.bf16.mxu0 %v4252
        %4411 = vmatpush1.bf16.msra.mxu0 %v4251
        %4412 = vmatprep.subr.bf16.mxu0 %v4256
        %4413 = vmatpush1.bf16.msra.mxu0 %v4255
        %4414 = vmatprep.subr.bf16.mxu0 %v4260
        %4415 = vmatpush1.bf16.msra.mxu0 %v4259
        %4416 = vmatprep.subr.bf16.mxu0 %v4264
        %4417 = vmatpush1.bf16.msra.mxu0 %v4263
        %4418 = vmatprep.subr.bf16.mxu0 %v4268
        %4419 = vmatpush1.bf16.msra.mxu0 %v4267
        %4420 = vmatprep.subr.bf16.mxu0 %v4272
        %4421 = vmatpush1.bf16.msra.mxu0 %v4271
        %4422 = vmatprep.subr.bf16.mxu0 %v4276
        %4423 = vmatpush1.bf16.msra.mxu0 %v4275
        %4424 = vmatprep.mubr.bf16.mxu0 %v4057
        %4425 = vmatmul.mubr.bf16.gmra.mrb[0].mxu0 %v4056
        %v4426 = vpop.f32.mrb[0].mxu0
        %v4427 = vadd.f32 %v4314, %v4426
        %v4428 = vpop.f32.mrb[0].mxu0
        %v4429 = vadd.f32 %v4316, %v4428
        %v4430 = vpop.f32.mrb[0].mxu0
        %v4431 = vadd.f32 %v4318, %v4430
        %v4432 = vpop.f32.mrb[0].mxu0
        %v4433 = vadd.f32 %v4320, %v4432
        %4434 = vmatprep.mubr.bf16.mxu0 %v4061
        %4435 = vmatmul.mubr.bf16.gmra.mrb[0].mxu0 %v4060
        %v4436 = vpop.f32.mrb[0].mxu0
        %v4437 = vadd.f32 %v4324, %v4436
        %v4438 = vpop.f32.mrb[0].mxu0
        %v4439 = vadd.f32 %v4326, %v4438
        %v4440 = vpop.f32.mrb[0].mxu0
        %v4441 = vadd.f32 %v4328, %v4440
        %v4442 = vpop.f32.mrb[0].mxu0
        %v4443 = vadd.f32 %v4330, %v4442
        %4444 = vmatprep.mubr.bf16.mxu0 %v4065
        %4445 = vmatmul.mubr.bf16.gmra.mrb[0].mxu0 %v4064
        %v4446 = vpop.f32.mrb[0].mxu0
        %v4447 = vadd.f32 %v4334, %v4446
        %v4448 = vpop.f32.mrb[0].mxu0
        %v4449 = vadd.f32 %v4336, %v4448
        %v4450 = vpop.f32.mrb[0].mxu0
        %v4451 = vadd.f32 %v4338, %v4450
        %v4452 = vpop.f32.mrb[0].mxu0
        %v4453 = vadd.f32 %v4340, %v4452
        %4454 = vmatprep.mubr.bf16.mxu0 %v4069
        %4455 = vmatmul.mubr.bf16.gmra.mrb[0].mxu0 %v4068
        %v4456 = vpop.f32.mrb[0].mxu0
        %v4457 = vadd.f32 %v4344, %v4456
        %v4458 = vpop.f32.mrb[0].mxu0
        %v4459 = vadd.f32 %v4346, %v4458
        %v4460 = vpop.f32.mrb[0].mxu0
        %v4461 = vadd.f32 %v4348, %v4460
        %v4462 = vpop.f32.mrb[0].mxu0
        %v4463 = vadd.f32 %v4350, %v4462
        %4464 = vmatprep.mubr.bf16.mxu0 %v4073
        %4465 = vmatmul.mubr.bf16.gmra.mrb[0].mxu0 %v4072
        %v4466 = vpop.f32.mrb[0].mxu0
        %v4467 = vadd.f32 %v4354, %v4466
        %v4468 = vpop.f32.mrb[0].mxu0
        %v4469 = vadd.f32 %v4356, %v4468
        %v4470 = vpop.f32.mrb[0].mxu0
        %v4471 = vadd.f32 %v4358, %v4470
        %v4472 = vpop.f32.mrb[0].mxu0
        %v4473 = vadd.f32 %v4360, %v4472
        %4474 = vmatprep.mubr.bf16.mxu0 %v4077
        %4475 = vmatmul.mubr.bf16.gmra.mrb[0].mxu0 %v4076
        %v4476 = vpop.f32.mrb[0].mxu0
        %v4477 = vadd.f32 %v4364, %v4476
        %v4478 = vpop.f32.mrb[0].mxu0
        %v4479 = vadd.f32 %v4366, %v4478
        %v4480 = vpop.f32.mrb[0].mxu0
        %v4481 = vadd.f32 %v4368, %v4480
        %v4482 = vpop.f32.mrb[0].mxu0
        %v4483 = vadd.f32 %v4370, %v4482
        %4484 = vmatprep.mubr.bf16.mxu0 %v4081
        %4485 = vmatmul.mubr.bf16.gmra.mrb[0].mxu0 %v4080
        %v4486 = vpop.f32.mrb[0].mxu0
        %v4487 = vadd.f32 %v4374, %v4486
        %v4488 = vpop.f32.mrb[0].mxu0
        %v4489 = vadd.f32 %v4376, %v4488
        %v4490 = vpop.f32.mrb[0].mxu0
        %v4491 = vadd.f32 %v4378, %v4490
        %v4492 = vpop.f32.mrb[0].mxu0
        %v4493 = vadd.f32 %v4380, %v4492
        %4494 = vmatprep.mubr.bf16.mxu0 %v4085
        %4495 = vmatmul.mubr.bf16.gmra.mrb[0].mxu0 %v4084
        %v4496 = vpop.f32.mrb[0].mxu0
        %v4497 = vadd.f32 %v4384, %v4496
        %v4498 = vpop.f32.mrb[0].mxu0
        %v4499 = vadd.f32 %v4386, %v4498
        %v4500 = vpop.f32.mrb[0].mxu0
        %v4501 = vadd.f32 %v4388, %v4500
        %v4502 = vpop.f32.mrb[0].mxu0
        %v4503 = vadd.f32 %v4390, %v4502
        %4504 = vdwg.mxu0
        %4505 = vmatprep.subr.bf16.mxu0 %v4154
        %4506 = vmatpush1.bf16.msra.mxu0 %v4153
        %4507 = vmatprep.subr.bf16.mxu0 %v4158
        %4508 = vmatpush1.bf16.msra.mxu0 %v4157
        %4509 = vmatprep.subr.bf16.mxu0 %v4162
        %4510 = vmatpush1.bf16.msra.mxu0 %v4161
        %4511 = vmatprep.subr.bf16.mxu0 %v4166
        %4512 = vmatpush1.bf16.msra.mxu0 %v4165
        %4513 = vmatprep.subr.bf16.mxu0 %v4170
        %4514 = vmatpush1.bf16.msra.mxu0 %v4169
        %4515 = vmatprep.subr.bf16.mxu0 %v4174
        %4516 = vmatpush1.bf16.msra.mxu0 %v4173
        %4517 = vmatprep.subr.bf16.mxu0 %v4178
        %4518 = vmatpush1.bf16.msra.mxu0 %v4177
        %4519 = vmatprep.subr.bf16.mxu0 %v4182
        %4520 = vmatpush1.bf16.msra.mxu0 %v4181
        %4521 = vmatprep.subr.bf16.mxu0 %v4186
        %4522 = vmatpush1.bf16.msra.mxu0 %v4185
        %4523 = vmatprep.subr.bf16.mxu0 %v4190
        %4524 = vmatpush1.bf16.msra.mxu0 %v4189
        %4525 = vmatprep.subr.bf16.mxu0 %v4194
        %4526 = vmatpush1.bf16.msra.mxu0 %v4193
        %4527 = vmatprep.subr.bf16.mxu0 %v4198
        %4528 = vmatpush1.bf16.msra.mxu0 %v4197
        %4529 = vmatprep.subr.bf16.mxu0 %v4202
        %4530 = vmatpush1.bf16.msra.mxu0 %v4201
        %4531 = vmatprep.subr.bf16.mxu0 %v4206
        %4532 = vmatpush1.bf16.msra.mxu0 %v4205
        %4533 = vmatprep.subr.bf16.mxu0 %v4210
        %4534 = vmatpush1.bf16.msra.mxu0 %v4209
        %4535 = vmatprep.subr.bf16.mxu0 %v4214
        %4536 = vmatpush1.bf16.msra.mxu0 %v4213
        %4537 = vmatprep.mubr.bf16.mxu0 %v4055
        %4538 = vmatmul.mubr.bf16.gmra.mrb[0].mxu0 %v4054
        %v4539 = vpop.f32.mrb[0].mxu0
        %v4540 = vadd.f32 0.0, %v4539
        %v4541 = vpop.f32.mrb[0].mxu0
        %v4542 = vadd.f32 0.0, %v4541
        %v4543 = vpop.f32.mrb[0].mxu0
        %v4544 = vadd.f32 0.0, %v4543
        %v4545 = vpop.f32.mrb[0].mxu0
        %v4546 = vadd.f32 0.0, %v4545
        %4547 = vmatprep.mubr.bf16.mxu0 %v4059
        %4548 = vmatmul.mubr.bf16.gmra.mrb[0].mxu0 %v4058
        %v4549 = vpop.f32.mrb[0].mxu0
        %v4550 = vadd.f32 0.0, %v4549
        %v4551 = vpop.f32.mrb[0].mxu0
        %v4552 = vadd.f32 0.0, %v4551
        %v4553 = vpop.f32.mrb[0].mxu0
        %v4554 = vadd.f32 0.0, %v4553
        %v4555 = vpop.f32.mrb[0].mxu0
        %v4556 = vadd.f32 0.0, %v4555
        %4557 = vmatprep.mubr.bf16.mxu0 %v4063
        %4558 = vmatmul.mubr.bf16.gmra.mrb[0].mxu0 %v4062
        %v4559 = vpop.f32.mrb[0].mxu0
        %v4560 = vadd.f32 0.0, %v4559
        %v4561 = vpop.f32.mrb[0].mxu0
        %v4562 = vadd.f32 0.0, %v4561
        %v4563 = vpop.f32.mrb[0].mxu0
        %v4564 = vadd.f32 0.0, %v4563
        %v4565 = vpop.f32.mrb[0].mxu0
        %v4566 = vadd.f32 0.0, %v4565
        %4567 = vmatprep.mubr.bf16.mxu0 %v4067
        %4568 = vmatmul.mubr.bf16.gmra.mrb[0].mxu0 %v4066
        %v4569 = vpop.f32.mrb[0].mxu0
        %v4570 = vadd.f32 0.0, %v4569
        %v4571 = vpop.f32.mrb[0].mxu0
        %v4572 = vadd.f32 0.0, %v4571
        %v4573 = vpop.f32.mrb[0].mxu0
        %v4574 = vadd.f32 0.0, %v4573
        %v4575 = vpop.f32.mrb[0].mxu0
        %v4576 = vadd.f32 0.0, %v4575
        %4577 = vmatprep.mubr.bf16.mxu0 %v4071
        %4578 = vmatmul.mubr.bf16.gmra.mrb[0].mxu0 %v4070
        %v4579 = vpop.f32.mrb[0].mxu0
        %v4580 = vadd.f32 0.0, %v4579
        %v4581 = vpop.f32.mrb[0].mxu0
        %v4582 = vadd.f32 0.0, %v4581
        %v4583 = vpop.f32.mrb[0].mxu0
        %v4584 = vadd.f32 0.0, %v4583
        %v4585 = vpop.f32.mrb[0].mxu0
        %v4586 = vadd.f32 0.0, %v4585
        %4587 = vmatprep.mubr.bf16.mxu0 %v4075
        %4588 = vmatmul.mubr.bf16.gmra.mrb[0].mxu0 %v4074
        %v4589 = vpop.f32.mrb[0].mxu0
        %v4590 = vadd.f32 0.0, %v4589
        %v4591 = vpop.f32.mrb[0].mxu0
        %v4592 = vadd.f32 0.0, %v4591
        %v4593 = vpop.f32.mrb[0].mxu0
        %v4594 = vadd.f32 0.0, %v4593
        %v4595 = vpop.f32.mrb[0].mxu0
        %v4596 = vadd.f32 0.0, %v4595
        %4597 = vmatprep.mubr.bf16.mxu0 %v4079
        %4598 = vmatmul.mubr.bf16.gmra.mrb[0].mxu0 %v4078
        %v4599 = vpop.f32.mrb[0].mxu0
        %v4600 = vadd.f32 0.0, %v4599
        %v4601 = vpop.f32.mrb[0].mxu0
        %v4602 = vadd.f32 0.0, %v4601
        %v4603 = vpop.f32.mrb[0].mxu0
        %v4604 = vadd.f32 0.0, %v4603
        %v4605 = vpop.f32.mrb[0].mxu0
        %v4606 = vadd.f32 0.0, %v4605
        %4607 = vmatprep.mubr.bf16.mxu0 %v4083
        %4608 = vmatmul.mubr.bf16.gmra.mrb[0].mxu0 %v4082
        %v4609 = vpop.f32.mrb[0].mxu0
        %v4610 = vadd.f32 0.0, %v4609
        %v4611 = vpop.f32.mrb[0].mxu0
        %v4612 = vadd.f32 0.0, %v4611
        %v4613 = vpop.f32.mrb[0].mxu0
        %v4614 = vadd.f32 0.0, %v4613
        %v4615 = vpop.f32.mrb[0].mxu0
        %v4616 = vadd.f32 0.0, %v4615
        %4617 = vdwg.mxu0
        %4618 = vmatprep.subr.bf16.mxu0 %v4218
        %4619 = vmatpush1.bf16.msra.mxu0 %v4217
        %4620 = vmatprep.subr.bf16.mxu0 %v4222
        %4621 = vmatpush1.bf16.msra.mxu0 %v4221
        %4622 = vmatprep.subr.bf16.mxu0 %v4226
        %4623 = vmatpush1.bf16.msra.mxu0 %v4225
        %4624 = vmatprep.subr.bf16.mxu0 %v4230
        %4625 = vmatpush1.bf16.msra.mxu0 %v4229
        %4626 = vmatprep.subr.bf16.mxu0 %v4234
        %4627 = vmatpush1.bf16.msra.mxu0 %v4233
        %4628 = vmatprep.subr.bf16.mxu0 %v4238
        %4629 = vmatpush1.bf16.msra.mxu0 %v4237
        %4630 = vmatprep.subr.bf16.mxu0 %v4242
        %4631 = vmatpush1.bf16.msra.mxu0 %v4241
        %4632 = vmatprep.subr.bf16.mxu0 %v4246
        %4633 = vmatpush1.bf16.msra.mxu0 %v4245
        %4634 = vmatprep.subr.bf16.mxu0 %v4250
        %4635 = vmatpush1.bf16.msra.mxu0 %v4249
        %4636 = vmatprep.subr.bf16.mxu0 %v4254
        %4637 = vmatpush1.bf16.msra.mxu0 %v4253
        %4638 = vmatprep.subr.bf16.mxu0 %v4258
        %4639 = vmatpush1.bf16.msra.mxu0 %v4257
        %4640 = vmatprep.subr.bf16.mxu0 %v4262
        %4641 = vmatpush1.bf16.msra.mxu0 %v4261
        %4642 = vmatprep.subr.bf16.mxu0 %v4266
        %4643 = vmatpush1.bf16.msra.mxu0 %v4265
        %4644 = vmatprep.subr.bf16.mxu0 %v4270
        %4645 = vmatpush1.bf16.msra.mxu0 %v4269
        %4646 = vmatprep.subr.bf16.mxu0 %v4274
        %4647 = vmatpush1.bf16.msra.mxu0 %v4273
        %4648 = vmatprep.subr.bf16.mxu0 %v4278
        %4649 = vmatpush1.bf16.msra.mxu0 %v4277
        %4650 = vmatprep.mubr.bf16.mxu0 %v4057
        %4651 = vmatmul.mubr.bf16.gmra.mrb[0].mxu0 %v4056
        %v4652 = vpop.f32.mrb[0].mxu0
        %v4653 = vadd.f32 %v4540, %v4652
        %v4654 = vpop.f32.mrb[0].mxu0
        %v4655 = vadd.f32 %v4542, %v4654
        %v4656 = vpop.f32.mrb[0].mxu0
        %v4657 = vadd.f32 %v4544, %v4656
        %v4658 = vpop.f32.mrb[0].mxu0
        %v4659 = vadd.f32 %v4546, %v4658
        %4660 = vmatprep.mubr.bf16.mxu0 %v4061
        %4661 = vmatmul.mubr.bf16.gmra.mrb[0].mxu0 %v4060
        %v4662 = vpop.f32.mrb[0].mxu0
        %v4663 = vadd.f32 %v4550, %v4662
        %v4664 = vpop.f32.mrb[0].mxu0
        %v4665 = vadd.f32 %v4552, %v4664
        %v4666 = vpop.f32.mrb[0].mxu0
        %v4667 = vadd.f32 %v4554, %v4666
        %v4668 = vpop.f32.mrb[0].mxu0
        %v4669 = vadd.f32 %v4556, %v4668
        %4670 = vmatprep.mubr.bf16.mxu0 %v4065
        %4671 = vmatmul.mubr.bf16.gmra.mrb[0].mxu0 %v4064
        %v4672 = vpop.f32.mrb[0].mxu0
        %v4673 = vadd.f32 %v4560, %v4672
        %v4674 = vpop.f32.mrb[0].mxu0
        %v4675 = vadd.f32 %v4562, %v4674
        %v4676 = vpop.f32.mrb[0].mxu0
        %v4677 = vadd.f32 %v4564, %v4676
        %v4678 = vpop.f32.mrb[0].mxu0
        %v4679 = vadd.f32 %v4566, %v4678
        %4680 = vmatprep.mubr.bf16.mxu0 %v4069
        %4681 = vmatmul.mubr.bf16.gmra.mrb[0].mxu0 %v4068
        %v4682 = vpop.f32.mrb[0].mxu0
        %v4683 = vadd.f32 %v4570, %v4682
        %v4684 = vpop.f32.mrb[0].mxu0
        %v4685 = vadd.f32 %v4572, %v4684
        %v4686 = vpop.f32.mrb[0].mxu0
        %v4687 = vadd.f32 %v4574, %v4686
        %v4688 = vpop.f32.mrb[0].mxu0
        %v4689 = vadd.f32 %v4576, %v4688
        %4690 = vmatprep.mubr.bf16.mxu0 %v4073
        %4691 = vmatmul.mubr.bf16.gmra.mrb[0].mxu0 %v4072
        %v4692 = vpop.f32.mrb[0].mxu0
        %v4693 = vadd.f32 %v4580, %v4692
        %v4694 = vpop.f32.mrb[0].mxu0
        %v4695 = vadd.f32 %v4582, %v4694
        %v4696 = vpop.f32.mrb[0].mxu0
        %v4697 = vadd.f32 %v4584, %v4696
        %v4698 = vpop.f32.mrb[0].mxu0
        %v4699 = vadd.f32 %v4586, %v4698
        %4700 = vmatprep.mubr.bf16.mxu0 %v4077
        %4701 = vmatmul.mubr.bf16.gmra.mrb[0].mxu0 %v4076
        %v4702 = vpop.f32.mrb[0].mxu0
        %v4703 = vadd.f32 %v4590, %v4702
        %v4704 = vpop.f32.mrb[0].mxu0
        %v4705 = vadd.f32 %v4592, %v4704
        %v4706 = vpop.f32.mrb[0].mxu0
        %v4707 = vadd.f32 %v4594, %v4706
        %v4708 = vpop.f32.mrb[0].mxu0
        %v4709 = vadd.f32 %v4596, %v4708
        %4710 = vmatprep.mubr.bf16.mxu0 %v4081
        %4711 = vmatmul.mubr.bf16.gmra.mrb[0].mxu0 %v4080
        %v4712 = vpop.f32.mrb[0].mxu0
        %v4713 = vadd.f32 %v4600, %v4712
        %v4714 = vpop.f32.mrb[0].mxu0
        %v4715 = vadd.f32 %v4602, %v4714
        %v4716 = vpop.f32.mrb[0].mxu0
        %v4717 = vadd.f32 %v4604, %v4716
        %v4718 = vpop.f32.mrb[0].mxu0
        %v4719 = vadd.f32 %v4606, %v4718
        %4720 = vmatprep.mubr.bf16.mxu0 %v4085
        %4721 = vmatmul.mubr.bf16.gmra.mrb[0].mxu0 %v4084
        %v4722 = vpop.f32.mrb[0].mxu0
        %v4723 = vadd.f32 %v4610, %v4722
        %v4724 = vpop.f32.mrb[0].mxu0
        %v4725 = vadd.f32 %v4612, %v4724
        %v4726 = vpop.f32.mrb[0].mxu0
        %v4727 = vadd.f32 %v4614, %v4726
        %v4728 = vpop.f32.mrb[0].mxu0
        %v4729 = vadd.f32 %v4616, %v4728
        %4730 = vdwg.mxu0
        %s4731 = scalar_lea.vmem [#allocation10], 4
        %v4732 = vld [vmem:[%s4731] ss:$8 sm:$0xf]
        %s4733 = scalar_lea.vmem [#allocation10], 5
        %v4734 = vld [vmem:[%s4733] ss:$8 sm:$0xf]
        %v4736 = vlaneseq
        %v4737 = vshrl.u32 %v4736, 7
        %v4738 = vsub.s32 0, %v4737
        %v4739 = vrot.slane %v4732, %v4738
        %v4740 = vlaneseq
        %v4741 = vshrl.u32 %v4740, 7
        %v4742 = vsub.s32 1, %v4741
        %v4743 = vrot.slane %v4732, %v4742
        %v4744 = vlaneseq
        %v4745 = vshrl.u32 %v4744, 7
        %v4746 = vsub.s32 2, %v4745
        %v4747 = vrot.slane %v4732, %v4746
        %v4748 = vlaneseq
        %v4749 = vshrl.u32 %v4748, 7
        %v4750 = vsub.s32 3, %v4749
        %v4751 = vrot.slane %v4732, %v4750
        %v4756 = vmul.f32 %v4427, %v4739
        %v4757 = vmul.f32 %v4429, %v4743
        %v4758 = vmul.f32 %v4653, %v4747
        %v4759 = vmul.f32 %v4655, %v4751
        %v4760 = vmul.f32 %v4431, %v4739
        %v4761 = vmul.f32 %v4433, %v4743
        %v4762 = vmul.f32 %v4657, %v4747
        %v4763 = vmul.f32 %v4659, %v4751
        %v4764 = vmul.f32 %v4437, %v4739
        %v4765 = vmul.f32 %v4439, %v4743
        %v4766 = vmul.f32 %v4663, %v4747
        %v4767 = vmul.f32 %v4665, %v4751
        %v4768 = vmul.f32 %v4441, %v4739
        %v4769 = vmul.f32 %v4443, %v4743
        %v4770 = vmul.f32 %v4667, %v4747
        %v4771 = vmul.f32 %v4669, %v4751
        %v4772 = vmul.f32 %v4447, %v4739
        %v4773 = vmul.f32 %v4449, %v4743
        %v4774 = vmul.f32 %v4673, %v4747
        %v4775 = vmul.f32 %v4675, %v4751
        %v4776 = vmul.f32 %v4451, %v4739
        %v4777 = vmul.f32 %v4453, %v4743
        %v4778 = vmul.f32 %v4677, %v4747
        %v4779 = vmul.f32 %v4679, %v4751
        %v4780 = vmul.f32 %v4457, %v4739
        %v4781 = vmul.f32 %v4459, %v4743
        %v4782 = vmul.f32 %v4683, %v4747
        %v4783 = vmul.f32 %v4685, %v4751
        %v4784 = vmul.f32 %v4461, %v4739
        %v4785 = vmul.f32 %v4463, %v4743
        %v4786 = vmul.f32 %v4687, %v4747
        %v4787 = vmul.f32 %v4689, %v4751
        %v4788 = vmul.f32 %v4467, %v4739
        %v4789 = vmul.f32 %v4469, %v4743
        %v4790 = vmul.f32 %v4693, %v4747
        %v4791 = vmul.f32 %v4695, %v4751
        %v4792 = vmul.f32 %v4471, %v4739
        %v4793 = vmul.f32 %v4473, %v4743
        %v4794 = vmul.f32 %v4697, %v4747
        %v4795 = vmul.f32 %v4699, %v4751
        %v4796 = vmul.f32 %v4477, %v4739
        %v4797 = vmul.f32 %v4479, %v4743
        %v4798 = vmul.f32 %v4703, %v4747
        %v4799 = vmul.f32 %v4705, %v4751
        %v4800 = vmul.f32 %v4481, %v4739
        %v4801 = vmul.f32 %v4483, %v4743
        %v4802 = vmul.f32 %v4707, %v4747
        %v4803 = vmul.f32 %v4709, %v4751
        %v4804 = vmul.f32 %v4487, %v4739
        %v4805 = vmul.f32 %v4489, %v4743
        %v4806 = vmul.f32 %v4713, %v4747
        %v4807 = vmul.f32 %v4715, %v4751
        %v4808 = vmul.f32 %v4491, %v4739
        %v4809 = vmul.f32 %v4493, %v4743
        %v4810 = vmul.f32 %v4717, %v4747
        %v4811 = vmul.f32 %v4719, %v4751
        %v4812 = vmul.f32 %v4497, %v4739
        %v4813 = vmul.f32 %v4499, %v4743
        %v4814 = vmul.f32 %v4723, %v4747
        %v4815 = vmul.f32 %v4725, %v4751
        %v4816 = vmul.f32 %v4501, %v4739
        %v4817 = vmul.f32 %v4503, %v4743
        %v4818 = vmul.f32 %v4727, %v4747
        %v4819 = vmul.f32 %v4729, %v4751
        %v4821 = vlaneseq
        %v4822 = vshrl.u32 %v4821, 7
        %v4823 = vsub.s32 0, %v4822
        %v4824 = vrot.slane %v4734, %v4823
        %v4825 = vlaneseq
        %v4826 = vshrl.u32 %v4825, 7
        %v4827 = vsub.s32 1, %v4826
        %v4828 = vrot.slane %v4734, %v4827
        %v4829 = vlaneseq
        %v4830 = vshrl.u32 %v4829, 7
        %v4831 = vsub.s32 2, %v4830
        %v4832 = vrot.slane %v4734, %v4831
        %v4833 = vlaneseq
        %v4834 = vshrl.u32 %v4833, 7
        %v4835 = vsub.s32 3, %v4834
        %v4836 = vrot.slane %v4734, %v4835
        %v4841 = vadd.f32 %v4756, %v4824
        %v4842 = vadd.f32 %v4757, %v4828
        %v4843 = vadd.f32 %v4758, %v4832
        %v4844 = vadd.f32 %v4759, %v4836
        %v4845 = vadd.f32 %v4760, %v4824
        %v4846 = vadd.f32 %v4761, %v4828
        %v4847 = vadd.f32 %v4762, %v4832
        %v4848 = vadd.f32 %v4763, %v4836
        %v4849 = vadd.f32 %v4764, %v4824
        %v4850 = vadd.f32 %v4765, %v4828
        %v4851 = vadd.f32 %v4766, %v4832
        %v4852 = vadd.f32 %v4767, %v4836
        %v4853 = vadd.f32 %v4768, %v4824
        %v4854 = vadd.f32 %v4769, %v4828
        %v4855 = vadd.f32 %v4770, %v4832
        %v4856 = vadd.f32 %v4771, %v4836
        %v4857 = vadd.f32 %v4772, %v4824
        %v4858 = vadd.f32 %v4773, %v4828
        %v4859 = vadd.f32 %v4774, %v4832
        %v4860 = vadd.f32 %v4775, %v4836
        %v4861 = vadd.f32 %v4776, %v4824
        %v4862 = vadd.f32 %v4777, %v4828
        %v4863 = vadd.f32 %v4778, %v4832
        %v4864 = vadd.f32 %v4779, %v4836
        %v4865 = vadd.f32 %v4780, %v4824
        %v4866 = vadd.f32 %v4781, %v4828
        %v4867 = vadd.f32 %v4782, %v4832
        %v4868 = vadd.f32 %v4783, %v4836
        %v4869 = vadd.f32 %v4784, %v4824
        %v4870 = vadd.f32 %v4785, %v4828
        %v4871 = vadd.f32 %v4786, %v4832
        %v4872 = vadd.f32 %v4787, %v4836
        %v4873 = vadd.f32 %v4788, %v4824
        %v4874 = vadd.f32 %v4789, %v4828
        %v4875 = vadd.f32 %v4790, %v4832
        %v4876 = vadd.f32 %v4791, %v4836
        %v4877 = vadd.f32 %v4792, %v4824
        %v4878 = vadd.f32 %v4793, %v4828
        %v4879 = vadd.f32 %v4794, %v4832
        %v4880 = vadd.f32 %v4795, %v4836
        %v4881 = vadd.f32 %v4796, %v4824
        %v4882 = vadd.f32 %v4797, %v4828
        %v4883 = vadd.f32 %v4798, %v4832
        %v4884 = vadd.f32 %v4799, %v4836
        %v4885 = vadd.f32 %v4800, %v4824
        %v4886 = vadd.f32 %v4801, %v4828
        %v4887 = vadd.f32 %v4802, %v4832
        %v4888 = vadd.f32 %v4803, %v4836
        %v4889 = vadd.f32 %v4804, %v4824
        %v4890 = vadd.f32 %v4805, %v4828
        %v4891 = vadd.f32 %v4806, %v4832
        %v4892 = vadd.f32 %v4807, %v4836
        %v4893 = vadd.f32 %v4808, %v4824
        %v4894 = vadd.f32 %v4809, %v4828
        %v4895 = vadd.f32 %v4810, %v4832
        %v4896 = vadd.f32 %v4811, %v4836
        %v4897 = vadd.f32 %v4812, %v4824
        %v4898 = vadd.f32 %v4813, %v4828
        %v4899 = vadd.f32 %v4814, %v4832
        %v4900 = vadd.f32 %v4815, %v4836
        %v4901 = vadd.f32 %v4816, %v4824
        %v4902 = vadd.f32 %v4817, %v4828
        %v4903 = vadd.f32 %v4818, %v4832
        %v4904 = vadd.f32 %v4819, %v4836
        %v4905 = vmax.f32 %v4841, 0.0
        %v4906 = vmax.f32 %v4842, 0.0
        %v4907 = vmax.f32 %v4843, 0.0
        %v4908 = vmax.f32 %v4844, 0.0
        %v4909 = vmax.f32 %v4845, 0.0
        %v4910 = vmax.f32 %v4846, 0.0
        %v4911 = vmax.f32 %v4847, 0.0
        %v4912 = vmax.f32 %v4848, 0.0
        %v4913 = vmax.f32 %v4849, 0.0
        %v4914 = vmax.f32 %v4850, 0.0
        %v4915 = vmax.f32 %v4851, 0.0
        %v4916 = vmax.f32 %v4852, 0.0
        %v4917 = vmax.f32 %v4853, 0.0
        %v4918 = vmax.f32 %v4854, 0.0
        %v4919 = vmax.f32 %v4855, 0.0
        %v4920 = vmax.f32 %v4856, 0.0
        %v4921 = vmax.f32 %v4857, 0.0
        %v4922 = vmax.f32 %v4858, 0.0
        %v4923 = vmax.f32 %v4859, 0.0
        %v4924 = vmax.f32 %v4860, 0.0
        %v4925 = vmax.f32 %v4861, 0.0
        %v4926 = vmax.f32 %v4862, 0.0
        %v4927 = vmax.f32 %v4863, 0.0
        %v4928 = vmax.f32 %v4864, 0.0
        %v4929 = vmax.f32 %v4865, 0.0
        %v4930 = vmax.f32 %v4866, 0.0
        %v4931 = vmax.f32 %v4867, 0.0
        %v4932 = vmax.f32 %v4868, 0.0
        %v4933 = vmax.f32 %v4869, 0.0
        %v4934 = vmax.f32 %v4870, 0.0
        %v4935 = vmax.f32 %v4871, 0.0
        %v4936 = vmax.f32 %v4872, 0.0
        %v4937 = vmax.f32 %v4873, 0.0
        %v4938 = vmax.f32 %v4874, 0.0
        %v4939 = vmax.f32 %v4875, 0.0
        %v4940 = vmax.f32 %v4876, 0.0
        %v4941 = vmax.f32 %v4877, 0.0
        %v4942 = vmax.f32 %v4878, 0.0
        %v4943 = vmax.f32 %v4879, 0.0
        %v4944 = vmax.f32 %v4880, 0.0
        %v4945 = vmax.f32 %v4881, 0.0
        %v4946 = vmax.f32 %v4882, 0.0
        %v4947 = vmax.f32 %v4883, 0.0
        %v4948 = vmax.f32 %v4884, 0.0
        %v4949 = vmax.f32 %v4885, 0.0
        %v4950 = vmax.f32 %v4886, 0.0
        %v4951 = vmax.f32 %v4887, 0.0
        %v4952 = vmax.f32 %v4888, 0.0
        %v4953 = vmax.f32 %v4889, 0.0
        %v4954 = vmax.f32 %v4890, 0.0
        %v4955 = vmax.f32 %v4891, 0.0
        %v4956 = vmax.f32 %v4892, 0.0
        %v4957 = vmax.f32 %v4893, 0.0
        %v4958 = vmax.f32 %v4894, 0.0
        %v4959 = vmax.f32 %v4895, 0.0
        %v4960 = vmax.f32 %v4896, 0.0
        %v4961 = vmax.f32 %v4897, 0.0
        %v4962 = vmax.f32 %v4898, 0.0
        %v4963 = vmax.f32 %v4899, 0.0
        %v4964 = vmax.f32 %v4900, 0.0
        %v4965 = vmax.f32 %v4901, 0.0
        %v4966 = vmax.f32 %v4902, 0.0
        %v4967 = vmax.f32 %v4903, 0.0
        %v4968 = vmax.f32 %v4904, 0.0
        %v4969 = vpack.c.bf16 %v4909, %v4905
        %v4970 = vpack.c.bf16 %v4910, %v4906
        %v4971 = vpack.c.bf16 %v4911, %v4907
        %v4972 = vpack.c.bf16 %v4912, %v4908
        %v4973 = vpack.c.bf16 %v4917, %v4913
        %v4974 = vpack.c.bf16 %v4918, %v4914
        %v4975 = vpack.c.bf16 %v4919, %v4915
        %v4976 = vpack.c.bf16 %v4920, %v4916
        %v4977 = vpack.c.bf16 %v4925, %v4921
        %v4978 = vpack.c.bf16 %v4926, %v4922
        %v4979 = vpack.c.bf16 %v4927, %v4923
        %v4980 = vpack.c.bf16 %v4928, %v4924
        %v4981 = vpack.c.bf16 %v4933, %v4929
        %v4982 = vpack.c.bf16 %v4934, %v4930
        %v4983 = vpack.c.bf16 %v4935, %v4931
        %v4984 = vpack.c.bf16 %v4936, %v4932
        %v4985 = vpack.c.bf16 %v4941, %v4937
        %v4986 = vpack.c.bf16 %v4942, %v4938
        %v4987 = vpack.c.bf16 %v4943, %v4939
        %v4988 = vpack.c.bf16 %v4944, %v4940
        %v4989 = vpack.c.bf16 %v4949, %v4945
        %v4990 = vpack.c.bf16 %v4950, %v4946
        %v4991 = vpack.c.bf16 %v4951, %v4947
        %v4992 = vpack.c.bf16 %v4952, %v4948
        %v4993 = vpack.c.bf16 %v4957, %v4953
        %v4994 = vpack.c.bf16 %v4958, %v4954
        %v4995 = vpack.c.bf16 %v4959, %v4955
        %v4996 = vpack.c.bf16 %v4960, %v4956
        %v4997 = vpack.c.bf16 %v4965, %v4961
        %v4998 = vpack.c.bf16 %v4966, %v4962
        %v4999 = vpack.c.bf16 %v4967, %v4963
        %v5000 = vpack.c.bf16 %v4968, %v4964
        %v5001 = vld [vmem:[#allocation8] sm:$0xf]
        %v5002 = vld [vmem:[#allocation8 + $0x4] sm:$0xf]
        %v5003 = vld [vmem:[#allocation8 + $0x8] sm:$0xf]
        %v5004 = vld [vmem:[#allocation8 + $0xc] sm:$0xf]
        %v5005 = vld [vmem:[#allocation8 + $0x10] sm:$0xf]
        %v5006 = vld [vmem:[#allocation8 + $0x14] sm:$0xf]
        %v5007 = vld [vmem:[#allocation8 + $0x18] sm:$0xf]
        %v5008 = vld [vmem:[#allocation8 + $0x1c] sm:$0xf]
        %v5009 = vld [vmem:[#allocation8 + $0x20] sm:$0xf]
        %v5010 = vld [vmem:[#allocation8 + $0x24] sm:$0xf]
        %v5011 = vld [vmem:[#allocation8 + $0x28] sm:$0xf]
        %v5012 = vld [vmem:[#allocation8 + $0x2c] sm:$0xf]
        %v5013 = vld [vmem:[#allocation8 + $0x30] sm:$0xf]
        %v5014 = vld [vmem:[#allocation8 + $0x34] sm:$0xf]
        %v5015 = vld [vmem:[#allocation8 + $0x38] sm:$0xf]
        %v5016 = vld [vmem:[#allocation8 + $0x3c] sm:$0xf]
        %v5017 = vld [vmem:[#allocation8 + $0x40] sm:$0xf]
        %v5018 = vld [vmem:[#allocation8 + $0x44] sm:$0xf]
        %v5019 = vld [vmem:[#allocation8 + $0x48] sm:$0xf]
        %v5020 = vld [vmem:[#allocation8 + $0x4c] sm:$0xf]
        %v5021 = vld [vmem:[#allocation8 + $0x50] sm:$0xf]
        %v5022 = vld [vmem:[#allocation8 + $0x54] sm:$0xf]
        %v5023 = vld [vmem:[#allocation8 + $0x58] sm:$0xf]
        %v5024 = vld [vmem:[#allocation8 + $0x5c] sm:$0xf]
        %v5025 = vld [vmem:[#allocation8 + $0x60] sm:$0xf]
        %v5026 = vld [vmem:[#allocation8 + $0x64] sm:$0xf]
        %v5027 = vld [vmem:[#allocation8 + $0x68] sm:$0xf]
        %v5028 = vld [vmem:[#allocation8 + $0x6c] sm:$0xf]
        %v5029 = vld [vmem:[#allocation8 + $0x70] sm:$0xf]
        %v5030 = vld [vmem:[#allocation8 + $0x74] sm:$0xf]
        %v5031 = vld [vmem:[#allocation8 + $0x78] sm:$0xf]
        %v5032 = vld [vmem:[#allocation8 + $0x7c] sm:$0xf]
        %v5033 = vld [vmem:[#allocation8 + $0x80] sm:$0xf]
        %v5034 = vld [vmem:[#allocation8 + $0x84] sm:$0xf]
        %v5035 = vld [vmem:[#allocation8 + $0x88] sm:$0xf]
        %v5036 = vld [vmem:[#allocation8 + $0x8c] sm:$0xf]
        %v5037 = vld [vmem:[#allocation8 + $0x90] sm:$0xf]
        %v5038 = vld [vmem:[#allocation8 + $0x94] sm:$0xf]
        %v5039 = vld [vmem:[#allocation8 + $0x98] sm:$0xf]
        %v5040 = vld [vmem:[#allocation8 + $0x9c] sm:$0xf]
        %v5041 = vld [vmem:[#allocation8 + $0xa0] sm:$0xf]
        %v5042 = vld [vmem:[#allocation8 + $0xa4] sm:$0xf]
        %v5043 = vld [vmem:[#allocation8 + $0xa8] sm:$0xf]
        %v5044 = vld [vmem:[#allocation8 + $0xac] sm:$0xf]
        %v5045 = vld [vmem:[#allocation8 + $0xb0] sm:$0xf]
        %v5046 = vld [vmem:[#allocation8 + $0xb4] sm:$0xf]
        %v5047 = vld [vmem:[#allocation8 + $0xb8] sm:$0xf]
        %v5048 = vld [vmem:[#allocation8 + $0xbc] sm:$0xf]
        %v5049 = vld [vmem:[#allocation8 + $0xc0] sm:$0xf]
        %v5050 = vld [vmem:[#allocation8 + $0xc4] sm:$0xf]
        %v5051 = vld [vmem:[#allocation8 + $0xc8] sm:$0xf]
        %v5052 = vld [vmem:[#allocation8 + $0xcc] sm:$0xf]
        %v5053 = vld [vmem:[#allocation8 + $0xd0] sm:$0xf]
        %v5054 = vld [vmem:[#allocation8 + $0xd4] sm:$0xf]
        %v5055 = vld [vmem:[#allocation8 + $0xd8] sm:$0xf]
        %v5056 = vld [vmem:[#allocation8 + $0xdc] sm:$0xf]
        %v5057 = vld [vmem:[#allocation8 + $0xe0] sm:$0xf]
        %v5058 = vld [vmem:[#allocation8 + $0xe4] sm:$0xf]
        %v5059 = vld [vmem:[#allocation8 + $0xe8] sm:$0xf]
        %v5060 = vld [vmem:[#allocation8 + $0xec] sm:$0xf]
        %v5061 = vld [vmem:[#allocation8 + $0xf0] sm:$0xf]
        %v5062 = vld [vmem:[#allocation8 + $0xf4] sm:$0xf]
        %v5063 = vld [vmem:[#allocation8 + $0xf8] sm:$0xf]
        %v5064 = vld [vmem:[#allocation8 + $0xfc] sm:$0xf]
        %v5129 = vunpack.c.l.b16 %v5001
        %v5130 = vunpack.c.l.b16 %v5002
        %v5131 = vunpack.c.l.b16 %v5003
        %v5132 = vunpack.c.l.b16 %v5004
        %v5133 = vunpack.c.l.b16 %v5005
        %v5134 = vunpack.c.l.b16 %v5006
        %v5135 = vunpack.c.l.b16 %v5007
        %v5136 = vunpack.c.l.b16 %v5008
        %v5137 = vunpack.c.l.b16 %v5009
        %v5138 = vunpack.c.l.b16 %v5010
        %v5139 = vunpack.c.l.b16 %v5011
        %v5140 = vunpack.c.l.b16 %v5012
        %v5141 = vunpack.c.l.b16 %v5013
        %v5142 = vunpack.c.l.b16 %v5014
        %v5143 = vunpack.c.l.b16 %v5015
        %v5144 = vunpack.c.l.b16 %v5016
        %v5145 = vunpack.c.l.b16 %v5017
        %v5146 = vunpack.c.l.b16 %v5018
        %v5147 = vunpack.c.l.b16 %v5019
        %v5148 = vunpack.c.l.b16 %v5020
        %v5149 = vunpack.c.l.b16 %v5021
        %v5150 = vunpack.c.l.b16 %v5022
        %v5151 = vunpack.c.l.b16 %v5023
        %v5152 = vunpack.c.l.b16 %v5024
        %v5153 = vunpack.c.l.b16 %v5025
        %v5154 = vunpack.c.l.b16 %v5026
        %v5155 = vunpack.c.l.b16 %v5027
        %v5156 = vunpack.c.l.b16 %v5028
        %v5157 = vunpack.c.l.b16 %v5029
        %v5158 = vunpack.c.l.b16 %v5030
        %v5159 = vunpack.c.l.b16 %v5031
        %v5160 = vunpack.c.l.b16 %v5032
        %v5161 = vunpack.c.l.b16 %v5033
        %v5162 = vunpack.c.l.b16 %v5034
        %v5163 = vunpack.c.l.b16 %v5035
        %v5164 = vunpack.c.l.b16 %v5036
        %v5165 = vunpack.c.l.b16 %v5037
        %v5166 = vunpack.c.l.b16 %v5038
        %v5167 = vunpack.c.l.b16 %v5039
        %v5168 = vunpack.c.l.b16 %v5040
        %v5169 = vunpack.c.l.b16 %v5041
        %v5170 = vunpack.c.l.b16 %v5042
        %v5171 = vunpack.c.l.b16 %v5043
        %v5172 = vunpack.c.l.b16 %v5044
        %v5173 = vunpack.c.l.b16 %v5045
        %v5174 = vunpack.c.l.b16 %v5046
        %v5175 = vunpack.c.l.b16 %v5047
        %v5176 = vunpack.c.l.b16 %v5048
        %v5177 = vunpack.c.l.b16 %v5049
        %v5178 = vunpack.c.l.b16 %v5050
        %v5179 = vunpack.c.l.b16 %v5051
        %v5180 = vunpack.c.l.b16 %v5052
        %v5181 = vunpack.c.l.b16 %v5053
        %v5182 = vunpack.c.l.b16 %v5054
        %v5183 = vunpack.c.l.b16 %v5055
        %v5184 = vunpack.c.l.b16 %v5056
        %v5185 = vunpack.c.l.b16 %v5057
        %v5186 = vunpack.c.l.b16 %v5058
        %v5187 = vunpack.c.l.b16 %v5059
        %v5188 = vunpack.c.l.b16 %v5060
        %v5189 = vunpack.c.l.b16 %v5061
        %v5190 = vunpack.c.l.b16 %v5062
        %v5191 = vunpack.c.l.b16 %v5063
        %v5192 = vunpack.c.l.b16 %v5064
        %v5193 = vpack.c.b16 %v5130, %v5129
        %v5194 = vpack.c.b16 %v5132, %v5131
        %v5195 = vpack.c.b16 %v5134, %v5133
        %v5196 = vpack.c.b16 %v5136, %v5135
        %v5197 = vpack.c.b16 %v5138, %v5137
        %v5198 = vpack.c.b16 %v5140, %v5139
        %v5199 = vpack.c.b16 %v5142, %v5141
        %v5200 = vpack.c.b16 %v5144, %v5143
        %v5201 = vpack.c.b16 %v5146, %v5145
        %v5202 = vpack.c.b16 %v5148, %v5147
        %v5203 = vpack.c.b16 %v5150, %v5149
        %v5204 = vpack.c.b16 %v5152, %v5151
        %v5205 = vpack.c.b16 %v5154, %v5153
        %v5206 = vpack.c.b16 %v5156, %v5155
        %v5207 = vpack.c.b16 %v5158, %v5157
        %v5208 = vpack.c.b16 %v5160, %v5159
        %v5209 = vpack.c.b16 %v5162, %v5161
        %v5210 = vpack.c.b16 %v5164, %v5163
        %v5211 = vpack.c.b16 %v5166, %v5165
        %v5212 = vpack.c.b16 %v5168, %v5167
        %v5213 = vpack.c.b16 %v5170, %v5169
        %v5214 = vpack.c.b16 %v5172, %v5171
        %v5215 = vpack.c.b16 %v5174, %v5173
        %v5216 = vpack.c.b16 %v5176, %v5175
        %v5217 = vpack.c.b16 %v5178, %v5177
        %v5218 = vpack.c.b16 %v5180, %v5179
        %v5219 = vpack.c.b16 %v5182, %v5181
        %v5220 = vpack.c.b16 %v5184, %v5183
        %v5221 = vpack.c.b16 %v5186, %v5185
        %v5222 = vpack.c.b16 %v5188, %v5187
        %v5223 = vpack.c.b16 %v5190, %v5189
        %v5224 = vpack.c.b16 %v5192, %v5191
        %5257 = vmatprep.subr.bf16.mxu0 0
        %5258 = vmatpush1.bf16.msra.mxu0 %v5193
        %5259 = vmatprep.subr.bf16.mxu0 0
        %5260 = vmatpush1.bf16.msra.mxu0 %v5194
        %5261 = vmatprep.subr.bf16.mxu0 0
        %5262 = vmatpush1.bf16.msra.mxu0 %v5195
        %5263 = vmatprep.subr.bf16.mxu0 0
        %5264 = vmatpush1.bf16.msra.mxu0 %v5196
        %5265 = vmatprep.subr.bf16.mxu0 0
        %5266 = vmatpush1.bf16.msra.mxu0 %v5197
        %5267 = vmatprep.subr.bf16.mxu0 0
        %5268 = vmatpush1.bf16.msra.mxu0 %v5198
        %5269 = vmatprep.subr.bf16.mxu0 0
        %5270 = vmatpush1.bf16.msra.mxu0 %v5199
        %5271 = vmatprep.subr.bf16.mxu0 0
        %5272 = vmatpush1.bf16.msra.mxu0 %v5200
        %5273 = vmatprep.subr.bf16.mxu0 0
        %5274 = vmatpush1.bf16.msra.mxu0 %v5201
        %5275 = vmatprep.subr.bf16.mxu0 0
        %5276 = vmatpush1.bf16.msra.mxu0 %v5202
        %5277 = vmatprep.subr.bf16.mxu0 0
        %5278 = vmatpush1.bf16.msra.mxu0 %v5203
        %5279 = vmatprep.subr.bf16.mxu0 0
        %5280 = vmatpush1.bf16.msra.mxu0 %v5204
        %5281 = vmatprep.subr.bf16.mxu0 0
        %5282 = vmatpush1.bf16.msra.mxu0 %v5205
        %5283 = vmatprep.subr.bf16.mxu0 0
        %5284 = vmatpush1.bf16.msra.mxu0 %v5206
        %5285 = vmatprep.subr.bf16.mxu0 0
        %5286 = vmatpush1.bf16.msra.mxu0 %v5207
        %5287 = vmatprep.subr.bf16.mxu0 0
        %5288 = vmatpush1.bf16.msra.mxu0 %v5208
        %5289 = vmatprep.mubr.bf16.mxu0 %v4970
        %5290 = vmatmul.mubr.bf16.gmra.mrb[0].mxu0 %v4969
        %v5291 = vpop.f32.mrb[0].mxu0
        %v5292 = vadd.f32 0.0, %v5291
        %v5293 = vpop.f32.mrb[0].mxu0
        %v5294 = vpop.f32.mrb[0].mxu0
        %v5295 = vadd.f32 0.0, %v5294
        %v5296 = vpop.f32.mrb[0].mxu0
        %5297 = vmatprep.mubr.bf16.mxu0 %v4974
        %5298 = vmatmul.mubr.bf16.gmra.mrb[0].mxu0 %v4973
        %v5299 = vpop.f32.mrb[0].mxu0
        %v5300 = vadd.f32 0.0, %v5299
        %v5301 = vpop.f32.mrb[0].mxu0
        %v5302 = vpop.f32.mrb[0].mxu0
        %v5303 = vadd.f32 0.0, %v5302
        %v5304 = vpop.f32.mrb[0].mxu0
        %5305 = vmatprep.mubr.bf16.mxu0 %v4978
        %5306 = vmatmul.mubr.bf16.gmra.mrb[0].mxu0 %v4977
        %v5307 = vpop.f32.mrb[0].mxu0
        %v5308 = vadd.f32 0.0, %v5307
        %v5309 = vpop.f32.mrb[0].mxu0
        %v5310 = vpop.f32.mrb[0].mxu0
        %v5311 = vadd.f32 0.0, %v5310
        %v5312 = vpop.f32.mrb[0].mxu0
        %5313 = vmatprep.mubr.bf16.mxu0 %v4982
        %5314 = vmatmul.mubr.bf16.gmra.mrb[0].mxu0 %v4981
        %v5315 = vpop.f32.mrb[0].mxu0
        %v5316 = vadd.f32 0.0, %v5315
        %v5317 = vpop.f32.mrb[0].mxu0
        %v5318 = vpop.f32.mrb[0].mxu0
        %v5319 = vadd.f32 0.0, %v5318
        %v5320 = vpop.f32.mrb[0].mxu0
        %5321 = vmatprep.mubr.bf16.mxu0 %v4986
        %5322 = vmatmul.mubr.bf16.gmra.mrb[0].mxu0 %v4985
        %v5323 = vpop.f32.mrb[0].mxu0
        %v5324 = vadd.f32 0.0, %v5323
        %v5325 = vpop.f32.mrb[0].mxu0
        %v5326 = vpop.f32.mrb[0].mxu0
        %v5327 = vadd.f32 0.0, %v5326
        %v5328 = vpop.f32.mrb[0].mxu0
        %5329 = vmatprep.mubr.bf16.mxu0 %v4990
        %5330 = vmatmul.mubr.bf16.gmra.mrb[0].mxu0 %v4989
        %v5331 = vpop.f32.mrb[0].mxu0
        %v5332 = vadd.f32 0.0, %v5331
        %v5333 = vpop.f32.mrb[0].mxu0
        %v5334 = vpop.f32.mrb[0].mxu0
        %v5335 = vadd.f32 0.0, %v5334
        %v5336 = vpop.f32.mrb[0].mxu0
        %5337 = vmatprep.mubr.bf16.mxu0 %v4994
        %5338 = vmatmul.mubr.bf16.gmra.mrb[0].mxu0 %v4993
        %v5339 = vpop.f32.mrb[0].mxu0
        %v5340 = vadd.f32 0.0, %v5339
        %v5341 = vpop.f32.mrb[0].mxu0
        %v5342 = vpop.f32.mrb[0].mxu0
        %v5343 = vadd.f32 0.0, %v5342
        %v5344 = vpop.f32.mrb[0].mxu0
        %5345 = vmatprep.mubr.bf16.mxu0 %v4998
        %5346 = vmatmul.mubr.bf16.gmra.mrb[0].mxu0 %v4997
        %v5347 = vpop.f32.mrb[0].mxu0
        %v5348 = vadd.f32 0.0, %v5347
        %v5349 = vpop.f32.mrb[0].mxu0
        %v5350 = vpop.f32.mrb[0].mxu0
        %v5351 = vadd.f32 0.0, %v5350
        %v5352 = vpop.f32.mrb[0].mxu0
        %5353 = vdwg.mxu0
        %5354 = vmatprep.subr.bf16.mxu0 0
        %5355 = vmatpush1.bf16.msra.mxu0 %v5209
        %5356 = vmatprep.subr.bf16.mxu0 0
        %5357 = vmatpush1.bf16.msra.mxu0 %v5210
        %5358 = vmatprep.subr.bf16.mxu0 0
        %5359 = vmatpush1.bf16.msra.mxu0 %v5211
        %5360 = vmatprep.subr.bf16.mxu0 0
        %5361 = vmatpush1.bf16.msra.mxu0 %v5212
        %5362 = vmatprep.subr.bf16.mxu0 0
        %5363 = vmatpush1.bf16.msra.mxu0 %v5213
        %5364 = vmatprep.subr.bf16.mxu0 0
        %5365 = vmatpush1.bf16.msra.mxu0 %v5214
        %5366 = vmatprep.subr.bf16.mxu0 0
        %5367 = vmatpush1.bf16.msra.mxu0 %v5215
        %5368 = vmatprep.subr.bf16.mxu0 0
        %5369 = vmatpush1.bf16.msra.mxu0 %v5216
        %5370 = vmatprep.subr.bf16.mxu0 0
        %5371 = vmatpush1.bf16.msra.mxu0 %v5217
        %5372 = vmatprep.subr.bf16.mxu0 0
        %5373 = vmatpush1.bf16.msra.mxu0 %v5218
        %5374 = vmatprep.subr.bf16.mxu0 0
        %5375 = vmatpush1.bf16.msra.mxu0 %v5219
        %5376 = vmatprep.subr.bf16.mxu0 0
        %5377 = vmatpush1.bf16.msra.mxu0 %v5220
        %5378 = vmatprep.subr.bf16.mxu0 0
        %5379 = vmatpush1.bf16.msra.mxu0 %v5221
        %5380 = vmatprep.subr.bf16.mxu0 0
        %5381 = vmatpush1.bf16.msra.mxu0 %v5222
        %5382 = vmatprep.subr.bf16.mxu0 0
        %5383 = vmatpush1.bf16.msra.mxu0 %v5223
        %5384 = vmatprep.subr.bf16.mxu0 0
        %5385 = vmatpush1.bf16.msra.mxu0 %v5224
        %5386 = vmatprep.mubr.bf16.mxu0 %v4972
        %5387 = vmatmul.mubr.bf16.gmra.mrb[0].mxu0 %v4971
        %v5388 = vpop.f32.mrb[0].mxu0
        %v5389 = vadd.f32 %v5292, %v5388
        %v5390 = vpop.f32.mrb[0].mxu0
        %v5391 = vpop.f32.mrb[0].mxu0
        %v5392 = vadd.f32 %v5295, %v5391
        %v5393 = vpop.f32.mrb[0].mxu0
        %5394 = vmatprep.mubr.bf16.mxu0 %v4976
        %5395 = vmatmul.mubr.bf16.gmra.mrb[0].mxu0 %v4975
        %v5396 = vpop.f32.mrb[0].mxu0
        %v5397 = vadd.f32 %v5300, %v5396
        %v5398 = vpop.f32.mrb[0].mxu0
        %v5399 = vpop.f32.mrb[0].mxu0
        %v5400 = vadd.f32 %v5303, %v5399
        %v5401 = vpop.f32.mrb[0].mxu0
        %5402 = vmatprep.mubr.bf16.mxu0 %v4980
        %5403 = vmatmul.mubr.bf16.gmra.mrb[0].mxu0 %v4979
        %v5404 = vpop.f32.mrb[0].mxu0
        %v5405 = vadd.f32 %v5308, %v5404
        %v5406 = vpop.f32.mrb[0].mxu0
        %v5407 = vpop.f32.mrb[0].mxu0
        %v5408 = vadd.f32 %v5311, %v5407
        %v5409 = vpop.f32.mrb[0].mxu0
        %5410 = vmatprep.mubr.bf16.mxu0 %v4984
        %5411 = vmatmul.mubr.bf16.gmra.mrb[0].mxu0 %v4983
        %v5412 = vpop.f32.mrb[0].mxu0
        %v5413 = vadd.f32 %v5316, %v5412
        %v5414 = vpop.f32.mrb[0].mxu0
        %v5415 = vpop.f32.mrb[0].mxu0
        %v5416 = vadd.f32 %v5319, %v5415
        %v5417 = vpop.f32.mrb[0].mxu0
        %5418 = vmatprep.mubr.bf16.mxu0 %v4988
        %5419 = vmatmul.mubr.bf16.gmra.mrb[0].mxu0 %v4987
        %v5420 = vpop.f32.mrb[0].mxu0
        %v5421 = vadd.f32 %v5324, %v5420
        %v5422 = vpop.f32.mrb[0].mxu0
        %v5423 = vpop.f32.mrb[0].mxu0
        %v5424 = vadd.f32 %v5327, %v5423
        %v5425 = vpop.f32.mrb[0].mxu0
        %5426 = vmatprep.mubr.bf16.mxu0 %v4992
        %5427 = vmatmul.mubr.bf16.gmra.mrb[0].mxu0 %v4991
        %v5428 = vpop.f32.mrb[0].mxu0
        %v5429 = vadd.f32 %v5332, %v5428
        %v5430 = vpop.f32.mrb[0].mxu0
        %v5431 = vpop.f32.mrb[0].mxu0
        %v5432 = vadd.f32 %v5335, %v5431
        %v5433 = vpop.f32.mrb[0].mxu0
        %5434 = vmatprep.mubr.bf16.mxu0 %v4996
        %5435 = vmatmul.mubr.bf16.gmra.mrb[0].mxu0 %v4995
        %v5436 = vpop.f32.mrb[0].mxu0
        %v5437 = vadd.f32 %v5340, %v5436
        %v5438 = vpop.f32.mrb[0].mxu0
        %v5439 = vpop.f32.mrb[0].mxu0
        %v5440 = vadd.f32 %v5343, %v5439
        %v5441 = vpop.f32.mrb[0].mxu0
        %5442 = vmatprep.mubr.bf16.mxu0 %v5000
        %5443 = vmatmul.mubr.bf16.gmra.mrb[0].mxu0 %v4999
        %v5444 = vpop.f32.mrb[0].mxu0
        %v5445 = vadd.f32 %v5348, %v5444
        %v5446 = vpop.f32.mrb[0].mxu0
        %v5447 = vpop.f32.mrb[0].mxu0
        %v5448 = vadd.f32 %v5351, %v5447
        %v5449 = vpop.f32.mrb[0].mxu0
        %5450 = vdwg.mxu0
        %v5451 = vld [vmem:[#allocation10 + $0x6] ss:$0 sm:$0xff]
        %v5452 = vld [vmem:[#allocation10 + $0x7] ss:$0 sm:$0xff]
        %v5453 = vmul.f32 %v5389, %v5451
        %v5454 = vmul.f32 %v5392, %v5451
        %v5455 = vmul.f32 %v5397, %v5451
        %v5456 = vmul.f32 %v5400, %v5451
        %v5457 = vmul.f32 %v5405, %v5451
        %v5458 = vmul.f32 %v5408, %v5451
        %v5459 = vmul.f32 %v5413, %v5451
        %v5460 = vmul.f32 %v5416, %v5451
        %v5461 = vmul.f32 %v5421, %v5451
        %v5462 = vmul.f32 %v5424, %v5451
        %v5463 = vmul.f32 %v5429, %v5451
        %v5464 = vmul.f32 %v5432, %v5451
        %v5465 = vmul.f32 %v5437, %v5451
        %v5466 = vmul.f32 %v5440, %v5451
        %v5467 = vmul.f32 %v5445, %v5451
        %v5468 = vmul.f32 %v5448, %v5451
        %v5469 = vadd.f32 %v5453, %v5452
        %v5470 = vadd.f32 %v5454, %v5452
        %v5471 = vadd.f32 %v5455, %v5452
        %v5472 = vadd.f32 %v5456, %v5452
        %v5473 = vadd.f32 %v5457, %v5452
        %v5474 = vadd.f32 %v5458, %v5452
        %v5475 = vadd.f32 %v5459, %v5452
        %v5476 = vadd.f32 %v5460, %v5452
        %v5477 = vadd.f32 %v5461, %v5452
        %v5478 = vadd.f32 %v5462, %v5452
        %v5479 = vadd.f32 %v5463, %v5452
        %v5480 = vadd.f32 %v5464, %v5452
        %v5481 = vadd.f32 %v5465, %v5452
        %v5482 = vadd.f32 %v5466, %v5452
        %v5483 = vadd.f32 %v5467, %v5452
        %v5484 = vadd.f32 %v5468, %v5452
        %5485 = vst [vmem:[%s299] sm:$0xff] %v5469
        %5486 = vst [vmem:[%s299 + $0x8] sm:$0xff] %v5470
        %5487 = vst [vmem:[%s299 + $0x10] sm:$0xff] %v5471
        %5488 = vst [vmem:[%s299 + $0x18] sm:$0xff] %v5472
        %5489 = vst [vmem:[%s299 + $0x20] sm:$0xff] %v5473
        %5490 = vst [vmem:[%s299 + $0x28] sm:$0xff] %v5474
        %5491 = vst [vmem:[%s299 + $0x30] sm:$0xff] %v5475
        %5492 = vst [vmem:[%s299 + $0x38] sm:$0xff] %v5476
        %5493 = vst [vmem:[%s299 + $0x40] sm:$0xff] %v5477
        %5494 = vst [vmem:[%s299 + $0x48] sm:$0xff] %v5478
        %5495 = vst [vmem:[%s299 + $0x50] sm:$0xff] %v5479
        %5496 = vst [vmem:[%s299 + $0x58] sm:$0xff] %v5480
        %5497 = vst [vmem:[%s299 + $0x60] sm:$0xff] %v5481
        %5498 = vst [vmem:[%s299 + $0x68] sm:$0xff] %v5482
        %5499 = vst [vmem:[%s299 + $0x70] sm:$0xff] %v5483
        %5500 = vst [vmem:[%s299 + $0x78] sm:$0xff] %v5484
        %s5501 = sand.u32 %s142, 1
        %s5502 = scalar_lea.sflag [#allocation4], %s5501
        %s5503 = sand.u32 %s142, 1
        %s5504 = smul.addr %s5503, 128
        %s5505 = scalar_lea.vmem [#allocation11], %s5504
        // Predicated region
        $region61: #{tpu_custom_call.1} parent=39 // pred_check
          %p5506 = pneg %p152
        $region62: #{tpu_custom_call.1} parent=39 // pred_check_branch
          %5508 = sbr.rel (%p5506) target = $region64
        $region63: #{tpu_custom_call.1} parent=39 // pred_region
          %s5509 = smul.u32 16, %s24
          %s5511 = ssub.s32 2048, 2048
          %5512 = vsyncadd %s5502, %s5511
          %s5513 = smul.addr %s5509, 128
          %s5514 = scalar_lea.hbm %s5, %s5513
          %s5515 = sshll.u32 %s5505, 4
          %s5516 = int_to_ptr.vmem [resolvable:$true] %s5515
          %5521 = dma.vmem_to_hbm [thread:$0]  %s5516, 2048, %s5514, %s5502, 128, 128, 8
        $region64: #{tpu_custom_call.1} parent=39 // pred_fallthru
          _
      $region40: #{tpu_custom_call.1} parent=5 // pred_fallthru
        _
      %p5522 = scmp.le.s32.totalorder 2, %s19
      // Predicated region
      $region65: #{tpu_custom_call.1} parent=5 // pred_check
        %p5523 = pneg %p5522
      $region66: #{tpu_custom_call.1} parent=5 // pred_check_branch
        %5525 = sbr.rel (%p5523) target = $region68
      $region67: #{tpu_custom_call.1} parent=5 // pred_region
        %s5526 = ssub.s32 %s19, 2
        // Predicated region
        $region69: #{tpu_custom_call.1} parent=67 // pred_check
          %p5527 = pneg %p158
        $region70: #{tpu_custom_call.1} parent=67 // pred_check_branch
          %5529 = sbr.rel (%p5527) target = $region72
        $region71: #{tpu_custom_call.1} parent=67 // pred_region
          %s5530 = sand.u32 %s143, 1
          %s5531 = scalar_lea.sflag [#allocation4], %s5530
          %s5532 = sand.u32 %s143, 1
          %s5533 = smul.addr %s5532, 128
          %s5534 = scalar_lea.vmem [#allocation11], %s5533
          %5535 = dma.done %s5531, 2048
        $region72: #{tpu_custom_call.1} parent=67 // pred_fallthru
          _
      $region68: #{tpu_custom_call.1} parent=5 // pred_fallthru
        _
    $region6: #{tpu_custom_call.1} parent=1 // loop_footer
      %s23 = sadd.s32 1, %s19
    $region7: #{tpu_custom_call.1} parent=1 // loop_footer_branch
      %18 = sbr.rel target = $region3
    $region8: #{tpu_custom_call.1} parent=1 // loop_exit
      _
    %5536 = vsyncpa [#allocation3], 1
    %s5537 = scalar_lea.sflag [#allocation3], 1
    %5538 = vsyncpa %s5537, 1
    %5539 = vsyncpa [#allocation6], 1
    %5540 = vsyncpa [#allocation9], 1
    %5541 = vsyncpa [#allocation4], 1
    %s5542 = scalar_lea.sflag [#allocation4], 1
    %5543 = vsyncpa %s5542, 1

</llo_original>
